<compile_context>
chip_gen: v7x
topology: tpu7x:2x2x1
jax: 0.10.0
libtpu: 0.0.40
codegen_flags: <defaults>
</compile_context>

<pallas_src>
import functools

import jax
import jax.numpy as jnp
from jax.experimental import pallas as pl
from jax.experimental.pallas import tpu as pltpu

EXPANSION = 4
BN_EPS = 1e-5


def _cdiv(a, b):
    return -(-a // b)


# ----------------------------------------------------------------------------
# Fused Bottleneck kernel: one grid step processes one image end-to-end.
# ----------------------------------------------------------------------------
def _bottleneck_kernel(xph_ref, w1_ref, s1_ref, b1_ref,
                       w2_ref, s2_ref, b2_ref,
                       w3_ref, s3_ref, b3_ref,
                       *rest, stride, h, w, ho, wo, use_proj):
    if use_proj:
        wsc_ref, ssc_ref, bsc_ref, out_ref, y1s_ref = rest
    else:
        out_ref, y1s_ref = rest

    st = stride
    nph = st * st
    planes = w1_ref.shape[1]
    rows = ho * wo                      # rows per stride phase (phase (0,0))
    bf16 = jnp.bfloat16

    # Zero-padded, stride-phase-decomposed y1 scratch.  The zero border plays
    # the role of the 3x3 conv's padding=1 (and of out-of-image rows/cols for
    # ragged phases).  Zeroed every step so correctness does not depend on how
    # the "parallel" grid is split across TensorCores.
    y1s_ref[...] = jnp.zeros_like(y1s_ref)

    # --- stage 1: 1x1 conv + BN1 + ReLU, ONE matmul over all phases ----------
    x_all = xph_ref[0]                                  # (nph*rows, Cin) bf16
    y_all = jnp.dot(x_all, w1_ref[...], preferred_element_type=jnp.float32)
    y_all = jnp.maximum(y_all * s1_ref[...] + b1_ref[...], 0.0)
    y_all = y_all.reshape(nph, ho, wo, planes)
    for ph in range(st):
        for pw in range(st):
            p = ph * st + pw
            u = _cdiv(h - ph, st)              # valid rows of this phase
            v = _cdiv(w - pw, st)              # valid cols of this phase
            # Host-side zero padding beyond (u, v) is discarded here, so the
            # scratch border / ragged remainder stays exactly zero.
            y1s_ref[p, 1:1 + u, 1:1 + v, :] = y_all[p, :u, :v, :]

    # --- stage 2: 3x3 / stride conv as a 9-tap accumulation + BN2 + ReLU ----
    acc = jnp.zeros((rows, planes), jnp.float32)
    for kh in range(3):
        for kw in range(3):
            ra, ca = kh - 1, kw - 1
            p = (ra % st) * st + (ca % st)     # phase holding this tap
            du, dv = ra // st, ca // st        # shift inside the phase plane
            slab = y1s_ref[p, 1 + du:1 + du + ho, 1 + dv:1 + dv + wo, :]
            acc = acc + jnp.dot(
                slab.reshape(rows, planes).astype(bf16),
                w2_ref[kh * 3 + kw],
                preferred_element_type=jnp.float32)
    y2 = jnp.maximum(acc * s2_ref[...] + b2_ref[...], 0.0)

    # --- stage 3: 1x1 conv + BN3, + shortcut, ReLU ---------------------------
    main = jnp.dot(y2.astype(bf16), w3_ref[...],
                   preferred_element_type=jnp.float32)
    main = main * s3_ref[...] + b3_ref[...]

    xs = x_all[:rows]                          # phase (0,0) == x[::st, ::st]
    if use_proj:
        sc = jnp.dot(xs, wsc_ref[...], preferred_element_type=jnp.float32)
        sc = sc * ssc_ref[...] + bsc_ref[...]
    else:
        sc = xs.astype(jnp.float32)            # identity shortcut
    out_ref[0] = jnp.maximum(main + sc, 0.0).astype(out_ref.dtype)


# ----------------------------------------------------------------------------
# Host-side wrapper
# ----------------------------------------------------------------------------
def _fold_bn(gamma, beta, mean, var, eps=BN_EPS):
    scale = gamma / jnp.sqrt(var + eps)
    bias = beta - mean * scale
    return scale, bias


def bottleneck_forward(x_nchw, params, stride):
    """x_nchw: (N, Cin, H, W) float32. Returns (N, 4*planes, Ho, Wo) float32."""
    n, cin, h, w = x_nchw.shape
    planes = params["w1"].shape[0]
    cout = EXPANSION * planes
    st = stride
    nph = st * st
    ho = _cdiv(h, st)                   # == extent of phase (0,0)
    wo = _cdiv(w, st)
    rows = ho * wo
    use_proj = (st != 1) or (cin != cout)

    # NCHW -> NHWC at the PyTorch-compatible boundary; pre-cast to bf16 (the
    # MXU operand dtype) so the biggest HBM stream is half-width and no x cast
    # happens in-kernel.  Accumulation stays f32 inside the kernel.
    # TODO(synk): in a full ResNet stack keep activations NHWC end-to-end to
    #             drop these boundary transposes per block.
    x = jnp.transpose(x_nchw, (0, 2, 3, 1)).astype(jnp.bfloat16)

    # Stride-phase decomposition of x (single XLA pass, total size == |x|),
    # each phase zero-padded to the (Ho, Wo) extent of phase (0,0) and the
    # whole thing flattened to (N, nph*Ho*Wo, Cin).  Replaces the old 9x
    # im2col AND the strided-slice shortcut input.
    phases = []
    for ph in range(st):
        for pw in range(st):
            xp = x[:, ph::st, pw::st, :]
            du = ho - xp.shape[1]
            dv = wo - xp.shape[2]
            if du or dv:
                xp = jnp.pad(xp, ((0, 0), (0, du), (0, dv), (0, 0)))
            phases.append(xp)
    xph = jnp.stack(phases, axis=1).reshape(n, nph * rows, cin)

    # Fold eval-mode BN into per-channel scale/bias; pre-cast weights to bf16.
    w1 = params["w1"].reshape(planes, cin).T.astype(jnp.bfloat16)
    s1, b1 = _fold_bn(*params["bn1"])
    w2 = jnp.transpose(params["w2"], (2, 3, 1, 0))           # (KH, KW, I, O)
    w2 = w2.reshape(9, planes, planes).astype(jnp.bfloat16)
    s2, b2 = _fold_bn(*params["bn2"])
    w3 = params["w3"].reshape(cout, planes).T.astype(jnp.bfloat16)
    s3, b3 = _fold_bn(*params["bn3"])

    in_specs = [
        pl.BlockSpec((1, nph * rows, cin), lambda i: (i, 0, 0)),
        pl.BlockSpec((cin, planes), lambda i: (0, 0)),
        pl.BlockSpec((1, planes), lambda i: (0, 0)),
        pl.BlockSpec((1, planes), lambda i: (0, 0)),
        pl.BlockSpec((9, planes, planes), lambda i: (0, 0, 0)),
        pl.BlockSpec((1, planes), lambda i: (0, 0)),
        pl.BlockSpec((1, planes), lambda i: (0, 0)),
        pl.BlockSpec((planes, cout), lambda i: (0, 0)),
        pl.BlockSpec((1, cout), lambda i: (0, 0)),
        pl.BlockSpec((1, cout), lambda i: (0, 0)),
    ]
    args = [xph, w1,
            s1.reshape(1, -1), b1.reshape(1, -1),
            w2, s2.reshape(1, -1), b2.reshape(1, -1),
            w3, s3.reshape(1, -1), b3.reshape(1, -1)]
    if use_proj:
        wsc = params["wsc"].reshape(cout, cin).T.astype(jnp.bfloat16)
        ssc, bsc = _fold_bn(*params["bnsc"])
        in_specs += [
            pl.BlockSpec((cin, cout), lambda i: (0, 0)),
            pl.BlockSpec((1, cout), lambda i: (0, 0)),
            pl.BlockSpec((1, cout), lambda i: (0, 0)),
        ]
        args += [wsc, ssc.reshape(1, -1), bsc.reshape(1, -1)]

    kernel = functools.partial(_bottleneck_kernel, stride=st, h=h, w=w,
                               ho=ho, wo=wo, use_proj=use_proj)

    out = pl.pallas_call(
        kernel,
        out_shape=jax.ShapeDtypeStruct((n, rows, cout), jnp.float32),
        grid=(n,),
        in_specs=in_specs,
        out_specs=pl.BlockSpec((1, rows, cout), lambda i: (i, 0, 0)),
        scratch_shapes=[
            pltpu.VMEM((nph, ho + 2, wo + 2, planes), jnp.float32)],
        compiler_params=pltpu.CompilerParams(
            dimension_semantics=("parallel",)),
    )(*args)

    out = out.reshape(n, ho, wo, cout)           # free split of the row dim
    return jnp.transpose(out, (0, 3, 1, 2))      # back to NCHW


# ----------------------------------------------------------------------------
# Plain-JAX reference (mirrors the PyTorch forward, eval-mode BN, f32)
# ----------------------------------------------------------------------------
def bottleneck_reference(x, params, stride):
    def conv(x, w, s=1, p=0):
        return jax.lax.conv_general_dilated(
            x, w, (s, s), [(p, p), (p, p)],
            dimension_numbers=("NCHW", "OIHW", "NCHW"),
            precision=jax.lax.Precision.HIGHEST)

    def bn(x, prm):
        sc, bi = _fold_bn(*prm)
        return x * sc[None, :, None, None] + bi[None, :, None, None]

    out = jax.nn.relu(bn(conv(x, params["w1"]), params["bn1"]))
    out = jax.nn.relu(bn(conv(out, params["w2"], stride, 1), params["bn2"]))
    out = bn(conv(out, params["w3"]), params["bn3"])
    cin = x.shape[1]
    cout = params["w3"].shape[0]
    if stride != 1 or cin != cout:
        sc = bn(conv(x, params["wsc"], stride), params["bnsc"])
    else:
        sc = x
    return jax.nn.relu(out + sc)


# ----------------------------------------------------------------------------
# Deterministic parameter construction (shapes from the module __init__)
# ----------------------------------------------------------------------------
def _q(a):
    # Round to bf16-representable values so the bf16 MXU operand casts are
    # lossless w.r.t. the f32 reference inputs.
    return a.astype(jnp.bfloat16).astype(jnp.float32)


def make_params(key, in_planes, planes):
    cout = EXPANSION * planes
    ks = jax.random.split(key, 8)

    def bn_params(k, c):
        k0, k1, k2, k3 = jax.random.split(k, 4)
        gamma = _q(1.0 + 0.1 * jax.random.normal(k0, (c,), jnp.float32))
        beta = _q(0.1 * jax.random.normal(k1, (c,), jnp.float32))
        mean = _q(0.1 * jax.random.normal(k2, (c,), jnp.float32))
        var = _q(jax.random.uniform(k3, (c,), jnp.float32, 0.5, 1.5))
        return (gamma, beta, mean, var)

    return {
        "w1": _q(0.3 * jax.random.normal(ks[0], (planes, in_planes, 1, 1), jnp.float32)),
        "bn1": bn_params(ks[1], planes),
        "w2": _q(0.1 * jax.random.normal(ks[2], (planes, planes, 3, 3), jnp.float32)),
        "bn2": bn_params(ks[3], planes),
        "w3": _q(0.3 * jax.random.normal(ks[4], (cout, planes, 1, 1), jnp.float32)),
        "bn3": bn_params(ks[5], cout),
        "wsc": _q(0.3 * jax.random.normal(ks[6], (cout, in_planes, 1, 1), jnp.float32)),
        "bnsc": bn_params(ks[7], cout),
    }


# ----------------------------------------------------------------------------
if __name__ == "__main__":
    key = jax.random.PRNGKey(0)
    k_x, k_x2, k_p, k_p2 = jax.random.split(key, 4)

    N, H, W = 2, 16, 16

    # Config A: projection shortcut (cin != 4*planes), strides 1 and 2.
    in_planes, planes = 4, 4
    x = _q(jax.random.normal(k_x, (N, in_planes, H, W), jnp.float32))
    params = make_params(k_p, in_planes, planes)

    # Config B: identity shortcut (cin == 4*planes, stride 1).
    x_id = _q(jax.random.normal(k_x2, (N, 16, H, W), jnp.float32))
    params_id = make_params(k_p2, 16, 4)

    cases = [(x, params, 1), (x, params, 2), (x_id, params_id, 1)]
    for xi, pi, stride in cases:
        out = jax.block_until_ready(bottleneck_forward(xi, pi, stride))
        ref = jax.block_until_ready(bottleneck_reference(xi, pi, stride))
        assert out.shape == ref.shape, (out.shape, ref.shape)
        max_err = float(jnp.max(jnp.abs(out - ref)))
        # Tolerance covers bf16 rounding of the MXU matmul operands
        # (accumulation is f32) against the pure-f32 reference.
        assert jnp.allclose(out, ref, atol=4e-2, rtol=4e-2), (
            f"mismatch (stride={stride}, cin={xi.shape[1]}): "
            f"max abs diff {max_err}")

    print("KERNEL_OK")
</pallas_src>

<mosaic_0001>
module attributes {stable_mosaic.version = 11 : i64} {
  func.func @_bottleneck_kernel(%arg0: i32, %arg1: memref<1x256x4xbf16, #tpu.memory_space<vmem>>, %arg2: memref<4x4xbf16, #tpu.memory_space<vmem>>, %arg3: memref<1x4xf32, #tpu.memory_space<vmem>>, %arg4: memref<1x4xf32, #tpu.memory_space<vmem>>, %arg5: memref<9x4x4xbf16, #tpu.memory_space<vmem>>, %arg6: memref<1x4xf32, #tpu.memory_space<vmem>>, %arg7: memref<1x4xf32, #tpu.memory_space<vmem>>, %arg8: memref<4x16xbf16, #tpu.memory_space<vmem>>, %arg9: memref<1x16xf32, #tpu.memory_space<vmem>>, %arg10: memref<1x16xf32, #tpu.memory_space<vmem>>, %arg11: memref<4x16xbf16, #tpu.memory_space<vmem>>, %arg12: memref<1x16xf32, #tpu.memory_space<vmem>>, %arg13: memref<1x16xf32, #tpu.memory_space<vmem>>, %arg14: memref<1x256x16xf32, #tpu.memory_space<vmem>>, %arg15: memref<1x18x18x4xf32, #tpu.memory_space<vmem>>) attributes {dimension_semantics = [#tpu.dimension_semantics<parallel>], iteration_bounds = array<i64: 2>, scalar_prefetch = 0 : i64, scratch_operands = 1 : i64, tpu.core_type = #tpu.core_type<tc>, window_params = [{transform_indices = @transform_0, window_bounds = array<i64: 1, 256, 4>}, {pipeline_mode = #tpu.pipeline_mode<synchronous>, transform_indices = @transform_1, window_bounds = array<i64: 4, 4>}, {pipeline_mode = #tpu.pipeline_mode<synchronous>, transform_indices = @transform_2, window_bounds = array<i64: 1, 4>}, {pipeline_mode = #tpu.pipeline_mode<synchronous>, transform_indices = @transform_3, window_bounds = array<i64: 1, 4>}, {pipeline_mode = #tpu.pipeline_mode<synchronous>, transform_indices = @transform_4, window_bounds = array<i64: 9, 4, 4>}, {pipeline_mode = #tpu.pipeline_mode<synchronous>, transform_indices = @transform_5, window_bounds = array<i64: 1, 4>}, {pipeline_mode = #tpu.pipeline_mode<synchronous>, transform_indices = @transform_6, window_bounds = array<i64: 1, 4>}, {pipeline_mode = #tpu.pipeline_mode<synchronous>, transform_indices = @transform_7, window_bounds = array<i64: 4, 16>}, {pipeline_mode = #tpu.pipeline_mode<synchronous>, transform_indices = @transform_8, window_bounds = array<i64: 1, 16>}, {pipeline_mode = #tpu.pipeline_mode<synchronous>, transform_indices = @transform_9, window_bounds = array<i64: 1, 16>}, {pipeline_mode = #tpu.pipeline_mode<synchronous>, transform_indices = @transform_10, window_bounds = array<i64: 4, 16>}, {pipeline_mode = #tpu.pipeline_mode<synchronous>, transform_indices = @transform_11, window_bounds = array<i64: 1, 16>}, {pipeline_mode = #tpu.pipeline_mode<synchronous>, transform_indices = @transform_12, window_bounds = array<i64: 1, 16>}, {transform_indices = @transform_13, window_bounds = array<i64: 1, 256, 16>}]} {
    %cst = arith.constant 0.000000e+00 : f32
    %0 = vector.broadcast %cst : f32 to vector<1x18x18x4xf32>
    %c0 = arith.constant 0 : index
    %c0_0 = arith.constant 0 : index
    %c0_1 = arith.constant 0 : index
    %c0_2 = arith.constant 0 : index
    %1 = vector.load %arg15[%c0, %c0_0, %c0_1, %c0_2] : memref<1x18x18x4xf32, #tpu.memory_space<vmem>>, vector<1x18x18x4xf32>
    tpu.vector_store %arg15[%c0, %c0_0, %c0_1, %c0_2], %0 {strides = array<i32>} : memref<1x18x18x4xf32, #tpu.memory_space<vmem>>, vector<1x18x18x4xf32>,
    %c0_3 = arith.constant 0 : index
    %c0_4 = arith.constant 0 : index
    %c0_5 = arith.constant 0 : index
    %2 = vector.load %arg1[%c0_3, %c0_4, %c0_5] : memref<1x256x4xbf16, #tpu.memory_space<vmem>>, vector<1x256x4xbf16>
    %3 = vector.shape_cast %2 : vector<1x256x4xbf16> to vector<256x4xbf16>
    %c0_6 = arith.constant 0 : index
    %c0_7 = arith.constant 0 : index
    %4 = vector.load %arg2[%c0_6, %c0_7] : memref<4x4xbf16, #tpu.memory_space<vmem>>, vector<4x4xbf16>
    %cst_8 = arith.constant dense<0.000000e+00> : vector<256x4xf32>
    %5 = tpu.matmul %3, %4, %cst_8 {dimension_numbers = #tpu.dot_dimension_numbers<[1], [0], [0], [1], [0, 0, 1, 1], [], []>} : vector<256x4xbf16>, vector<4x4xbf16>, vector<256x4xf32> -> vector<256x4xf32>
    %c0_9 = arith.constant 0 : index
    %c0_10 = arith.constant 0 : index
    %6 = vector.load %arg3[%c0_9, %c0_10] : memref<1x4xf32, #tpu.memory_space<vmem>>, vector<1x4xf32>
    %7 = vector.broadcast %6 : vector<1x4xf32> to vector<256x4xf32>
    %8 = arith.mulf %5, %7 : vector<256x4xf32>
    %c0_11 = arith.constant 0 : index
    %c0_12 = arith.constant 0 : index
    %9 = vector.load %arg4[%c0_11, %c0_12] : memref<1x4xf32, #tpu.memory_space<vmem>>, vector<1x4xf32>
    %10 = vector.broadcast %9 : vector<1x4xf32> to vector<256x4xf32>
    %11 = arith.addf %8, %10 : vector<256x4xf32>
    %cst_13 = arith.constant 0.000000e+00 : f32
    %12 = vector.broadcast %cst_13 : f32 to vector<256x4xf32>
    %13 = arith.maximumf %11, %12 : vector<256x4xf32>
    %14 = vector.shape_cast %13 : vector<256x4xf32> to vector<1x16x16x4xf32>
    %15 = vector.shape_cast %14 : vector<1x16x16x4xf32> to vector<16x16x4xf32>
    %c0_14 = arith.constant 0 : index
    %c1 = arith.constant 1 : index
    %c1_15 = arith.constant 1 : index
    %c0_16 = arith.constant 0 : index
    %16 = vector.load %arg15[%c0_14, %c1, %c1_15, %c0_16] : memref<1x18x18x4xf32, #tpu.memory_space<vmem>>, vector<1x16x16x4xf32>
    %17 = vector.shape_cast %16 : vector<1x16x16x4xf32> to vector<16x16x4xf32>
    %18 = vector.shape_cast %15 : vector<16x16x4xf32> to vector<1x16x16x4xf32>
    tpu.vector_store %arg15[%c0_14, %c1, %c1_15, %c0_16], %18 {strides = array<i32>} : memref<1x18x18x4xf32, #tpu.memory_space<vmem>>, vector<1x16x16x4xf32>,
    %cst_17 = arith.constant 0.000000e+00 : f32
    %19 = vector.broadcast %cst_17 : f32 to vector<256x4xf32>
    %c0_18 = arith.constant 0 : index
    %c0_19 = arith.constant 0 : index
    %c0_20 = arith.constant 0 : index
    %c0_21 = arith.constant 0 : index
    %20 = vector.load %arg15[%c0_18, %c0_19, %c0_20, %c0_21] : memref<1x18x18x4xf32, #tpu.memory_space<vmem>>, vector<1x16x16x4xf32>
    %21 = vector.shape_cast %20 : vector<1x16x16x4xf32> to vector<16x16x4xf32>
    %22 = vector.shape_cast %21 : vector<16x16x4xf32> to vector<256x4xf32>
    %23 = arith.truncf %22 : vector<256x4xf32> to vector<256x4xbf16>
    %c0_22 = arith.constant 0 : index
    %c0_23 = arith.constant 0 : index
    %c0_24 = arith.constant 0 : index
    %24 = vector.load %arg5[%c0_22, %c0_23, %c0_24] : memref<9x4x4xbf16, #tpu.memory_space<vmem>>, vector<1x4x4xbf16>
    %25 = vector.shape_cast %24 : vector<1x4x4xbf16> to vector<4x4xbf16>
    %cst_25 = arith.constant dense<0.000000e+00> : vector<256x4xf32>
    %26 = tpu.matmul %23, %25, %cst_25 {dimension_numbers = #tpu.dot_dimension_numbers<[1], [0], [0], [1], [0, 0, 1, 1], [], []>} : vector<256x4xbf16>, vector<4x4xbf16>, vector<256x4xf32> -> vector<256x4xf32>
    %27 = arith.addf %19, %26 : vector<256x4xf32>
    %c0_26 = arith.constant 0 : index
    %c0_27 = arith.constant 0 : index
    %c1_28 = arith.constant 1 : index
    %c0_29 = arith.constant 0 : index
    %28 = vector.load %arg15[%c0_26, %c0_27, %c1_28, %c0_29] : memref<1x18x18x4xf32, #tpu.memory_space<vmem>>, vector<1x16x16x4xf32>
    %29 = vector.shape_cast %28 : vector<1x16x16x4xf32> to vector<16x16x4xf32>
    %30 = vector.shape_cast %29 : vector<16x16x4xf32> to vector<256x4xf32>
    %31 = arith.truncf %30 : vector<256x4xf32> to vector<256x4xbf16>
    %c1_30 = arith.constant 1 : index
    %c0_31 = arith.constant 0 : index
    %c0_32 = arith.constant 0 : index
    %32 = vector.load %arg5[%c1_30, %c0_31, %c0_32] : memref<9x4x4xbf16, #tpu.memory_space<vmem>>, vector<1x4x4xbf16>
    %33 = vector.shape_cast %32 : vector<1x4x4xbf16> to vector<4x4xbf16>
    %cst_33 = arith.constant dense<0.000000e+00> : vector<256x4xf32>
    %34 = tpu.matmul %31, %33, %cst_33 {dimension_numbers = #tpu.dot_dimension_numbers<[1], [0], [0], [1], [0, 0, 1, 1], [], []>} : vector<256x4xbf16>, vector<4x4xbf16>, vector<256x4xf32> -> vector<256x4xf32>
    %35 = arith.addf %27, %34 : vector<256x4xf32>
    %c0_34 = arith.constant 0 : index
    %c0_35 = arith.constant 0 : index
    %c2 = arith.constant 2 : index
    %c0_36 = arith.constant 0 : index
    %36 = vector.load %arg15[%c0_34, %c0_35, %c2, %c0_36] : memref<1x18x18x4xf32, #tpu.memory_space<vmem>>, vector<1x16x16x4xf32>
    %37 = vector.shape_cast %36 : vector<1x16x16x4xf32> to vector<16x16x4xf32>
    %38 = vector.shape_cast %37 : vector<16x16x4xf32> to vector<256x4xf32>
    %39 = arith.truncf %38 : vector<256x4xf32> to vector<256x4xbf16>
    %c2_37 = arith.constant 2 : index
    %c0_38 = arith.constant 0 : index
    %c0_39 = arith.constant 0 : index
    %40 = vector.load %arg5[%c2_37, %c0_38, %c0_39] : memref<9x4x4xbf16, #tpu.memory_space<vmem>>, vector<1x4x4xbf16>
    %41 = vector.shape_cast %40 : vector<1x4x4xbf16> to vector<4x4xbf16>
    %cst_40 = arith.constant dense<0.000000e+00> : vector<256x4xf32>
    %42 = tpu.matmul %39, %41, %cst_40 {dimension_numbers = #tpu.dot_dimension_numbers<[1], [0], [0], [1], [0, 0, 1, 1], [], []>} : vector<256x4xbf16>, vector<4x4xbf16>, vector<256x4xf32> -> vector<256x4xf32>
    %43 = arith.addf %35, %42 : vector<256x4xf32>
    %c0_41 = arith.constant 0 : index
    %c1_42 = arith.constant 1 : index
    %c0_43 = arith.constant 0 : index
    %c0_44 = arith.constant 0 : index
    %44 = vector.load %arg15[%c0_41, %c1_42, %c0_43, %c0_44] : memref<1x18x18x4xf32, #tpu.memory_space<vmem>>, vector<1x16x16x4xf32>
    %45 = vector.shape_cast %44 : vector<1x16x16x4xf32> to vector<16x16x4xf32>
    %46 = vector.shape_cast %45 : vector<16x16x4xf32> to vector<256x4xf32>
    %47 = arith.truncf %46 : vector<256x4xf32> to vector<256x4xbf16>
    %c3 = arith.constant 3 : index
    %c0_45 = arith.constant 0 : index
    %c0_46 = arith.constant 0 : index
    %48 = vector.load %arg5[%c3, %c0_45, %c0_46] : memref<9x4x4xbf16, #tpu.memory_space<vmem>>, vector<1x4x4xbf16>
    %49 = vector.shape_cast %48 : vector<1x4x4xbf16> to vector<4x4xbf16>
    %cst_47 = arith.constant dense<0.000000e+00> : vector<256x4xf32>
    %50 = tpu.matmul %47, %49, %cst_47 {dimension_numbers = #tpu.dot_dimension_numbers<[1], [0], [0], [1], [0, 0, 1, 1], [], []>} : vector<256x4xbf16>, vector<4x4xbf16>, vector<256x4xf32> -> vector<256x4xf32>
    %51 = arith.addf %43, %50 : vector<256x4xf32>
    %c0_48 = arith.constant 0 : index
    %c1_49 = arith.constant 1 : index
    %c1_50 = arith.constant 1 : index
    %c0_51 = arith.constant 0 : index
    %52 = vector.load %arg15[%c0_48, %c1_49, %c1_50, %c0_51] : memref<1x18x18x4xf32, #tpu.memory_space<vmem>>, vector<1x16x16x4xf32>
    %53 = vector.shape_cast %52 : vector<1x16x16x4xf32> to vector<16x16x4xf32>
    %54 = vector.shape_cast %53 : vector<16x16x4xf32> to vector<256x4xf32>
    %55 = arith.truncf %54 : vector<256x4xf32> to vector<256x4xbf16>
    %c4 = arith.constant 4 : index
    %c0_52 = arith.constant 0 : index
    %c0_53 = arith.constant 0 : index
    %56 = vector.load %arg5[%c4, %c0_52, %c0_53] : memref<9x4x4xbf16, #tpu.memory_space<vmem>>, vector<1x4x4xbf16>
    %57 = vector.shape_cast %56 : vector<1x4x4xbf16> to vector<4x4xbf16>
    %cst_54 = arith.constant dense<0.000000e+00> : vector<256x4xf32>
    %58 = tpu.matmul %55, %57, %cst_54 {dimension_numbers = #tpu.dot_dimension_numbers<[1], [0], [0], [1], [0, 0, 1, 1], [], []>} : vector<256x4xbf16>, vector<4x4xbf16>, vector<256x4xf32> -> vector<256x4xf32>
    %59 = arith.addf %51, %58 : vector<256x4xf32>
    %c0_55 = arith.constant 0 : index
    %c1_56 = arith.constant 1 : index
    %c2_57 = arith.constant 2 : index
    %c0_58 = arith.constant 0 : index
    %60 = vector.load %arg15[%c0_55, %c1_56, %c2_57, %c0_58] : memref<1x18x18x4xf32, #tpu.memory_space<vmem>>, vector<1x16x16x4xf32>
    %61 = vector.shape_cast %60 : vector<1x16x16x4xf32> to vector<16x16x4xf32>
    %62 = vector.shape_cast %61 : vector<16x16x4xf32> to vector<256x4xf32>
    %63 = arith.truncf %62 : vector<256x4xf32> to vector<256x4xbf16>
    %c5 = arith.constant 5 : index
    %c0_59 = arith.constant 0 : index
    %c0_60 = arith.constant 0 : index
    %64 = vector.load %arg5[%c5, %c0_59, %c0_60] : memref<9x4x4xbf16, #tpu.memory_space<vmem>>, vector<1x4x4xbf16>
    %65 = vector.shape_cast %64 : vector<1x4x4xbf16> to vector<4x4xbf16>
    %cst_61 = arith.constant dense<0.000000e+00> : vector<256x4xf32>
    %66 = tpu.matmul %63, %65, %cst_61 {dimension_numbers = #tpu.dot_dimension_numbers<[1], [0], [0], [1], [0, 0, 1, 1], [], []>} : vector<256x4xbf16>, vector<4x4xbf16>, vector<256x4xf32> -> vector<256x4xf32>
    %67 = arith.addf %59, %66 : vector<256x4xf32>
    %c0_62 = arith.constant 0 : index
    %c2_63 = arith.constant 2 : index
    %c0_64 = arith.constant 0 : index
    %c0_65 = arith.constant 0 : index
    %68 = vector.load %arg15[%c0_62, %c2_63, %c0_64, %c0_65] : memref<1x18x18x4xf32, #tpu.memory_space<vmem>>, vector<1x16x16x4xf32>
    %69 = vector.shape_cast %68 : vector<1x16x16x4xf32> to vector<16x16x4xf32>
    %70 = vector.shape_cast %69 : vector<16x16x4xf32> to vector<256x4xf32>
    %71 = arith.truncf %70 : vector<256x4xf32> to vector<256x4xbf16>
    %c6 = arith.constant 6 : index
    %c0_66 = arith.constant 0 : index
    %c0_67 = arith.constant 0 : index
    %72 = vector.load %arg5[%c6, %c0_66, %c0_67] : memref<9x4x4xbf16, #tpu.memory_space<vmem>>, vector<1x4x4xbf16>
    %73 = vector.shape_cast %72 : vector<1x4x4xbf16> to vector<4x4xbf16>
    %cst_68 = arith.constant dense<0.000000e+00> : vector<256x4xf32>
    %74 = tpu.matmul %71, %73, %cst_68 {dimension_numbers = #tpu.dot_dimension_numbers<[1], [0], [0], [1], [0, 0, 1, 1], [], []>} : vector<256x4xbf16>, vector<4x4xbf16>, vector<256x4xf32> -> vector<256x4xf32>
    %75 = arith.addf %67, %74 : vector<256x4xf32>
    %c0_69 = arith.constant 0 : index
    %c2_70 = arith.constant 2 : index
    %c1_71 = arith.constant 1 : index
    %c0_72 = arith.constant 0 : index
    %76 = vector.load %arg15[%c0_69, %c2_70, %c1_71, %c0_72] : memref<1x18x18x4xf32, #tpu.memory_space<vmem>>, vector<1x16x16x4xf32>
    %77 = vector.shape_cast %76 : vector<1x16x16x4xf32> to vector<16x16x4xf32>
    %78 = vector.shape_cast %77 : vector<16x16x4xf32> to vector<256x4xf32>
    %79 = arith.truncf %78 : vector<256x4xf32> to vector<256x4xbf16>
    %c7 = arith.constant 7 : index
    %c0_73 = arith.constant 0 : index
    %c0_74 = arith.constant 0 : index
    %80 = vector.load %arg5[%c7, %c0_73, %c0_74] : memref<9x4x4xbf16, #tpu.memory_space<vmem>>, vector<1x4x4xbf16>
    %81 = vector.shape_cast %80 : vector<1x4x4xbf16> to vector<4x4xbf16>
    %cst_75 = arith.constant dense<0.000000e+00> : vector<256x4xf32>
    %82 = tpu.matmul %79, %81, %cst_75 {dimension_numbers = #tpu.dot_dimension_numbers<[1], [0], [0], [1], [0, 0, 1, 1], [], []>} : vector<256x4xbf16>, vector<4x4xbf16>, vector<256x4xf32> -> vector<256x4xf32>
    %83 = arith.addf %75, %82 : vector<256x4xf32>
    %c0_76 = arith.constant 0 : index
    %c2_77 = arith.constant 2 : index
    %c2_78 = arith.constant 2 : index
    %c0_79 = arith.constant 0 : index
    %84 = vector.load %arg15[%c0_76, %c2_77, %c2_78, %c0_79] : memref<1x18x18x4xf32, #tpu.memory_space<vmem>>, vector<1x16x16x4xf32>
    %85 = vector.shape_cast %84 : vector<1x16x16x4xf32> to vector<16x16x4xf32>
    %86 = vector.shape_cast %85 : vector<16x16x4xf32> to vector<256x4xf32>
    %87 = arith.truncf %86 : vector<256x4xf32> to vector<256x4xbf16>
    %c8 = arith.constant 8 : index
    %c0_80 = arith.constant 0 : index
    %c0_81 = arith.constant 0 : index
    %88 = vector.load %arg5[%c8, %c0_80, %c0_81] : memref<9x4x4xbf16, #tpu.memory_space<vmem>>, vector<1x4x4xbf16>
    %89 = vector.shape_cast %88 : vector<1x4x4xbf16> to vector<4x4xbf16>
    %cst_82 = arith.constant dense<0.000000e+00> : vector<256x4xf32>
    %90 = tpu.matmul %87, %89, %cst_82 {dimension_numbers = #tpu.dot_dimension_numbers<[1], [0], [0], [1], [0, 0, 1, 1], [], []>} : vector<256x4xbf16>, vector<4x4xbf16>, vector<256x4xf32> -> vector<256x4xf32>
    %91 = arith.addf %83, %90 : vector<256x4xf32>
    %c0_83 = arith.constant 0 : index
    %c0_84 = arith.constant 0 : index
    %92 = vector.load %arg6[%c0_83, %c0_84] : memref<1x4xf32, #tpu.memory_space<vmem>>, vector<1x4xf32>
    %93 = vector.broadcast %92 : vector<1x4xf32> to vector<256x4xf32>
    %94 = arith.mulf %91, %93 : vector<256x4xf32>
    %c0_85 = arith.constant 0 : index
    %c0_86 = arith.constant 0 : index
    %95 = vector.load %arg7[%c0_85, %c0_86] : memref<1x4xf32, #tpu.memory_space<vmem>>, vector<1x4xf32>
    %96 = vector.broadcast %95 : vector<1x4xf32> to vector<256x4xf32>
    %97 = arith.addf %94, %96 : vector<256x4xf32>
    %cst_87 = arith.constant 0.000000e+00 : f32
    %98 = vector.broadcast %cst_87 : f32 to vector<256x4xf32>
    %99 = arith.maximumf %97, %98 : vector<256x4xf32>
    %100 = arith.truncf %99 : vector<256x4xf32> to vector<256x4xbf16>
    %c0_88 = arith.constant 0 : index
    %c0_89 = arith.constant 0 : index
    %101 = vector.load %arg8[%c0_88, %c0_89] : memref<4x16xbf16, #tpu.memory_space<vmem>>, vector<4x16xbf16>
    %cst_90 = arith.constant dense<0.000000e+00> : vector<256x16xf32>
    %102 = tpu.matmul %100, %101, %cst_90 {dimension_numbers = #tpu.dot_dimension_numbers<[1], [0], [0], [1], [0, 0, 1, 1], [], []>} : vector<256x4xbf16>, vector<4x16xbf16>, vector<256x16xf32> -> vector<256x16xf32>
    %c0_91 = arith.constant 0 : index
    %c0_92 = arith.constant 0 : index
    %103 = vector.load %arg9[%c0_91, %c0_92] : memref<1x16xf32, #tpu.memory_space<vmem>>, vector<1x16xf32>
    %104 = vector.broadcast %103 : vector<1x16xf32> to vector<256x16xf32>
    %105 = arith.mulf %102, %104 : vector<256x16xf32>
    %c0_93 = arith.constant 0 : index
    %c0_94 = arith.constant 0 : index
    %106 = vector.load %arg10[%c0_93, %c0_94] : memref<1x16xf32, #tpu.memory_space<vmem>>, vector<1x16xf32>
    %107 = vector.broadcast %106 : vector<1x16xf32> to vector<256x16xf32>
    %108 = arith.addf %105, %107 : vector<256x16xf32>
    %c0_95 = arith.constant 0 : index
    %c0_96 = arith.constant 0 : index
    %109 = vector.load %arg11[%c0_95, %c0_96] : memref<4x16xbf16, #tpu.memory_space<vmem>>, vector<4x16xbf16>
    %cst_97 = arith.constant dense<0.000000e+00> : vector<256x16xf32>
    %110 = tpu.matmul %3, %109, %cst_97 {dimension_numbers = #tpu.dot_dimension_numbers<[1], [0], [0], [1], [0, 0, 1, 1], [], []>} : vector<256x4xbf16>, vector<4x16xbf16>, vector<256x16xf32> -> vector<256x16xf32>
    %c0_98 = arith.constant 0 : index
    %c0_99 = arith.constant 0 : index
    %111 = vector.load %arg12[%c0_98, %c0_99] : memref<1x16xf32, #tpu.memory_space<vmem>>, vector<1x16xf32>
    %112 = vector.broadcast %111 : vector<1x16xf32> to vector<256x16xf32>
    %113 = arith.mulf %110, %112 : vector<256x16xf32>
    %c0_100 = arith.constant 0 : index
    %c0_101 = arith.constant 0 : index
    %114 = vector.load %arg13[%c0_100, %c0_101] : memref<1x16xf32, #tpu.memory_space<vmem>>, vector<1x16xf32>
    %115 = vector.broadcast %114 : vector<1x16xf32> to vector<256x16xf32>
    %116 = arith.addf %113, %115 : vector<256x16xf32>
    %117 = arith.addf %108, %116 : vector<256x16xf32>
    %cst_102 = arith.constant 0.000000e+00 : f32
    %118 = vector.broadcast %cst_102 : f32 to vector<256x16xf32>
    %119 = arith.maximumf %117, %118 : vector<256x16xf32>
    %c0_103 = arith.constant 0 : index
    %c0_104 = arith.constant 0 : index
    %c0_105 = arith.constant 0 : index
    %120 = vector.load %arg14[%c0_103, %c0_104, %c0_105] : memref<1x256x16xf32, #tpu.memory_space<vmem>>, vector<1x256x16xf32>
    %121 = vector.shape_cast %120 : vector<1x256x16xf32> to vector<256x16xf32>
    %122 = vector.shape_cast %119 : vector<256x16xf32> to vector<1x256x16xf32>
    tpu.vector_store %arg14[%c0_103, %c0_104, %c0_105], %122 {strides = array<i32>} : memref<1x256x16xf32, #tpu.memory_space<vmem>>, vector<1x256x16xf32>,
    return
  }
  func.func @transform_0(%arg0: i32) -> (i32, i32, i32) {
    %c0_i32 = arith.constant 0 : i32
    %c0_i32_0 = arith.constant 0 : i32
    %c0_i32_1 = arith.constant 0 : i32
    return %arg0, %c0_i32, %c0_i32_0 : i32, i32, i32
  }
  func.func @transform_1(%arg0: i32) -> (i32, i32) {
    %c0_i32 = arith.constant 0 : i32
    %c0_i32_0 = arith.constant 0 : i32
    %c0_i32_1 = arith.constant 0 : i32
    return %c0_i32, %c0_i32_0 : i32, i32
  }
  func.func @transform_2(%arg0: i32) -> (i32, i32) {
    %c0_i32 = arith.constant 0 : i32
    %c0_i32_0 = arith.constant 0 : i32
    %c0_i32_1 = arith.constant 0 : i32
    return %c0_i32, %c0_i32_0 : i32, i32
  }
  func.func @transform_3(%arg0: i32) -> (i32, i32) {
    %c0_i32 = arith.constant 0 : i32
    %c0_i32_0 = arith.constant 0 : i32
    %c0_i32_1 = arith.constant 0 : i32
    return %c0_i32, %c0_i32_0 : i32, i32
  }
  func.func @transform_4(%arg0: i32) -> (i32, i32, i32) {
    %c0_i32 = arith.constant 0 : i32
    %c0_i32_0 = arith.constant 0 : i32
    %c0_i32_1 = arith.constant 0 : i32
    %c0_i32_2 = arith.constant 0 : i32
    return %c0_i32, %c0_i32_0, %c0_i32_1 : i32, i32, i32
  }
  func.func @transform_5(%arg0: i32) -> (i32, i32) {
    %c0_i32 = arith.constant 0 : i32
    %c0_i32_0 = arith.constant 0 : i32
    %c0_i32_1 = arith.constant 0 : i32
    return %c0_i32, %c0_i32_0 : i32, i32
  }
  func.func @transform_6(%arg0: i32) -> (i32, i32) {
    %c0_i32 = arith.constant 0 : i32
    %c0_i32_0 = arith.constant 0 : i32
    %c0_i32_1 = arith.constant 0 : i32
    return %c0_i32, %c0_i32_0 : i32, i32
  }
  func.func @transform_7(%arg0: i32) -> (i32, i32) {
    %c0_i32 = arith.constant 0 : i32
    %c0_i32_0 = arith.constant 0 : i32
    %c0_i32_1 = arith.constant 0 : i32
    return %c0_i32, %c0_i32_0 : i32, i32
  }
  func.func @transform_8(%arg0: i32) -> (i32, i32) {
    %c0_i32 = arith.constant 0 : i32
    %c0_i32_0 = arith.constant 0 : i32
    %c0_i32_1 = arith.constant 0 : i32
    return %c0_i32, %c0_i32_0 : i32, i32
  }
  func.func @transform_9(%arg0: i32) -> (i32, i32) {
    %c0_i32 = arith.constant 0 : i32
    %c0_i32_0 = arith.constant 0 : i32
    %c0_i32_1 = arith.constant 0 : i32
    return %c0_i32, %c0_i32_0 : i32, i32
  }
  func.func @transform_10(%arg0: i32) -> (i32, i32) {
    %c0_i32 = arith.constant 0 : i32
    %c0_i32_0 = arith.constant 0 : i32
    %c0_i32_1 = arith.constant 0 : i32
    return %c0_i32, %c0_i32_0 : i32, i32
  }
  func.func @transform_11(%arg0: i32) -> (i32, i32) {
    %c0_i32 = arith.constant 0 : i32
    %c0_i32_0 = arith.constant 0 : i32
    %c0_i32_1 = arith.constant 0 : i32
    return %c0_i32, %c0_i32_0 : i32, i32
  }
  func.func @transform_12(%arg0: i32) -> (i32, i32) {
    %c0_i32 = arith.constant 0 : i32
    %c0_i32_0 = arith.constant 0 : i32
    %c0_i32_1 = arith.constant 0 : i32
    return %c0_i32, %c0_i32_0 : i32, i32
  }
  func.func @transform_13(%arg0: i32) -> (i32, i32, i32) {
    %c0_i32 = arith.constant 0 : i32
    %c0_i32_0 = arith.constant 0 : i32
    %c0_i32_1 = arith.constant 0 : i32
    return %arg0, %c0_i32, %c0_i32_0 : i32, i32, i32
  }
}

</mosaic_0001>

<llo_original>
// kernel: tpu_custom_call.1
$region0: #{tpu_custom_call.1}
  #allocation0 [shape = 'u32[]', space=smem, size = 0x4, offset = 0x4, fixed_abs, tag = 'smem constant byte address 0x4 - core index']
  #allocation1 [shape = 'u32[144,128]{1,0:T(1,128)}', space=vmem, size = 0x12000, scoped, tag = 'internal scratch']
  #allocation2 [shape = 'f32[1,18,18,4]{3,2,1,0:T(8,128)}', space=vmem, size = 0x36000, scoped, tag = 'scratch operand']
  %s0 = inlined_call_operand.vmem [shape: bf16[2,256,4], index: 0, kind: input, shape index: {}]
  %s1 = inlined_call_operand.vmem [shape: bf16[4,4], index: 1, kind: input, shape index: {}]
  %s2 = inlined_call_operand.vmem [shape: f32[1,4], index: 2, kind: input, shape index: {}]
  %s3 = inlined_call_operand.vmem [shape: f32[1,4], index: 3, kind: input, shape index: {}]
  %s4 = inlined_call_operand.vmem [shape: bf16[9,4,4], index: 4, kind: input, shape index: {}]
  %s5 = inlined_call_operand.vmem [shape: f32[1,4], index: 5, kind: input, shape index: {}]
  %s6 = inlined_call_operand.vmem [shape: f32[1,4], index: 6, kind: input, shape index: {}]
  %s7 = inlined_call_operand.vmem [shape: bf16[4,16], index: 7, kind: input, shape index: {}]
  %s8 = inlined_call_operand.vmem [shape: f32[1,16], index: 8, kind: input, shape index: {}]
  %s9 = inlined_call_operand.vmem [shape: f32[1,16], index: 9, kind: input, shape index: {}]
  %s10 = inlined_call_operand.vmem [shape: bf16[4,16], index: 10, kind: input, shape index: {}]
  %s11 = inlined_call_operand.vmem [shape: f32[1,16], index: 11, kind: input, shape index: {}]
  %s12 = inlined_call_operand.vmem [shape: f32[1,16], index: 12, kind: input, shape index: {}]
  %s13 = inlined_call_operand.vmem [shape: f32[2,256,16], index: 13, kind: output, shape index: {}]
  %s14 = sld [smem:[#allocation0]]
  $region85: #{tpu_custom_call.1} parent=0
    _
  %s16 = ssub.s32 1, %s14
  %s17 = scalar_select 0, %s16, %s14
  loop: start=0, step=1, limit=4
  $region2: #{tpu_custom_call.1} parent=0 // loop_pre_header
    _
  $region3: #{tpu_custom_call.1} parent=0 // loop_header
    %s19 = sphi 0, %s23
    %p20 = scmp.ge.s32.totalorder %s19, 4
    %s29 = sphi 0, %s31
    %s32 = sphi 0, %s29
    %s33 = sphi 0, %s32
    %s49 = sphi 0, %s33
    %s53 = sphi 0, %s53
    %s55 = sphi 0, %s53
    %s56 = sphi 0, %s55
    %s70 = sphi 0, %s56
    %s74 = sphi 0, %s74
    %s76 = sphi 0, %s74
    %s77 = sphi 0, %s76
    %s91 = sphi 0, %s77
    %s95 = sphi 0, %s95
    %s97 = sphi 0, %s95
    %s98 = sphi 0, %s97
    %s112 = sphi 0, %s98
    %s116 = sphi 0, %s116
    %s118 = sphi 0, %s116
    %s119 = sphi 0, %s118
    %s133 = sphi 0, %s119
    %s137 = sphi 0, %s137
    %s139 = sphi 0, %s137
    %s140 = sphi 0, %s139
    %s154 = sphi 0, %s140
    %s158 = sphi 0, %s158
    %s160 = sphi 0, %s158
    %s161 = sphi 0, %s160
    %s175 = sphi 0, %s161
    %s179 = sphi 0, %s179
    %s181 = sphi 0, %s179
    %s182 = sphi 0, %s181
    %s196 = sphi 0, %s182
    %s200 = sphi 0, %s200
    %s202 = sphi 0, %s200
    %s203 = sphi 0, %s202
    %s217 = sphi 0, %s203
    %s221 = sphi 0, %s221
    %s223 = sphi 0, %s221
    %s224 = sphi 0, %s223
    %s238 = sphi 0, %s224
    %s242 = sphi 0, %s242
    %s244 = sphi 0, %s242
    %s245 = sphi 0, %s244
    %s259 = sphi 0, %s245
    %s263 = sphi 0, %s263
    %s265 = sphi 0, %s263
    %s266 = sphi 0, %s265
    %s280 = sphi 0, %s266
    %s284 = sphi 0, %s284
    %s286 = sphi 0, %s284
    %s287 = sphi 0, %s286
    %s301 = sphi 0, %s287
    %s307 = sphi 0, %s309
    %s310 = sphi 0, %s307
    %s311 = sphi 0, %s310
    %s327 = sphi 0, %s311
  $region4: #{tpu_custom_call.1} parent=0 // loop_header_branch
    %22 = sbr.rel (%p20) target = $region8
  $region5: #{tpu_custom_call.1} parent=0 // loop_body
    %s24 = ssub.s32 %s19, 1
    %s25 = ssub.s32 %s19, 2
    %s26 = sadd.s32 %s19, 1
    %s27 = ssub.s32 %s19, %s26
    %p28 = scmp.eq.s32.totalorder %s27, 0
    %s30 = sadd.s32 %s29, 1
    %s31 = scalar_select %p28, %s29, %s30
    %p34 = pneg %p28
    %p35 = scmp.eq.s32.totalorder %s19, 1
    %p36 = por %p34, %p35
    %p37 = scmp.ne.s32.totalorder %s29, %s32
    %p38 = scmp.eq.s32.totalorder %s19, 0
    %p39 = por %p37, %p38
    %p40 = scmp.ne.s32.totalorder %s29, %s32
    %p41 = scmp.eq.s32.totalorder %s24, 1
    %p42 = por %p40, %p41
    %p43 = scmp.ne.s32.totalorder %s32, %s33
    %p44 = scmp.eq.s32.totalorder %s24, 0
    %p45 = por %p43, %p44
    %p46 = scmp.ne.s32.totalorder %s32, %s33
    %p47 = scmp.eq.s32.totalorder %s25, 1
    %p48 = por %p46, %p47
    %p50 = scmp.ne.s32.totalorder %s33, %s49
    %p51 = scmp.eq.s32.totalorder %s25, 0
    %p52 = por %p50, %p51
    %s54 = sadd.s32 %s53, 1
    %p57 = scmp.eq.s32.totalorder %s19, 1
    %p58 = scmp.ne.s32.totalorder %s53, %s55
    %p59 = scmp.eq.s32.totalorder %s19, 0
    %p60 = por %p58, %p59
    %p61 = scmp.ne.s32.totalorder %s53, %s55
    %p62 = scmp.eq.s32.totalorder %s24, 1
    %p63 = por %p61, %p62
    %p64 = scmp.ne.s32.totalorder %s55, %s56
    %p65 = scmp.eq.s32.totalorder %s24, 0
    %p66 = por %p64, %p65
    %p67 = scmp.ne.s32.totalorder %s55, %s56
    %p68 = scmp.eq.s32.totalorder %s25, 1
    %p69 = por %p67, %p68
    %p71 = scmp.ne.s32.totalorder %s56, %s70
    %p72 = scmp.eq.s32.totalorder %s25, 0
    %p73 = por %p71, %p72
    %s75 = sadd.s32 %s74, 1
    %p78 = scmp.eq.s32.totalorder %s19, 1
    %p79 = scmp.ne.s32.totalorder %s74, %s76
    %p80 = scmp.eq.s32.totalorder %s19, 0
    %p81 = por %p79, %p80
    %p82 = scmp.ne.s32.totalorder %s74, %s76
    %p83 = scmp.eq.s32.totalorder %s24, 1
    %p84 = por %p82, %p83
    %p85 = scmp.ne.s32.totalorder %s76, %s77
    %p86 = scmp.eq.s32.totalorder %s24, 0
    %p87 = por %p85, %p86
    %p88 = scmp.ne.s32.totalorder %s76, %s77
    %p89 = scmp.eq.s32.totalorder %s25, 1
    %p90 = por %p88, %p89
    %p92 = scmp.ne.s32.totalorder %s77, %s91
    %p93 = scmp.eq.s32.totalorder %s25, 0
    %p94 = por %p92, %p93
    %s96 = sadd.s32 %s95, 1
    %p99 = scmp.eq.s32.totalorder %s19, 1
    %p100 = scmp.ne.s32.totalorder %s95, %s97
    %p101 = scmp.eq.s32.totalorder %s19, 0
    %p102 = por %p100, %p101
    %p103 = scmp.ne.s32.totalorder %s95, %s97
    %p104 = scmp.eq.s32.totalorder %s24, 1
    %p105 = por %p103, %p104
    %p106 = scmp.ne.s32.totalorder %s97, %s98
    %p107 = scmp.eq.s32.totalorder %s24, 0
    %p108 = por %p106, %p107
    %p109 = scmp.ne.s32.totalorder %s97, %s98
    %p110 = scmp.eq.s32.totalorder %s25, 1
    %p111 = por %p109, %p110
    %p113 = scmp.ne.s32.totalorder %s98, %s112
    %p114 = scmp.eq.s32.totalorder %s25, 0
    %p115 = por %p113, %p114
    %s117 = sadd.s32 %s116, 1
    %p120 = scmp.eq.s32.totalorder %s19, 1
    %p121 = scmp.ne.s32.totalorder %s116, %s118
    %p122 = scmp.eq.s32.totalorder %s19, 0
    %p123 = por %p121, %p122
    %p124 = scmp.ne.s32.totalorder %s116, %s118
    %p125 = scmp.eq.s32.totalorder %s24, 1
    %p126 = por %p124, %p125
    %p127 = scmp.ne.s32.totalorder %s118, %s119
    %p128 = scmp.eq.s32.totalorder %s24, 0
    %p129 = por %p127, %p128
    %p130 = scmp.ne.s32.totalorder %s118, %s119
    %p131 = scmp.eq.s32.totalorder %s25, 1
    %p132 = por %p130, %p131
    %p134 = scmp.ne.s32.totalorder %s119, %s133
    %p135 = scmp.eq.s32.totalorder %s25, 0
    %p136 = por %p134, %p135
    %s138 = sadd.s32 %s137, 1
    %p141 = scmp.eq.s32.totalorder %s19, 1
    %p142 = scmp.ne.s32.totalorder %s137, %s139
    %p143 = scmp.eq.s32.totalorder %s19, 0
    %p144 = por %p142, %p143
    %p145 = scmp.ne.s32.totalorder %s137, %s139
    %p146 = scmp.eq.s32.totalorder %s24, 1
    %p147 = por %p145, %p146
    %p148 = scmp.ne.s32.totalorder %s139, %s140
    %p149 = scmp.eq.s32.totalorder %s24, 0
    %p150 = por %p148, %p149
    %p151 = scmp.ne.s32.totalorder %s139, %s140
    %p152 = scmp.eq.s32.totalorder %s25, 1
    %p153 = por %p151, %p152
    %p155 = scmp.ne.s32.totalorder %s140, %s154
    %p156 = scmp.eq.s32.totalorder %s25, 0
    %p157 = por %p155, %p156
    %s159 = sadd.s32 %s158, 1
    %p162 = scmp.eq.s32.totalorder %s19, 1
    %p163 = scmp.ne.s32.totalorder %s158, %s160
    %p164 = scmp.eq.s32.totalorder %s19, 0
    %p165 = por %p163, %p164
    %p166 = scmp.ne.s32.totalorder %s158, %s160
    %p167 = scmp.eq.s32.totalorder %s24, 1
    %p168 = por %p166, %p167
    %p169 = scmp.ne.s32.totalorder %s160, %s161
    %p170 = scmp.eq.s32.totalorder %s24, 0
    %p171 = por %p169, %p170
    %p172 = scmp.ne.s32.totalorder %s160, %s161
    %p173 = scmp.eq.s32.totalorder %s25, 1
    %p174 = por %p172, %p173
    %p176 = scmp.ne.s32.totalorder %s161, %s175
    %p177 = scmp.eq.s32.totalorder %s25, 0
    %p178 = por %p176, %p177
    %s180 = sadd.s32 %s179, 1
    %p183 = scmp.eq.s32.totalorder %s19, 1
    %p184 = scmp.ne.s32.totalorder %s179, %s181
    %p185 = scmp.eq.s32.totalorder %s19, 0
    %p186 = por %p184, %p185
    %p187 = scmp.ne.s32.totalorder %s179, %s181
    %p188 = scmp.eq.s32.totalorder %s24, 1
    %p189 = por %p187, %p188
    %p190 = scmp.ne.s32.totalorder %s181, %s182
    %p191 = scmp.eq.s32.totalorder %s24, 0
    %p192 = por %p190, %p191
    %p193 = scmp.ne.s32.totalorder %s181, %s182
    %p194 = scmp.eq.s32.totalorder %s25, 1
    %p195 = por %p193, %p194
    %p197 = scmp.ne.s32.totalorder %s182, %s196
    %p198 = scmp.eq.s32.totalorder %s25, 0
    %p199 = por %p197, %p198
    %s201 = sadd.s32 %s200, 1
    %p204 = scmp.eq.s32.totalorder %s19, 1
    %p205 = scmp.ne.s32.totalorder %s200, %s202
    %p206 = scmp.eq.s32.totalorder %s19, 0
    %p207 = por %p205, %p206
    %p208 = scmp.ne.s32.totalorder %s200, %s202
    %p209 = scmp.eq.s32.totalorder %s24, 1
    %p210 = por %p208, %p209
    %p211 = scmp.ne.s32.totalorder %s202, %s203
    %p212 = scmp.eq.s32.totalorder %s24, 0
    %p213 = por %p211, %p212
    %p214 = scmp.ne.s32.totalorder %s202, %s203
    %p215 = scmp.eq.s32.totalorder %s25, 1
    %p216 = por %p214, %p215
    %p218 = scmp.ne.s32.totalorder %s203, %s217
    %p219 = scmp.eq.s32.totalorder %s25, 0
    %p220 = por %p218, %p219
    %s222 = sadd.s32 %s221, 1
    %p225 = scmp.eq.s32.totalorder %s19, 1
    %p226 = scmp.ne.s32.totalorder %s221, %s223
    %p227 = scmp.eq.s32.totalorder %s19, 0
    %p228 = por %p226, %p227
    %p229 = scmp.ne.s32.totalorder %s221, %s223
    %p230 = scmp.eq.s32.totalorder %s24, 1
    %p231 = por %p229, %p230
    %p232 = scmp.ne.s32.totalorder %s223, %s224
    %p233 = scmp.eq.s32.totalorder %s24, 0
    %p234 = por %p232, %p233
    %p235 = scmp.ne.s32.totalorder %s223, %s224
    %p236 = scmp.eq.s32.totalorder %s25, 1
    %p237 = por %p235, %p236
    %p239 = scmp.ne.s32.totalorder %s224, %s238
    %p240 = scmp.eq.s32.totalorder %s25, 0
    %p241 = por %p239, %p240
    %s243 = sadd.s32 %s242, 1
    %p246 = scmp.eq.s32.totalorder %s19, 1
    %p247 = scmp.ne.s32.totalorder %s242, %s244
    %p248 = scmp.eq.s32.totalorder %s19, 0
    %p249 = por %p247, %p248
    %p250 = scmp.ne.s32.totalorder %s242, %s244
    %p251 = scmp.eq.s32.totalorder %s24, 1
    %p252 = por %p250, %p251
    %p253 = scmp.ne.s32.totalorder %s244, %s245
    %p254 = scmp.eq.s32.totalorder %s24, 0
    %p255 = por %p253, %p254
    %p256 = scmp.ne.s32.totalorder %s244, %s245
    %p257 = scmp.eq.s32.totalorder %s25, 1
    %p258 = por %p256, %p257
    %p260 = scmp.ne.s32.totalorder %s245, %s259
    %p261 = scmp.eq.s32.totalorder %s25, 0
    %p262 = por %p260, %p261
    %s264 = sadd.s32 %s263, 1
    %p267 = scmp.eq.s32.totalorder %s19, 1
    %p268 = scmp.ne.s32.totalorder %s263, %s265
    %p269 = scmp.eq.s32.totalorder %s19, 0
    %p270 = por %p268, %p269
    %p271 = scmp.ne.s32.totalorder %s263, %s265
    %p272 = scmp.eq.s32.totalorder %s24, 1
    %p273 = por %p271, %p272
    %p274 = scmp.ne.s32.totalorder %s265, %s266
    %p275 = scmp.eq.s32.totalorder %s24, 0
    %p276 = por %p274, %p275
    %p277 = scmp.ne.s32.totalorder %s265, %s266
    %p278 = scmp.eq.s32.totalorder %s25, 1
    %p279 = por %p277, %p278
    %p281 = scmp.ne.s32.totalorder %s266, %s280
    %p282 = scmp.eq.s32.totalorder %s25, 0
    %p283 = por %p281, %p282
    %s285 = sadd.s32 %s284, 1
    %p288 = scmp.eq.s32.totalorder %s19, 1
    %p289 = scmp.ne.s32.totalorder %s284, %s286
    %p290 = scmp.eq.s32.totalorder %s19, 0
    %p291 = por %p289, %p290
    %p292 = scmp.ne.s32.totalorder %s284, %s286
    %p293 = scmp.eq.s32.totalorder %s24, 1
    %p294 = por %p292, %p293
    %p295 = scmp.ne.s32.totalorder %s286, %s287
    %p296 = scmp.eq.s32.totalorder %s24, 0
    %p297 = por %p295, %p296
    %p298 = scmp.ne.s32.totalorder %s286, %s287
    %p299 = scmp.eq.s32.totalorder %s25, 1
    %p300 = por %p298, %p299
    %p302 = scmp.ne.s32.totalorder %s287, %s301
    %p303 = scmp.eq.s32.totalorder %s25, 0
    %p304 = por %p302, %p303
    %s305 = ssub.s32 %s19, %s26
    %p306 = scmp.eq.s32.totalorder %s305, 0
    %s308 = sadd.s32 %s307, 1
    %s309 = scalar_select %p306, %s307, %s308
    %p312 = pneg %p306
    %p313 = scmp.eq.s32.totalorder %s19, 1
    %p314 = por %p312, %p313
    %p315 = scmp.ne.s32.totalorder %s307, %s310
    %p316 = scmp.eq.s32.totalorder %s19, 0
    %p317 = por %p315, %p316
    %p318 = scmp.ne.s32.totalorder %s307, %s310
    %p319 = scmp.eq.s32.totalorder %s24, 1
    %p320 = por %p318, %p319
    %p321 = scmp.ne.s32.totalorder %s310, %s311
    %p322 = scmp.eq.s32.totalorder %s24, 0
    %p323 = por %p321, %p322
    %p324 = scmp.ne.s32.totalorder %s310, %s311
    %p325 = scmp.eq.s32.totalorder %s25, 1
    %p326 = por %p324, %p325
    %p328 = scmp.ne.s32.totalorder %s311, %s327
    %p329 = scmp.eq.s32.totalorder %s25, 0
    %p330 = por %p328, %p329
    %p331 = scmp.le.s32.totalorder 1, %s19
    %p332 = scmp.lt.s32.totalorder %s19, 3
    %p333 = pnand %p331, %p332
    %p334 = pneg %p333
    // Predicated region
    $region9: #{tpu_custom_call.1} parent=5 // pred_check
      _
    $region10: #{tpu_custom_call.1} parent=5 // pred_check_branch
      %336 = sbr.rel (%p333) target = $region12
    $region11: #{tpu_custom_call.1} parent=5 // pred_region
      %s337 = ssub.s32 %s19, 1
      // Predicated region
      $region13: #{tpu_custom_call.1} parent=11 // pred_check
        %p338 = pneg %p66
      $region14: #{tpu_custom_call.1} parent=11 // pred_check_branch
        %340 = sbr.rel (%p338) target = $region16
      $region15: #{tpu_custom_call.1} parent=11 // pred_region
        _
      $region16: #{tpu_custom_call.1} parent=11 // pred_fallthru
        _
      // Predicated region
      $region17: #{tpu_custom_call.1} parent=11 // pred_check
        %p341 = pneg %p87
      $region18: #{tpu_custom_call.1} parent=11 // pred_check_branch
        %343 = sbr.rel (%p341) target = $region20
      $region19: #{tpu_custom_call.1} parent=11 // pred_region
        _
      $region20: #{tpu_custom_call.1} parent=11 // pred_fallthru
        _
      // Predicated region
      $region21: #{tpu_custom_call.1} parent=11 // pred_check
        %p344 = pneg %p108
      $region22: #{tpu_custom_call.1} parent=11 // pred_check_branch
        %346 = sbr.rel (%p344) target = $region24
      $region23: #{tpu_custom_call.1} parent=11 // pred_region
        _
      $region24: #{tpu_custom_call.1} parent=11 // pred_fallthru
        _
      // Predicated region
      $region25: #{tpu_custom_call.1} parent=11 // pred_check
        %p347 = pneg %p129
      $region26: #{tpu_custom_call.1} parent=11 // pred_check_branch
        %349 = sbr.rel (%p347) target = $region28
      $region27: #{tpu_custom_call.1} parent=11 // pred_region
        _
      $region28: #{tpu_custom_call.1} parent=11 // pred_fallthru
        _
      // Predicated region
      $region29: #{tpu_custom_call.1} parent=11 // pred_check
        %p350 = pneg %p150
      $region30: #{tpu_custom_call.1} parent=11 // pred_check_branch
        %352 = sbr.rel (%p350) target = $region32
      $region31: #{tpu_custom_call.1} parent=11 // pred_region
        _
      $region32: #{tpu_custom_call.1} parent=11 // pred_fallthru
        _
      // Predicated region
      $region33: #{tpu_custom_call.1} parent=11 // pred_check
        %p353 = pneg %p171
      $region34: #{tpu_custom_call.1} parent=11 // pred_check_branch
        %355 = sbr.rel (%p353) target = $region36
      $region35: #{tpu_custom_call.1} parent=11 // pred_region
        _
      $region36: #{tpu_custom_call.1} parent=11 // pred_fallthru
        _
      // Predicated region
      $region37: #{tpu_custom_call.1} parent=11 // pred_check
        %p356 = pneg %p192
      $region38: #{tpu_custom_call.1} parent=11 // pred_check_branch
        %358 = sbr.rel (%p356) target = $region40
      $region39: #{tpu_custom_call.1} parent=11 // pred_region
        _
      $region40: #{tpu_custom_call.1} parent=11 // pred_fallthru
        _
      // Predicated region
      $region41: #{tpu_custom_call.1} parent=11 // pred_check
        %p359 = pneg %p213
      $region42: #{tpu_custom_call.1} parent=11 // pred_check_branch
        %361 = sbr.rel (%p359) target = $region44
      $region43: #{tpu_custom_call.1} parent=11 // pred_region
        _
      $region44: #{tpu_custom_call.1} parent=11 // pred_fallthru
        _
      // Predicated region
      $region45: #{tpu_custom_call.1} parent=11 // pred_check
        %p362 = pneg %p234
      $region46: #{tpu_custom_call.1} parent=11 // pred_check_branch
        %364 = sbr.rel (%p362) target = $region48
      $region47: #{tpu_custom_call.1} parent=11 // pred_region
        _
      $region48: #{tpu_custom_call.1} parent=11 // pred_fallthru
        _
      // Predicated region
      $region49: #{tpu_custom_call.1} parent=11 // pred_check
        %p365 = pneg %p255
      $region50: #{tpu_custom_call.1} parent=11 // pred_check_branch
        %367 = sbr.rel (%p365) target = $region52
      $region51: #{tpu_custom_call.1} parent=11 // pred_region
        _
      $region52: #{tpu_custom_call.1} parent=11 // pred_fallthru
        _
      // Predicated region
      $region53: #{tpu_custom_call.1} parent=11 // pred_check
        %p368 = pneg %p276
      $region54: #{tpu_custom_call.1} parent=11 // pred_check_branch
        %370 = sbr.rel (%p368) target = $region56
      $region55: #{tpu_custom_call.1} parent=11 // pred_region
        _
      $region56: #{tpu_custom_call.1} parent=11 // pred_fallthru
        _
      // Predicated region
      $region57: #{tpu_custom_call.1} parent=11 // pred_check
        %p371 = pneg %p297
      $region58: #{tpu_custom_call.1} parent=11 // pred_check_branch
        %373 = sbr.rel (%p371) target = $region60
      $region59: #{tpu_custom_call.1} parent=11 // pred_region
        _
      $region60: #{tpu_custom_call.1} parent=11 // pred_fallthru
        _
    $region12: #{tpu_custom_call.1} parent=5 // pred_fallthru
      _
    %p374 = scmp.lt.s32.totalorder %s19, 2
    // Predicated region
    $region61: #{tpu_custom_call.1} parent=5 // pred_check
      %p375 = pneg %p374
    $region62: #{tpu_custom_call.1} parent=5 // pred_check_branch
      %377 = sbr.rel (%p375) target = $region64
    $region63: #{tpu_custom_call.1} parent=5 // pred_region
      // Predicated region
      $region65: #{tpu_custom_call.1} parent=63 // pred_check
        %p378 = pneg %p39
      $region66: #{tpu_custom_call.1} parent=63 // pred_check_branch
        %380 = sbr.rel (%p378) target = $region68
      $region67: #{tpu_custom_call.1} parent=63 // pred_region
        %p381 = scmp.lt.s32.totalorder %s19, 1
        %s382 = scalar_select %p381, %s19, 1
        %s383 = smul.addr %s382, 32
        %s384 = smul.addr %s383, 4
        %s385 = scalar_lea.vmem %s0, %s384
      $region68: #{tpu_custom_call.1} parent=63 // pred_fallthru
        _
    $region64: #{tpu_custom_call.1} parent=5 // pred_fallthru
      _
    %p386 = scmp.le.s32.totalorder 1, %s19
    %p387 = scmp.lt.s32.totalorder %s19, 3
    %p388 = pnand %p386, %p387
    %p389 = pneg %p388
    // Predicated region
    $region69: #{tpu_custom_call.1} parent=5 // pred_check
      _
    $region70: #{tpu_custom_call.1} parent=5 // pred_check_branch
      %391 = sbr.rel (%p388) target = $region72
    $region71: #{tpu_custom_call.1} parent=5 // pred_region
      %s392 = ssub.s32 %s19, 1
      %p393 = scmp.lt.s32.totalorder %s24, 1
      %s394 = scalar_select %p393, %s24, 1
      %s395 = smul.addr %s394, 32
      %s396 = smul.addr %s395, 4
      %s397 = scalar_lea.vmem %s0, %s396
      %p398 = pneg %p45
      %p399 = pneg %p42
      %p400 = pneg %p66
      %p401 = pneg %p63
      %p402 = pneg %p87
      %p403 = pneg %p84
      %p404 = pneg %p108
      %p405 = pneg %p105
      %p406 = pneg %p129
      %p407 = pneg %p126
      %p408 = pneg %p150
      %p409 = pneg %p147
      %p410 = pneg %p171
      %p411 = pneg %p168
      %p412 = pneg %p192
      %p413 = pneg %p189
      %p414 = pneg %p213
      %p415 = pneg %p210
      %p416 = pneg %p234
      %p417 = pneg %p231
      %p418 = pneg %p255
      %p419 = pneg %p252
      %p420 = pneg %p276
      %p421 = pneg %p273
      %p422 = pneg %p297
      %p423 = pneg %p294
      %p424 = pneg %p323
      %p425 = pneg %p320
      %p426 = scmp.lt.s32.totalorder %s24, 1
      %s427 = scalar_select %p426, %s24, 1
      %s428 = smul.addr %s427, 32
      %s429 = smul.addr %s428, 8
      %s430 = scalar_lea.vmem %s13, %s429
      %p431 = scmp.lt.s32.totalorder %s24, 1
      %s432 = scalar_select %p431, %s24, 1
      %s433 = smul.addr %s432, 32
      %s434 = smul.addr %s433, 4
      %s435 = scalar_lea.vmem %s0, %s434
      %p436 = scmp.lt.s32.totalorder %s24, 1
      %s437 = scalar_select %p436, %s24, 1
      %s438 = smul.addr %s437, 32
      %s439 = smul.addr %s438, 8
      %s440 = scalar_lea.vmem %s13, %s439
      %vm442 = vcmask 31744
      %443 = vst.msk [vmem:[#allocation2] sm:$0xff] %vm442, 0.0
      %444 = vst.msk [vmem:[#allocation2 + $0x8] sm:$0xff] %vm442, 0.0
      %vm445 = vcmask 25600
      %446 = vst.msk [vmem:[#allocation2 + $0x10] sm:$0x3] %vm445, 0.0
      %447 = vst.msk [vmem:[#allocation2 + $0x18] sm:$0xff] %vm442, 0.0
      %448 = vst.msk [vmem:[#allocation2 + $0x20] sm:$0xff] %vm442, 0.0
      %449 = vst.msk [vmem:[#allocation2 + $0x28] sm:$0x3] %vm445, 0.0
      %450 = vst.msk [vmem:[#allocation2 + $0x30] sm:$0xff] %vm442, 0.0
      %451 = vst.msk [vmem:[#allocation2 + $0x38] sm:$0xff] %vm442, 0.0
      %452 = vst.msk [vmem:[#allocation2 + $0x40] sm:$0x3] %vm445, 0.0
      %453 = vst.msk [vmem:[#allocation2 + $0x48] sm:$0xff] %vm442, 0.0
      %454 = vst.msk [vmem:[#allocation2 + $0x50] sm:$0xff] %vm442, 0.0
      %455 = vst.msk [vmem:[#allocation2 + $0x58] sm:$0x3] %vm445, 0.0
      %456 = vst.msk [vmem:[#allocation2 + $0x60] sm:$0xff] %vm442, 0.0
      %457 = vst.msk [vmem:[#allocation2 + $0x68] sm:$0xff] %vm442, 0.0
      %458 = vst.msk [vmem:[#allocation2 + $0x70] sm:$0x3] %vm445, 0.0
      %459 = vst.msk [vmem:[#allocation2 + $0x78] sm:$0xff] %vm442, 0.0
      %460 = vst.msk [vmem:[#allocation2 + $0x80] sm:$0xff] %vm442, 0.0
      %461 = vst.msk [vmem:[#allocation2 + $0x88] sm:$0x3] %vm445, 0.0
      %462 = vst.msk [vmem:[#allocation2 + $0x90] sm:$0xff] %vm442, 0.0
      %463 = vst.msk [vmem:[#allocation2 + $0x98] sm:$0xff] %vm442, 0.0
      %464 = vst.msk [vmem:[#allocation2 + $0xa0] sm:$0x3] %vm445, 0.0
      %465 = vst.msk [vmem:[#allocation2 + $0xa8] sm:$0xff] %vm442, 0.0
      %466 = vst.msk [vmem:[#allocation2 + $0xb0] sm:$0xff] %vm442, 0.0
      %467 = vst.msk [vmem:[#allocation2 + $0xb8] sm:$0x3] %vm445, 0.0
      %468 = vst.msk [vmem:[#allocation2 + $0xc0] sm:$0xff] %vm442, 0.0
      %469 = vst.msk [vmem:[#allocation2 + $0xc8] sm:$0xff] %vm442, 0.0
      %470 = vst.msk [vmem:[#allocation2 + $0xd0] sm:$0x3] %vm445, 0.0
      %471 = vst.msk [vmem:[#allocation2 + $0xd8] sm:$0xff] %vm442, 0.0
      %472 = vst.msk [vmem:[#allocation2 + $0xe0] sm:$0xff] %vm442, 0.0
      %473 = vst.msk [vmem:[#allocation2 + $0xe8] sm:$0x3] %vm445, 0.0
      %474 = vst.msk [vmem:[#allocation2 + $0xf0] sm:$0xff] %vm442, 0.0
      %475 = vst.msk [vmem:[#allocation2 + $0xf8] sm:$0xff] %vm442, 0.0
      %476 = vst.msk [vmem:[#allocation2 + $0x100] sm:$0x3] %vm445, 0.0
      %477 = vst.msk [vmem:[#allocation2 + $0x108] sm:$0xff] %vm442, 0.0
      %478 = vst.msk [vmem:[#allocation2 + $0x110] sm:$0xff] %vm442, 0.0
      %479 = vst.msk [vmem:[#allocation2 + $0x118] sm:$0x3] %vm445, 0.0
      %480 = vst.msk [vmem:[#allocation2 + $0x120] sm:$0xff] %vm442, 0.0
      %481 = vst.msk [vmem:[#allocation2 + $0x128] sm:$0xff] %vm442, 0.0
      %482 = vst.msk [vmem:[#allocation2 + $0x130] sm:$0x3] %vm445, 0.0
      %483 = vst.msk [vmem:[#allocation2 + $0x138] sm:$0xff] %vm442, 0.0
      %484 = vst.msk [vmem:[#allocation2 + $0x140] sm:$0xff] %vm442, 0.0
      %485 = vst.msk [vmem:[#allocation2 + $0x148] sm:$0x3] %vm445, 0.0
      %486 = vst.msk [vmem:[#allocation2 + $0x150] sm:$0xff] %vm442, 0.0
      %487 = vst.msk [vmem:[#allocation2 + $0x158] sm:$0xff] %vm442, 0.0
      %488 = vst.msk [vmem:[#allocation2 + $0x160] sm:$0x3] %vm445, 0.0
      %489 = vst.msk [vmem:[#allocation2 + $0x168] sm:$0xff] %vm442, 0.0
      %490 = vst.msk [vmem:[#allocation2 + $0x170] sm:$0xff] %vm442, 0.0
      %491 = vst.msk [vmem:[#allocation2 + $0x178] sm:$0x3] %vm445, 0.0
      %492 = vst.msk [vmem:[#allocation2 + $0x180] sm:$0xff] %vm442, 0.0
      %493 = vst.msk [vmem:[#allocation2 + $0x188] sm:$0xff] %vm442, 0.0
      %494 = vst.msk [vmem:[#allocation2 + $0x190] sm:$0x3] %vm445, 0.0
      %495 = vst.msk [vmem:[#allocation2 + $0x198] sm:$0xff] %vm442, 0.0
      %496 = vst.msk [vmem:[#allocation2 + $0x1a0] sm:$0xff] %vm442, 0.0
      %497 = vst.msk [vmem:[#allocation2 + $0x1a8] sm:$0x3] %vm445, 0.0
      %v498 = vld [vmem:[%s435] sm:$0xf]
      %v499 = vld [vmem:[%s435 + $0x4] sm:$0xf]
      %v500 = vld [vmem:[%s435 + $0x8] sm:$0xf]
      %v501 = vld [vmem:[%s435 + $0xc] sm:$0xf]
      %v502 = vld [vmem:[%s435 + $0x10] sm:$0xf]
      %v503 = vld [vmem:[%s435 + $0x14] sm:$0xf]
      %v504 = vld [vmem:[%s435 + $0x18] sm:$0xf]
      %v505 = vld [vmem:[%s435 + $0x1c] sm:$0xf]
      %v506 = vld [vmem:[%s435 + $0x20] sm:$0xf]
      %v507 = vld [vmem:[%s435 + $0x24] sm:$0xf]
      %v508 = vld [vmem:[%s435 + $0x28] sm:$0xf]
      %v509 = vld [vmem:[%s435 + $0x2c] sm:$0xf]
      %v510 = vld [vmem:[%s435 + $0x30] sm:$0xf]
      %v511 = vld [vmem:[%s435 + $0x34] sm:$0xf]
      %v512 = vld [vmem:[%s435 + $0x38] sm:$0xf]
      %v513 = vld [vmem:[%s435 + $0x3c] sm:$0xf]
      %v514 = vld [vmem:[%s435 + $0x40] sm:$0xf]
      %v515 = vld [vmem:[%s435 + $0x44] sm:$0xf]
      %v516 = vld [vmem:[%s435 + $0x48] sm:$0xf]
      %v517 = vld [vmem:[%s435 + $0x4c] sm:$0xf]
      %v518 = vld [vmem:[%s435 + $0x50] sm:$0xf]
      %v519 = vld [vmem:[%s435 + $0x54] sm:$0xf]
      %v520 = vld [vmem:[%s435 + $0x58] sm:$0xf]
      %v521 = vld [vmem:[%s435 + $0x5c] sm:$0xf]
      %v522 = vld [vmem:[%s435 + $0x60] sm:$0xf]
      %v523 = vld [vmem:[%s435 + $0x64] sm:$0xf]
      %v524 = vld [vmem:[%s435 + $0x68] sm:$0xf]
      %v525 = vld [vmem:[%s435 + $0x6c] sm:$0xf]
      %v526 = vld [vmem:[%s435 + $0x70] sm:$0xf]
      %v527 = vld [vmem:[%s435 + $0x74] sm:$0xf]
      %v528 = vld [vmem:[%s435 + $0x78] sm:$0xf]
      %v529 = vld [vmem:[%s435 + $0x7c] sm:$0xf]
      %v530 = vld [vmem:[%s1] sm:$0x3]
      %v563 = vunpack.c.l.b16 %v498
      %v564 = vunpack.c.l.b16 %v499
      %v565 = vunpack.c.l.b16 %v500
      %v566 = vunpack.c.l.b16 %v501
      %v567 = vunpack.c.l.b16 %v502
      %v568 = vunpack.c.l.b16 %v503
      %v569 = vunpack.c.l.b16 %v504
      %v570 = vunpack.c.l.b16 %v505
      %v571 = vunpack.c.l.b16 %v506
      %v572 = vunpack.c.l.b16 %v507
      %v573 = vunpack.c.l.b16 %v508
      %v574 = vunpack.c.l.b16 %v509
      %v575 = vunpack.c.l.b16 %v510
      %v576 = vunpack.c.l.b16 %v511
      %v577 = vunpack.c.l.b16 %v512
      %v578 = vunpack.c.l.b16 %v513
      %v579 = vunpack.c.l.b16 %v514
      %v580 = vunpack.c.l.b16 %v515
      %v581 = vunpack.c.l.b16 %v516
      %v582 = vunpack.c.l.b16 %v517
      %v583 = vunpack.c.l.b16 %v518
      %v584 = vunpack.c.l.b16 %v519
      %v585 = vunpack.c.l.b16 %v520
      %v586 = vunpack.c.l.b16 %v521
      %v587 = vunpack.c.l.b16 %v522
      %v588 = vunpack.c.l.b16 %v523
      %v589 = vunpack.c.l.b16 %v524
      %v590 = vunpack.c.l.b16 %v525
      %v591 = vunpack.c.l.b16 %v526
      %v592 = vunpack.c.l.b16 %v527
      %v593 = vunpack.c.l.b16 %v528
      %v594 = vunpack.c.l.b16 %v529
      %v595 = vpack.c.b16 %v564, %v563
      %v596 = vpack.c.b16 %v566, %v565
      %v597 = vpack.c.b16 %v568, %v567
      %v598 = vpack.c.b16 %v570, %v569
      %v599 = vpack.c.b16 %v572, %v571
      %v600 = vpack.c.b16 %v574, %v573
      %v601 = vpack.c.b16 %v576, %v575
      %v602 = vpack.c.b16 %v578, %v577
      %v603 = vpack.c.b16 %v580, %v579
      %v604 = vpack.c.b16 %v582, %v581
      %v605 = vpack.c.b16 %v584, %v583
      %v606 = vpack.c.b16 %v586, %v585
      %v607 = vpack.c.b16 %v588, %v587
      %v608 = vpack.c.b16 %v590, %v589
      %v609 = vpack.c.b16 %v592, %v591
      %v610 = vpack.c.b16 %v594, %v593
      %v612 = vsel %vm442, %v595, 0
      %v615 = vsel %vm442, %v596, 0
      %v618 = vsel %vm442, %v597, 0
      %v621 = vsel %vm442, %v598, 0
      %v624 = vsel %vm442, %v599, 0
      %v627 = vsel %vm442, %v600, 0
      %v630 = vsel %vm442, %v601, 0
      %v633 = vsel %vm442, %v602, 0
      %v636 = vsel %vm442, %v603, 0
      %v639 = vsel %vm442, %v604, 0
      %v642 = vsel %vm442, %v605, 0
      %v645 = vsel %vm442, %v606, 0
      %v648 = vsel %vm442, %v607, 0
      %v651 = vsel %vm442, %v608, 0
      %v654 = vsel %vm442, %v609, 0
      %v657 = vsel %vm442, %v610, 0
      %vm659 = vcmask 1041408
      %v661 = vsel %vm659, %v530, 0
      %663 = vmatprep.subr.bf16.mxu0 0
      %664 = vmatpush1.bf16.msra.mxu0 %v661
      %665 = vmatprep.subr.bf16.mxu0 0
      %666 = vmatpush1.bf16.msra.mxu0 0
      %667 = vmatprep.subr.bf16.mxu0 0
      %668 = vmatpush1.bf16.msra.mxu0 0
      %669 = vmatprep.subr.bf16.mxu0 0
      %670 = vmatpush1.bf16.msra.mxu0 0
      %671 = vmatprep.subr.bf16.mxu0 0
      %672 = vmatpush1.bf16.msra.mxu0 0
      %673 = vmatprep.subr.bf16.mxu0 0
      %674 = vmatpush1.bf16.msra.mxu0 0
      %675 = vmatprep.subr.bf16.mxu0 0
      %676 = vmatpush1.bf16.msra.mxu0 0
      %677 = vmatprep.subr.bf16.mxu0 0
      %678 = vmatpush1.bf16.msra.mxu0 0
      %679 = vmatprep.subr.bf16.mxu0 0
      %680 = vmatpush1.bf16.msra.mxu0 0
      %681 = vmatprep.subr.bf16.mxu0 0
      %682 = vmatpush1.bf16.msra.mxu0 0
      %683 = vmatprep.subr.bf16.mxu0 0
      %684 = vmatpush1.bf16.msra.mxu0 0
      %685 = vmatprep.subr.bf16.mxu0 0
      %686 = vmatpush1.bf16.msra.mxu0 0
      %687 = vmatprep.subr.bf16.mxu0 0
      %688 = vmatpush1.bf16.msra.mxu0 0
      %689 = vmatprep.subr.bf16.mxu0 0
      %690 = vmatpush1.bf16.msra.mxu0 0
      %691 = vmatprep.subr.bf16.mxu0 0
      %692 = vmatpush1.bf16.msra.mxu0 0
      %693 = vmatprep.subr.bf16.mxu0 0
      %694 = vmatpush1.bf16.msra.mxu0 0
      %695 = vmatprep.mubr.bf16.mxu0 0
      %696 = vmatmul.mubr.bf16.gmra.mrb[0].mxu0 %v612
      %v697 = vpop.f32.mrb[0].mxu0
      %v698 = vadd.f32 0.0, %v697
      %v699 = vpop.f32.mrb[0].mxu0
      %v700 = vpop.f32.mrb[0].mxu0
      %v701 = vadd.f32 0.0, %v700
      %v702 = vpop.f32.mrb[0].mxu0
      %703 = vmatprep.mubr.bf16.mxu0 0
      %704 = vmatmul.mubr.bf16.gmra.mrb[0].mxu0 %v615
      %v705 = vpop.f32.mrb[0].mxu0
      %v706 = vadd.f32 0.0, %v705
      %v707 = vpop.f32.mrb[0].mxu0
      %v708 = vpop.f32.mrb[0].mxu0
      %v709 = vadd.f32 0.0, %v708
      %v710 = vpop.f32.mrb[0].mxu0
      %711 = vmatprep.mubr.bf16.mxu0 0
      %712 = vmatmul.mubr.bf16.gmra.mrb[0].mxu0 %v618
      %v713 = vpop.f32.mrb[0].mxu0
      %v714 = vadd.f32 0.0, %v713
      %v715 = vpop.f32.mrb[0].mxu0
      %v716 = vpop.f32.mrb[0].mxu0
      %v717 = vadd.f32 0.0, %v716
      %v718 = vpop.f32.mrb[0].mxu0
      %719 = vmatprep.mubr.bf16.mxu0 0
      %720 = vmatmul.mubr.bf16.gmra.mrb[0].mxu0 %v621
      %v721 = vpop.f32.mrb[0].mxu0
      %v722 = vadd.f32 0.0, %v721
      %v723 = vpop.f32.mrb[0].mxu0
      %v724 = vpop.f32.mrb[0].mxu0
      %v725 = vadd.f32 0.0, %v724
      %v726 = vpop.f32.mrb[0].mxu0
      %727 = vmatprep.mubr.bf16.mxu0 0
      %728 = vmatmul.mubr.bf16.gmra.mrb[0].mxu0 %v624
      %v729 = vpop.f32.mrb[0].mxu0
      %v730 = vadd.f32 0.0, %v729
      %v731 = vpop.f32.mrb[0].mxu0
      %v732 = vpop.f32.mrb[0].mxu0
      %v733 = vadd.f32 0.0, %v732
      %v734 = vpop.f32.mrb[0].mxu0
      %735 = vmatprep.mubr.bf16.mxu0 0
      %736 = vmatmul.mubr.bf16.gmra.mrb[0].mxu0 %v627
      %v737 = vpop.f32.mrb[0].mxu0
      %v738 = vadd.f32 0.0, %v737
      %v739 = vpop.f32.mrb[0].mxu0
      %v740 = vpop.f32.mrb[0].mxu0
      %v741 = vadd.f32 0.0, %v740
      %v742 = vpop.f32.mrb[0].mxu0
      %743 = vmatprep.mubr.bf16.mxu0 0
      %744 = vmatmul.mubr.bf16.gmra.mrb[0].mxu0 %v630
      %v745 = vpop.f32.mrb[0].mxu0
      %v746 = vadd.f32 0.0, %v745
      %v747 = vpop.f32.mrb[0].mxu0
      %v748 = vpop.f32.mrb[0].mxu0
      %v749 = vadd.f32 0.0, %v748
      %v750 = vpop.f32.mrb[0].mxu0
      %751 = vmatprep.mubr.bf16.mxu0 0
      %752 = vmatmul.mubr.bf16.gmra.mrb[0].mxu0 %v633
      %v753 = vpop.f32.mrb[0].mxu0
      %v754 = vadd.f32 0.0, %v753
      %v755 = vpop.f32.mrb[0].mxu0
      %v756 = vpop.f32.mrb[0].mxu0
      %v757 = vadd.f32 0.0, %v756
      %v758 = vpop.f32.mrb[0].mxu0
      %759 = vmatprep.mubr.bf16.mxu0 0
      %760 = vmatmul.mubr.bf16.gmra.mrb[0].mxu0 %v636
      %v761 = vpop.f32.mrb[0].mxu0
      %v762 = vadd.f32 0.0, %v761
      %v763 = vpop.f32.mrb[0].mxu0
      %v764 = vpop.f32.mrb[0].mxu0
      %v765 = vadd.f32 0.0, %v764
      %v766 = vpop.f32.mrb[0].mxu0
      %767 = vmatprep.mubr.bf16.mxu0 0
      %768 = vmatmul.mubr.bf16.gmra.mrb[0].mxu0 %v639
      %v769 = vpop.f32.mrb[0].mxu0
      %v770 = vadd.f32 0.0, %v769
      %v771 = vpop.f32.mrb[0].mxu0
      %v772 = vpop.f32.mrb[0].mxu0
      %v773 = vadd.f32 0.0, %v772
      %v774 = vpop.f32.mrb[0].mxu0
      %775 = vmatprep.mubr.bf16.mxu0 0
      %776 = vmatmul.mubr.bf16.gmra.mrb[0].mxu0 %v642
      %v777 = vpop.f32.mrb[0].mxu0
      %v778 = vadd.f32 0.0, %v777
      %v779 = vpop.f32.mrb[0].mxu0
      %v780 = vpop.f32.mrb[0].mxu0
      %v781 = vadd.f32 0.0, %v780
      %v782 = vpop.f32.mrb[0].mxu0
      %783 = vmatprep.mubr.bf16.mxu0 0
      %784 = vmatmul.mubr.bf16.gmra.mrb[0].mxu0 %v645
      %v785 = vpop.f32.mrb[0].mxu0
      %v786 = vadd.f32 0.0, %v785
      %v787 = vpop.f32.mrb[0].mxu0
      %v788 = vpop.f32.mrb[0].mxu0
      %v789 = vadd.f32 0.0, %v788
      %v790 = vpop.f32.mrb[0].mxu0
      %791 = vmatprep.mubr.bf16.mxu0 0
      %792 = vmatmul.mubr.bf16.gmra.mrb[0].mxu0 %v648
      %v793 = vpop.f32.mrb[0].mxu0
      %v794 = vadd.f32 0.0, %v793
      %v795 = vpop.f32.mrb[0].mxu0
      %v796 = vpop.f32.mrb[0].mxu0
      %v797 = vadd.f32 0.0, %v796
      %v798 = vpop.f32.mrb[0].mxu0
      %799 = vmatprep.mubr.bf16.mxu0 0
      %800 = vmatmul.mubr.bf16.gmra.mrb[0].mxu0 %v651
      %v801 = vpop.f32.mrb[0].mxu0
      %v802 = vadd.f32 0.0, %v801
      %v803 = vpop.f32.mrb[0].mxu0
      %v804 = vpop.f32.mrb[0].mxu0
      %v805 = vadd.f32 0.0, %v804
      %v806 = vpop.f32.mrb[0].mxu0
      %807 = vmatprep.mubr.bf16.mxu0 0
      %808 = vmatmul.mubr.bf16.gmra.mrb[0].mxu0 %v654
      %v809 = vpop.f32.mrb[0].mxu0
      %v810 = vadd.f32 0.0, %v809
      %v811 = vpop.f32.mrb[0].mxu0
      %v812 = vpop.f32.mrb[0].mxu0
      %v813 = vadd.f32 0.0, %v812
      %v814 = vpop.f32.mrb[0].mxu0
      %815 = vmatprep.mubr.bf16.mxu0 0
      %816 = vmatmul.mubr.bf16.gmra.mrb[0].mxu0 %v657
      %v817 = vpop.f32.mrb[0].mxu0
      %v818 = vadd.f32 0.0, %v817
      %v819 = vpop.f32.mrb[0].mxu0
      %v820 = vpop.f32.mrb[0].mxu0
      %v821 = vadd.f32 0.0, %v820
      %v822 = vpop.f32.mrb[0].mxu0
      %823 = vdwg.mxu0
      %v824 = vld [vmem:[%s2] sm:$0x1]
      %v826 = vlaneseq
      %v827 = vshrl.u32 %v826, 7
      %v828 = vsub.s32 0, %v827
      %v829 = vrot.slane %v824, %v828
      %v831 = vmul.f32 %v698, %v829
      %v832 = vmul.f32 %v701, %v829
      %v833 = vmul.f32 %v706, %v829
      %v834 = vmul.f32 %v709, %v829
      %v835 = vmul.f32 %v714, %v829
      %v836 = vmul.f32 %v717, %v829
      %v837 = vmul.f32 %v722, %v829
      %v838 = vmul.f32 %v725, %v829
      %v839 = vmul.f32 %v730, %v829
      %v840 = vmul.f32 %v733, %v829
      %v841 = vmul.f32 %v738, %v829
      %v842 = vmul.f32 %v741, %v829
      %v843 = vmul.f32 %v746, %v829
      %v844 = vmul.f32 %v749, %v829
      %v845 = vmul.f32 %v754, %v829
      %v846 = vmul.f32 %v757, %v829
      %v847 = vmul.f32 %v762, %v829
      %v848 = vmul.f32 %v765, %v829
      %v849 = vmul.f32 %v770, %v829
      %v850 = vmul.f32 %v773, %v829
      %v851 = vmul.f32 %v778, %v829
      %v852 = vmul.f32 %v781, %v829
      %v853 = vmul.f32 %v786, %v829
      %v854 = vmul.f32 %v789, %v829
      %v855 = vmul.f32 %v794, %v829
      %v856 = vmul.f32 %v797, %v829
      %v857 = vmul.f32 %v802, %v829
      %v858 = vmul.f32 %v805, %v829
      %v859 = vmul.f32 %v810, %v829
      %v860 = vmul.f32 %v813, %v829
      %v861 = vmul.f32 %v818, %v829
      %v862 = vmul.f32 %v821, %v829
      %v863 = vld [vmem:[%s3] sm:$0x1]
      %v865 = vlaneseq
      %v866 = vshrl.u32 %v865, 7
      %v867 = vsub.s32 0, %v866
      %v868 = vrot.slane %v863, %v867
      %v870 = vadd.f32 %v831, %v868
      %v871 = vadd.f32 %v832, %v868
      %v872 = vadd.f32 %v833, %v868
      %v873 = vadd.f32 %v834, %v868
      %v874 = vadd.f32 %v835, %v868
      %v875 = vadd.f32 %v836, %v868
      %v876 = vadd.f32 %v837, %v868
      %v877 = vadd.f32 %v838, %v868
      %v878 = vadd.f32 %v839, %v868
      %v879 = vadd.f32 %v840, %v868
      %v880 = vadd.f32 %v841, %v868
      %v881 = vadd.f32 %v842, %v868
      %v882 = vadd.f32 %v843, %v868
      %v883 = vadd.f32 %v844, %v868
      %v884 = vadd.f32 %v845, %v868
      %v885 = vadd.f32 %v846, %v868
      %v886 = vadd.f32 %v847, %v868
      %v887 = vadd.f32 %v848, %v868
      %v888 = vadd.f32 %v849, %v868
      %v889 = vadd.f32 %v850, %v868
      %v890 = vadd.f32 %v851, %v868
      %v891 = vadd.f32 %v852, %v868
      %v892 = vadd.f32 %v853, %v868
      %v893 = vadd.f32 %v854, %v868
      %v894 = vadd.f32 %v855, %v868
      %v895 = vadd.f32 %v856, %v868
      %v896 = vadd.f32 %v857, %v868
      %v897 = vadd.f32 %v858, %v868
      %v898 = vadd.f32 %v859, %v868
      %v899 = vadd.f32 %v860, %v868
      %v900 = vadd.f32 %v861, %v868
      %v901 = vadd.f32 %v862, %v868
      %v902 = vmax.f32 %v870, 0.0
      %v903 = vmax.f32 %v871, 0.0
      %v904 = vmax.f32 %v872, 0.0
      %v905 = vmax.f32 %v873, 0.0
      %v906 = vmax.f32 %v874, 0.0
      %v907 = vmax.f32 %v875, 0.0
      %v908 = vmax.f32 %v876, 0.0
      %v909 = vmax.f32 %v877, 0.0
      %v910 = vmax.f32 %v878, 0.0
      %v911 = vmax.f32 %v879, 0.0
      %v912 = vmax.f32 %v880, 0.0
      %v913 = vmax.f32 %v881, 0.0
      %v914 = vmax.f32 %v882, 0.0
      %v915 = vmax.f32 %v883, 0.0
      %v916 = vmax.f32 %v884, 0.0
      %v917 = vmax.f32 %v885, 0.0
      %v918 = vmax.f32 %v886, 0.0
      %v919 = vmax.f32 %v887, 0.0
      %v920 = vmax.f32 %v888, 0.0
      %v921 = vmax.f32 %v889, 0.0
      %v922 = vmax.f32 %v890, 0.0
      %v923 = vmax.f32 %v891, 0.0
      %v924 = vmax.f32 %v892, 0.0
      %v925 = vmax.f32 %v893, 0.0
      %v926 = vmax.f32 %v894, 0.0
      %v927 = vmax.f32 %v895, 0.0
      %v928 = vmax.f32 %v896, 0.0
      %v929 = vmax.f32 %v897, 0.0
      %v930 = vmax.f32 %v898, 0.0
      %v931 = vmax.f32 %v899, 0.0
      %v932 = vmax.f32 %v900, 0.0
      %v933 = vmax.f32 %v901, 0.0
      %s934 = scalar_lea.vmem [#allocation2], 24
      %935 = vst.msk [vmem:[%s934 + $0x1] sm:$0xff] %vm442, %v902
      %936 = vst.msk [vmem:[%s934 + $0x9] sm:$0xff] %vm442, %v903
      %937 = vst.msk [vmem:[%s934 + $0x19] sm:$0xff] %vm442, %v904
      %938 = vst.msk [vmem:[%s934 + $0x21] sm:$0xff] %vm442, %v905
      %939 = vst.msk [vmem:[%s934 + $0x31] sm:$0xff] %vm442, %v906
      %940 = vst.msk [vmem:[%s934 + $0x39] sm:$0xff] %vm442, %v907
      %941 = vst.msk [vmem:[%s934 + $0x49] sm:$0xff] %vm442, %v908
      %942 = vst.msk [vmem:[%s934 + $0x51] sm:$0xff] %vm442, %v909
      %943 = vst.msk [vmem:[%s934 + $0x61] sm:$0xff] %vm442, %v910
      %944 = vst.msk [vmem:[%s934 + $0x69] sm:$0xff] %vm442, %v911
      %945 = vst.msk [vmem:[%s934 + $0x79] sm:$0xff] %vm442, %v912
      %946 = vst.msk [vmem:[%s934 + $0x81] sm:$0xff] %vm442, %v913
      %947 = vst.msk [vmem:[%s934 + $0x91] sm:$0xff] %vm442, %v914
      %948 = vst.msk [vmem:[%s934 + $0x99] sm:$0xff] %vm442, %v915
      %949 = vst.msk [vmem:[%s934 + $0xa9] sm:$0xff] %vm442, %v916
      %950 = vst.msk [vmem:[%s934 + $0xb1] sm:$0xff] %vm442, %v917
      %951 = vst.msk [vmem:[%s934 + $0xc1] sm:$0xff] %vm442, %v918
      %952 = vst.msk [vmem:[%s934 + $0xc9] sm:$0xff] %vm442, %v919
      %953 = vst.msk [vmem:[%s934 + $0xd9] sm:$0xff] %vm442, %v920
      %954 = vst.msk [vmem:[%s934 + $0xe1] sm:$0xff] %vm442, %v921
      %955 = vst.msk [vmem:[%s934 + $0xf1] sm:$0xff] %vm442, %v922
      %956 = vst.msk [vmem:[%s934 + $0xf9] sm:$0xff] %vm442, %v923
      %957 = vst.msk [vmem:[%s934 + $0x109] sm:$0xff] %vm442, %v924
      %958 = vst.msk [vmem:[%s934 + $0x111] sm:$0xff] %vm442, %v925
      %959 = vst.msk [vmem:[%s934 + $0x121] sm:$0xff] %vm442, %v926
      %960 = vst.msk [vmem:[%s934 + $0x129] sm:$0xff] %vm442, %v927
      %961 = vst.msk [vmem:[%s934 + $0x139] sm:$0xff] %vm442, %v928
      %962 = vst.msk [vmem:[%s934 + $0x141] sm:$0xff] %vm442, %v929
      %963 = vst.msk [vmem:[%s934 + $0x151] sm:$0xff] %vm442, %v930
      %964 = vst.msk [vmem:[%s934 + $0x159] sm:$0xff] %vm442, %v931
      %965 = vst.msk [vmem:[%s934 + $0x169] sm:$0xff] %vm442, %v932
      %966 = vst.msk [vmem:[%s934 + $0x171] sm:$0xff] %vm442, %v933
      %v967 = vld [vmem:[#allocation2] sm:$0xff]
      %v968 = vld [vmem:[#allocation2 + $0x8] sm:$0xff]
      %v969 = vld [vmem:[#allocation2 + $0x18] sm:$0xff]
      %v970 = vld [vmem:[#allocation2 + $0x20] sm:$0xff]
      %v971 = vld [vmem:[#allocation2 + $0x30] sm:$0xff]
      %v972 = vld [vmem:[#allocation2 + $0x38] sm:$0xff]
      %v973 = vld [vmem:[#allocation2 + $0x48] sm:$0xff]
      %v974 = vld [vmem:[#allocation2 + $0x50] sm:$0xff]
      %v975 = vld [vmem:[#allocation2 + $0x60] sm:$0xff]
      %v976 = vld [vmem:[#allocation2 + $0x68] sm:$0xff]
      %v977 = vld [vmem:[#allocation2 + $0x78] sm:$0xff]
      %v978 = vld [vmem:[#allocation2 + $0x80] sm:$0xff]
      %v979 = vld [vmem:[#allocation2 + $0x90] sm:$0xff]
      %v980 = vld [vmem:[#allocation2 + $0x98] sm:$0xff]
      %v981 = vld [vmem:[#allocation2 + $0xa8] sm:$0xff]
      %v982 = vld [vmem:[#allocation2 + $0xb0] sm:$0xff]
      %v983 = vld [vmem:[#allocation2 + $0xc0] sm:$0xff]
      %v984 = vld [vmem:[#allocation2 + $0xc8] sm:$0xff]
      %v985 = vld [vmem:[#allocation2 + $0xd8] sm:$0xff]
      %v986 = vld [vmem:[#allocation2 + $0xe0] sm:$0xff]
      %v987 = vld [vmem:[#allocation2 + $0xf0] sm:$0xff]
      %v988 = vld [vmem:[#allocation2 + $0xf8] sm:$0xff]
      %v989 = vld [vmem:[#allocation2 + $0x108] sm:$0xff]
      %v990 = vld [vmem:[#allocation2 + $0x110] sm:$0xff]
      %v991 = vld [vmem:[#allocation2 + $0x120] sm:$0xff]
      %v992 = vld [vmem:[#allocation2 + $0x128] sm:$0xff]
      %v993 = vld [vmem:[#allocation2 + $0x138] sm:$0xff]
      %v994 = vld [vmem:[#allocation2 + $0x140] sm:$0xff]
      %v995 = vld [vmem:[#allocation2 + $0x150] sm:$0xff]
      %v996 = vld [vmem:[#allocation2 + $0x158] sm:$0xff]
      %v997 = vld [vmem:[#allocation2 + $0x168] sm:$0xff]
      %v998 = vld [vmem:[#allocation2 + $0x170] sm:$0xff]
      %v999 = vpack.c.bf16 %v968, %v967
      %v1000 = vpack.c.bf16 %v970, %v969
      %v1001 = vpack.c.bf16 %v972, %v971
      %v1002 = vpack.c.bf16 %v974, %v973
      %v1003 = vpack.c.bf16 %v976, %v975
      %v1004 = vpack.c.bf16 %v978, %v977
      %v1005 = vpack.c.bf16 %v980, %v979
      %v1006 = vpack.c.bf16 %v982, %v981
      %v1007 = vpack.c.bf16 %v984, %v983
      %v1008 = vpack.c.bf16 %v986, %v985
      %v1009 = vpack.c.bf16 %v988, %v987
      %v1010 = vpack.c.bf16 %v990, %v989
      %v1011 = vpack.c.bf16 %v992, %v991
      %v1012 = vpack.c.bf16 %v994, %v993
      %v1013 = vpack.c.bf16 %v996, %v995
      %v1014 = vpack.c.bf16 %v998, %v997
      %v1015 = vld [vmem:[%s4] sm:$0x3]
      %v1016 = vld [vmem:[#allocation2 + $0x1] sm:$0xff]
      %v1017 = vld [vmem:[#allocation2 + $0x9] sm:$0xff]
      %v1018 = vld [vmem:[#allocation2 + $0x19] sm:$0xff]
      %v1019 = vld [vmem:[#allocation2 + $0x21] sm:$0xff]
      %v1020 = vld [vmem:[#allocation2 + $0x31] sm:$0xff]
      %v1021 = vld [vmem:[#allocation2 + $0x39] sm:$0xff]
      %v1022 = vld [vmem:[#allocation2 + $0x49] sm:$0xff]
      %v1023 = vld [vmem:[#allocation2 + $0x51] sm:$0xff]
      %v1024 = vld [vmem:[#allocation2 + $0x61] sm:$0xff]
      %v1025 = vld [vmem:[#allocation2 + $0x69] sm:$0xff]
      %v1026 = vld [vmem:[#allocation2 + $0x79] sm:$0xff]
      %v1027 = vld [vmem:[#allocation2 + $0x81] sm:$0xff]
      %v1028 = vld [vmem:[#allocation2 + $0x91] sm:$0xff]
      %v1029 = vld [vmem:[#allocation2 + $0x99] sm:$0xff]
      %v1030 = vld [vmem:[#allocation2 + $0xa9] sm:$0xff]
      %v1031 = vld [vmem:[#allocation2 + $0xb1] sm:$0xff]
      %v1032 = vld [vmem:[#allocation2 + $0xc1] sm:$0xff]
      %v1033 = vld [vmem:[#allocation2 + $0xc9] sm:$0xff]
      %v1034 = vld [vmem:[#allocation2 + $0xd9] sm:$0xff]
      %v1035 = vld [vmem:[#allocation2 + $0xe1] sm:$0xff]
      %v1036 = vld [vmem:[#allocation2 + $0xf1] sm:$0xff]
      %v1037 = vld [vmem:[#allocation2 + $0xf9] sm:$0xff]
      %v1038 = vld [vmem:[#allocation2 + $0x109] sm:$0xff]
      %v1039 = vld [vmem:[#allocation2 + $0x111] sm:$0xff]
      %v1040 = vld [vmem:[#allocation2 + $0x121] sm:$0xff]
      %v1041 = vld [vmem:[#allocation2 + $0x129] sm:$0xff]
      %v1042 = vld [vmem:[#allocation2 + $0x139] sm:$0xff]
      %v1043 = vld [vmem:[#allocation2 + $0x141] sm:$0xff]
      %v1044 = vld [vmem:[#allocation2 + $0x151] sm:$0xff]
      %v1045 = vld [vmem:[#allocation2 + $0x159] sm:$0xff]
      %v1046 = vld [vmem:[#allocation2 + $0x169] sm:$0xff]
      %v1047 = vld [vmem:[#allocation2 + $0x171] sm:$0xff]
      %v1048 = vpack.c.bf16 %v1017, %v1016
      %v1049 = vpack.c.bf16 %v1019, %v1018
      %v1050 = vpack.c.bf16 %v1021, %v1020
      %v1051 = vpack.c.bf16 %v1023, %v1022
      %v1052 = vpack.c.bf16 %v1025, %v1024
      %v1053 = vpack.c.bf16 %v1027, %v1026
      %v1054 = vpack.c.bf16 %v1029, %v1028
      %v1055 = vpack.c.bf16 %v1031, %v1030
      %v1056 = vpack.c.bf16 %v1033, %v1032
      %v1057 = vpack.c.bf16 %v1035, %v1034
      %v1058 = vpack.c.bf16 %v1037, %v1036
      %v1059 = vpack.c.bf16 %v1039, %v1038
      %v1060 = vpack.c.bf16 %v1041, %v1040
      %v1061 = vpack.c.bf16 %v1043, %v1042
      %v1062 = vpack.c.bf16 %v1045, %v1044
      %v1063 = vpack.c.bf16 %v1047, %v1046
      %s1064 = scalar_lea.vmem %s4, 2
      %v1065 = vld [vmem:[%s1064] sm:$0x3]
      %v1067 = vsel %vm442, %v1048, 0
      %v1070 = vsel %vm442, %v1049, 0
      %v1073 = vsel %vm442, %v1050, 0
      %v1076 = vsel %vm442, %v1051, 0
      %v1079 = vsel %vm442, %v1052, 0
      %v1082 = vsel %vm442, %v1053, 0
      %v1085 = vsel %vm442, %v1054, 0
      %v1088 = vsel %vm442, %v1055, 0
      %v1091 = vsel %vm442, %v1056, 0
      %v1094 = vsel %vm442, %v1057, 0
      %v1097 = vsel %vm442, %v1058, 0
      %v1100 = vsel %vm442, %v1059, 0
      %v1103 = vsel %vm442, %v1060, 0
      %v1106 = vsel %vm442, %v1061, 0
      %v1109 = vsel %vm442, %v1062, 0
      %v1112 = vsel %vm442, %v1063, 0
      %v1115 = vsel %vm659, %v1065, 0
      %1117 = vmatprep.subr.bf16.mxu0 0
      %1118 = vmatpush1.bf16.msra.mxu0 %v1115
      %1119 = vmatprep.subr.bf16.mxu0 0
      %1120 = vmatpush1.bf16.msra.mxu0 0
      %1121 = vmatprep.subr.bf16.mxu0 0
      %1122 = vmatpush1.bf16.msra.mxu0 0
      %1123 = vmatprep.subr.bf16.mxu0 0
      %1124 = vmatpush1.bf16.msra.mxu0 0
      %1125 = vmatprep.subr.bf16.mxu0 0
      %1126 = vmatpush1.bf16.msra.mxu0 0
      %1127 = vmatprep.subr.bf16.mxu0 0
      %1128 = vmatpush1.bf16.msra.mxu0 0
      %1129 = vmatprep.subr.bf16.mxu0 0
      %1130 = vmatpush1.bf16.msra.mxu0 0
      %1131 = vmatprep.subr.bf16.mxu0 0
      %1132 = vmatpush1.bf16.msra.mxu0 0
      %1133 = vmatprep.subr.bf16.mxu0 0
      %1134 = vmatpush1.bf16.msra.mxu0 0
      %1135 = vmatprep.subr.bf16.mxu0 0
      %1136 = vmatpush1.bf16.msra.mxu0 0
      %1137 = vmatprep.subr.bf16.mxu0 0
      %1138 = vmatpush1.bf16.msra.mxu0 0
      %1139 = vmatprep.subr.bf16.mxu0 0
      %1140 = vmatpush1.bf16.msra.mxu0 0
      %1141 = vmatprep.subr.bf16.mxu0 0
      %1142 = vmatpush1.bf16.msra.mxu0 0
      %1143 = vmatprep.subr.bf16.mxu0 0
      %1144 = vmatpush1.bf16.msra.mxu0 0
      %1145 = vmatprep.subr.bf16.mxu0 0
      %1146 = vmatpush1.bf16.msra.mxu0 0
      %1147 = vmatprep.subr.bf16.mxu0 0
      %1148 = vmatpush1.bf16.msra.mxu0 0
      %1149 = vmatprep.mubr.bf16.mxu0 0
      %1150 = vmatmul.mubr.bf16.gmra.mrb[0].mxu0 %v1067
      %v1151 = vpop.f32.mrb[0].mxu0
      %v1152 = vadd.f32 0.0, %v1151
      %v1153 = vpop.f32.mrb[0].mxu0
      %v1154 = vpop.f32.mrb[0].mxu0
      %v1155 = vadd.f32 0.0, %v1154
      %v1156 = vpop.f32.mrb[0].mxu0
      %1157 = vmatprep.mubr.bf16.mxu0 0
      %1158 = vmatmul.mubr.bf16.gmra.mrb[0].mxu0 %v1070
      %v1159 = vpop.f32.mrb[0].mxu0
      %v1160 = vadd.f32 0.0, %v1159
      %v1161 = vpop.f32.mrb[0].mxu0
      %v1162 = vpop.f32.mrb[0].mxu0
      %v1163 = vadd.f32 0.0, %v1162
      %v1164 = vpop.f32.mrb[0].mxu0
      %1165 = vmatprep.mubr.bf16.mxu0 0
      %1166 = vmatmul.mubr.bf16.gmra.mrb[0].mxu0 %v1073
      %v1167 = vpop.f32.mrb[0].mxu0
      %v1168 = vadd.f32 0.0, %v1167
      %v1169 = vpop.f32.mrb[0].mxu0
      %v1170 = vpop.f32.mrb[0].mxu0
      %v1171 = vadd.f32 0.0, %v1170
      %v1172 = vpop.f32.mrb[0].mxu0
      %1173 = vmatprep.mubr.bf16.mxu0 0
      %1174 = vmatmul.mubr.bf16.gmra.mrb[0].mxu0 %v1076
      %v1175 = vpop.f32.mrb[0].mxu0
      %v1176 = vadd.f32 0.0, %v1175
      %v1177 = vpop.f32.mrb[0].mxu0
      %v1178 = vpop.f32.mrb[0].mxu0
      %v1179 = vadd.f32 0.0, %v1178
      %v1180 = vpop.f32.mrb[0].mxu0
      %1181 = vmatprep.mubr.bf16.mxu0 0
      %1182 = vmatmul.mubr.bf16.gmra.mrb[0].mxu0 %v1079
      %v1183 = vpop.f32.mrb[0].mxu0
      %v1184 = vadd.f32 0.0, %v1183
      %v1185 = vpop.f32.mrb[0].mxu0
      %v1186 = vpop.f32.mrb[0].mxu0
      %v1187 = vadd.f32 0.0, %v1186
      %v1188 = vpop.f32.mrb[0].mxu0
      %1189 = vmatprep.mubr.bf16.mxu0 0
      %1190 = vmatmul.mubr.bf16.gmra.mrb[0].mxu0 %v1082
      %v1191 = vpop.f32.mrb[0].mxu0
      %v1192 = vadd.f32 0.0, %v1191
      %v1193 = vpop.f32.mrb[0].mxu0
      %v1194 = vpop.f32.mrb[0].mxu0
      %v1195 = vadd.f32 0.0, %v1194
      %v1196 = vpop.f32.mrb[0].mxu0
      %1197 = vmatprep.mubr.bf16.mxu0 0
      %1198 = vmatmul.mubr.bf16.gmra.mrb[0].mxu0 %v1085
      %v1199 = vpop.f32.mrb[0].mxu0
      %v1200 = vadd.f32 0.0, %v1199
      %v1201 = vpop.f32.mrb[0].mxu0
      %v1202 = vpop.f32.mrb[0].mxu0
      %v1203 = vadd.f32 0.0, %v1202
      %v1204 = vpop.f32.mrb[0].mxu0
      %1205 = vmatprep.mubr.bf16.mxu0 0
      %1206 = vmatmul.mubr.bf16.gmra.mrb[0].mxu0 %v1088
      %v1207 = vpop.f32.mrb[0].mxu0
      %v1208 = vadd.f32 0.0, %v1207
      %v1209 = vpop.f32.mrb[0].mxu0
      %v1210 = vpop.f32.mrb[0].mxu0
      %v1211 = vadd.f32 0.0, %v1210
      %v1212 = vpop.f32.mrb[0].mxu0
      %1213 = vmatprep.mubr.bf16.mxu0 0
      %1214 = vmatmul.mubr.bf16.gmra.mrb[0].mxu0 %v1091
      %v1215 = vpop.f32.mrb[0].mxu0
      %v1216 = vadd.f32 0.0, %v1215
      %v1217 = vpop.f32.mrb[0].mxu0
      %v1218 = vpop.f32.mrb[0].mxu0
      %v1219 = vadd.f32 0.0, %v1218
      %v1220 = vpop.f32.mrb[0].mxu0
      %1221 = vmatprep.mubr.bf16.mxu0 0
      %1222 = vmatmul.mubr.bf16.gmra.mrb[0].mxu0 %v1094
      %v1223 = vpop.f32.mrb[0].mxu0
      %v1224 = vadd.f32 0.0, %v1223
      %v1225 = vpop.f32.mrb[0].mxu0
      %v1226 = vpop.f32.mrb[0].mxu0
      %v1227 = vadd.f32 0.0, %v1226
      %v1228 = vpop.f32.mrb[0].mxu0
      %1229 = vmatprep.mubr.bf16.mxu0 0
      %1230 = vmatmul.mubr.bf16.gmra.mrb[0].mxu0 %v1097
      %v1231 = vpop.f32.mrb[0].mxu0
      %v1232 = vadd.f32 0.0, %v1231
      %v1233 = vpop.f32.mrb[0].mxu0
      %v1234 = vpop.f32.mrb[0].mxu0
      %v1235 = vadd.f32 0.0, %v1234
      %v1236 = vpop.f32.mrb[0].mxu0
      %1237 = vmatprep.mubr.bf16.mxu0 0
      %1238 = vmatmul.mubr.bf16.gmra.mrb[0].mxu0 %v1100
      %v1239 = vpop.f32.mrb[0].mxu0
      %v1240 = vadd.f32 0.0, %v1239
      %v1241 = vpop.f32.mrb[0].mxu0
      %v1242 = vpop.f32.mrb[0].mxu0
      %v1243 = vadd.f32 0.0, %v1242
      %v1244 = vpop.f32.mrb[0].mxu0
      %1245 = vmatprep.mubr.bf16.mxu0 0
      %1246 = vmatmul.mubr.bf16.gmra.mrb[0].mxu0 %v1103
      %v1247 = vpop.f32.mrb[0].mxu0
      %v1248 = vadd.f32 0.0, %v1247
      %v1249 = vpop.f32.mrb[0].mxu0
      %v1250 = vpop.f32.mrb[0].mxu0
      %v1251 = vadd.f32 0.0, %v1250
      %v1252 = vpop.f32.mrb[0].mxu0
      %1253 = vmatprep.mubr.bf16.mxu0 0
      %1254 = vmatmul.mubr.bf16.gmra.mrb[0].mxu0 %v1106
      %v1255 = vpop.f32.mrb[0].mxu0
      %v1256 = vadd.f32 0.0, %v1255
      %v1257 = vpop.f32.mrb[0].mxu0
      %v1258 = vpop.f32.mrb[0].mxu0
      %v1259 = vadd.f32 0.0, %v1258
      %v1260 = vpop.f32.mrb[0].mxu0
      %1261 = vmatprep.mubr.bf16.mxu0 0
      %1262 = vmatmul.mubr.bf16.gmra.mrb[0].mxu0 %v1109
      %v1263 = vpop.f32.mrb[0].mxu0
      %v1264 = vadd.f32 0.0, %v1263
      %v1265 = vpop.f32.mrb[0].mxu0
      %v1266 = vpop.f32.mrb[0].mxu0
      %v1267 = vadd.f32 0.0, %v1266
      %v1268 = vpop.f32.mrb[0].mxu0
      %1269 = vmatprep.mubr.bf16.mxu0 0
      %1270 = vmatmul.mubr.bf16.gmra.mrb[0].mxu0 %v1112
      %v1271 = vpop.f32.mrb[0].mxu0
      %v1272 = vadd.f32 0.0, %v1271
      %v1273 = vpop.f32.mrb[0].mxu0
      %v1274 = vpop.f32.mrb[0].mxu0
      %v1275 = vadd.f32 0.0, %v1274
      %v1276 = vpop.f32.mrb[0].mxu0
      %1277 = vdwg.mxu0
      %v1279 = vsel %vm442, %v999, 0
      %v1282 = vsel %vm442, %v1000, 0
      %v1285 = vsel %vm442, %v1001, 0
      %v1288 = vsel %vm442, %v1002, 0
      %v1291 = vsel %vm442, %v1003, 0
      %v1294 = vsel %vm442, %v1004, 0
      %v1297 = vsel %vm442, %v1005, 0
      %v1300 = vsel %vm442, %v1006, 0
      %v1303 = vsel %vm442, %v1007, 0
      %v1306 = vsel %vm442, %v1008, 0
      %v1309 = vsel %vm442, %v1009, 0
      %v1312 = vsel %vm442, %v1010, 0
      %v1315 = vsel %vm442, %v1011, 0
      %v1318 = vsel %vm442, %v1012, 0
      %v1321 = vsel %vm442, %v1013, 0
      %v1324 = vsel %vm442, %v1014, 0
      %v1327 = vsel %vm659, %v1015, 0
      %1329 = vmatprep.subr.bf16.mxu0 0
      %1330 = vmatpush1.bf16.msra.mxu0 %v1327
      %1331 = vmatprep.subr.bf16.mxu0 0
      %1332 = vmatpush1.bf16.msra.mxu0 0
      %1333 = vmatprep.subr.bf16.mxu0 0
      %1334 = vmatpush1.bf16.msra.mxu0 0
      %1335 = vmatprep.subr.bf16.mxu0 0
      %1336 = vmatpush1.bf16.msra.mxu0 0
      %1337 = vmatprep.subr.bf16.mxu0 0
      %1338 = vmatpush1.bf16.msra.mxu0 0
      %1339 = vmatprep.subr.bf16.mxu0 0
      %1340 = vmatpush1.bf16.msra.mxu0 0
      %1341 = vmatprep.subr.bf16.mxu0 0
      %1342 = vmatpush1.bf16.msra.mxu0 0
      %1343 = vmatprep.subr.bf16.mxu0 0
      %1344 = vmatpush1.bf16.msra.mxu0 0
      %1345 = vmatprep.subr.bf16.mxu0 0
      %1346 = vmatpush1.bf16.msra.mxu0 0
      %1347 = vmatprep.subr.bf16.mxu0 0
      %1348 = vmatpush1.bf16.msra.mxu0 0
      %1349 = vmatprep.subr.bf16.mxu0 0
      %1350 = vmatpush1.bf16.msra.mxu0 0
      %1351 = vmatprep.subr.bf16.mxu0 0
      %1352 = vmatpush1.bf16.msra.mxu0 0
      %1353 = vmatprep.subr.bf16.mxu0 0
      %1354 = vmatpush1.bf16.msra.mxu0 0
      %1355 = vmatprep.subr.bf16.mxu0 0
      %1356 = vmatpush1.bf16.msra.mxu0 0
      %1357 = vmatprep.subr.bf16.mxu0 0
      %1358 = vmatpush1.bf16.msra.mxu0 0
      %1359 = vmatprep.subr.bf16.mxu0 0
      %1360 = vmatpush1.bf16.msra.mxu0 0
      %1361 = vmatprep.mubr.bf16.mxu0 0
      %1362 = vmatmul.mubr.bf16.gmra.mrb[0].mxu0 %v1279
      %v1363 = vpop.f32.mrb[0].mxu0
      %v1364 = vadd.f32 %v1152, %v1363
      %v1365 = vpop.f32.mrb[0].mxu0
      %v1366 = vpop.f32.mrb[0].mxu0
      %v1367 = vadd.f32 %v1155, %v1366
      %v1368 = vpop.f32.mrb[0].mxu0
      %1369 = vmatprep.mubr.bf16.mxu0 0
      %1370 = vmatmul.mubr.bf16.gmra.mrb[0].mxu0 %v1282
      %v1371 = vpop.f32.mrb[0].mxu0
      %v1372 = vadd.f32 %v1160, %v1371
      %v1373 = vpop.f32.mrb[0].mxu0
      %v1374 = vpop.f32.mrb[0].mxu0
      %v1375 = vadd.f32 %v1163, %v1374
      %v1376 = vpop.f32.mrb[0].mxu0
      %1377 = vmatprep.mubr.bf16.mxu0 0
      %1378 = vmatmul.mubr.bf16.gmra.mrb[0].mxu0 %v1285
      %v1379 = vpop.f32.mrb[0].mxu0
      %v1380 = vadd.f32 %v1168, %v1379
      %v1381 = vpop.f32.mrb[0].mxu0
      %v1382 = vpop.f32.mrb[0].mxu0
      %v1383 = vadd.f32 %v1171, %v1382
      %v1384 = vpop.f32.mrb[0].mxu0
      %1385 = vmatprep.mubr.bf16.mxu0 0
      %1386 = vmatmul.mubr.bf16.gmra.mrb[0].mxu0 %v1288
      %v1387 = vpop.f32.mrb[0].mxu0
      %v1388 = vadd.f32 %v1176, %v1387
      %v1389 = vpop.f32.mrb[0].mxu0
      %v1390 = vpop.f32.mrb[0].mxu0
      %v1391 = vadd.f32 %v1179, %v1390
      %v1392 = vpop.f32.mrb[0].mxu0
      %1393 = vmatprep.mubr.bf16.mxu0 0
      %1394 = vmatmul.mubr.bf16.gmra.mrb[0].mxu0 %v1291
      %v1395 = vpop.f32.mrb[0].mxu0
      %v1396 = vadd.f32 %v1184, %v1395
      %v1397 = vpop.f32.mrb[0].mxu0
      %v1398 = vpop.f32.mrb[0].mxu0
      %v1399 = vadd.f32 %v1187, %v1398
      %v1400 = vpop.f32.mrb[0].mxu0
      %1401 = vmatprep.mubr.bf16.mxu0 0
      %1402 = vmatmul.mubr.bf16.gmra.mrb[0].mxu0 %v1294
      %v1403 = vpop.f32.mrb[0].mxu0
      %v1404 = vadd.f32 %v1192, %v1403
      %v1405 = vpop.f32.mrb[0].mxu0
      %v1406 = vpop.f32.mrb[0].mxu0
      %v1407 = vadd.f32 %v1195, %v1406
      %v1408 = vpop.f32.mrb[0].mxu0
      %1409 = vmatprep.mubr.bf16.mxu0 0
      %1410 = vmatmul.mubr.bf16.gmra.mrb[0].mxu0 %v1297
      %v1411 = vpop.f32.mrb[0].mxu0
      %v1412 = vadd.f32 %v1200, %v1411
      %v1413 = vpop.f32.mrb[0].mxu0
      %v1414 = vpop.f32.mrb[0].mxu0
      %v1415 = vadd.f32 %v1203, %v1414
      %v1416 = vpop.f32.mrb[0].mxu0
      %1417 = vmatprep.mubr.bf16.mxu0 0
      %1418 = vmatmul.mubr.bf16.gmra.mrb[0].mxu0 %v1300
      %v1419 = vpop.f32.mrb[0].mxu0
      %v1420 = vadd.f32 %v1208, %v1419
      %v1421 = vpop.f32.mrb[0].mxu0
      %v1422 = vpop.f32.mrb[0].mxu0
      %v1423 = vadd.f32 %v1211, %v1422
      %v1424 = vpop.f32.mrb[0].mxu0
      %1425 = vmatprep.mubr.bf16.mxu0 0
      %1426 = vmatmul.mubr.bf16.gmra.mrb[0].mxu0 %v1303
      %v1427 = vpop.f32.mrb[0].mxu0
      %v1428 = vadd.f32 %v1216, %v1427
      %v1429 = vpop.f32.mrb[0].mxu0
      %v1430 = vpop.f32.mrb[0].mxu0
      %v1431 = vadd.f32 %v1219, %v1430
      %v1432 = vpop.f32.mrb[0].mxu0
      %1433 = vmatprep.mubr.bf16.mxu0 0
      %1434 = vmatmul.mubr.bf16.gmra.mrb[0].mxu0 %v1306
      %v1435 = vpop.f32.mrb[0].mxu0
      %v1436 = vadd.f32 %v1224, %v1435
      %v1437 = vpop.f32.mrb[0].mxu0
      %v1438 = vpop.f32.mrb[0].mxu0
      %v1439 = vadd.f32 %v1227, %v1438
      %v1440 = vpop.f32.mrb[0].mxu0
      %1441 = vmatprep.mubr.bf16.mxu0 0
      %1442 = vmatmul.mubr.bf16.gmra.mrb[0].mxu0 %v1309
      %v1443 = vpop.f32.mrb[0].mxu0
      %v1444 = vadd.f32 %v1232, %v1443
      %v1445 = vpop.f32.mrb[0].mxu0
      %v1446 = vpop.f32.mrb[0].mxu0
      %v1447 = vadd.f32 %v1235, %v1446
      %v1448 = vpop.f32.mrb[0].mxu0
      %1449 = vmatprep.mubr.bf16.mxu0 0
      %1450 = vmatmul.mubr.bf16.gmra.mrb[0].mxu0 %v1312
      %v1451 = vpop.f32.mrb[0].mxu0
      %v1452 = vadd.f32 %v1240, %v1451
      %v1453 = vpop.f32.mrb[0].mxu0
      %v1454 = vpop.f32.mrb[0].mxu0
      %v1455 = vadd.f32 %v1243, %v1454
      %v1456 = vpop.f32.mrb[0].mxu0
      %1457 = vmatprep.mubr.bf16.mxu0 0
      %1458 = vmatmul.mubr.bf16.gmra.mrb[0].mxu0 %v1315
      %v1459 = vpop.f32.mrb[0].mxu0
      %v1460 = vadd.f32 %v1248, %v1459
      %v1461 = vpop.f32.mrb[0].mxu0
      %v1462 = vpop.f32.mrb[0].mxu0
      %v1463 = vadd.f32 %v1251, %v1462
      %v1464 = vpop.f32.mrb[0].mxu0
      %1465 = vmatprep.mubr.bf16.mxu0 0
      %1466 = vmatmul.mubr.bf16.gmra.mrb[0].mxu0 %v1318
      %v1467 = vpop.f32.mrb[0].mxu0
      %v1468 = vadd.f32 %v1256, %v1467
      %v1469 = vpop.f32.mrb[0].mxu0
      %v1470 = vpop.f32.mrb[0].mxu0
      %v1471 = vadd.f32 %v1259, %v1470
      %v1472 = vpop.f32.mrb[0].mxu0
      %1473 = vmatprep.mubr.bf16.mxu0 0
      %1474 = vmatmul.mubr.bf16.gmra.mrb[0].mxu0 %v1321
      %v1475 = vpop.f32.mrb[0].mxu0
      %v1476 = vadd.f32 %v1264, %v1475
      %v1477 = vpop.f32.mrb[0].mxu0
      %v1478 = vpop.f32.mrb[0].mxu0
      %v1479 = vadd.f32 %v1267, %v1478
      %v1480 = vpop.f32.mrb[0].mxu0
      %1481 = vmatprep.mubr.bf16.mxu0 0
      %1482 = vmatmul.mubr.bf16.gmra.mrb[0].mxu0 %v1324
      %v1483 = vpop.f32.mrb[0].mxu0
      %v1484 = vadd.f32 %v1272, %v1483
      %v1485 = vpop.f32.mrb[0].mxu0
      %v1486 = vpop.f32.mrb[0].mxu0
      %v1487 = vadd.f32 %v1275, %v1486
      %v1488 = vpop.f32.mrb[0].mxu0
      %1489 = vdwg.mxu0
      %v1490 = vld [vmem:[#allocation2 + $0x2] sm:$0xff]
      %v1491 = vld [vmem:[#allocation2 + $0xa] sm:$0xff]
      %v1492 = vld [vmem:[#allocation2 + $0x1a] sm:$0xff]
      %v1493 = vld [vmem:[#allocation2 + $0x22] sm:$0xff]
      %v1494 = vld [vmem:[#allocation2 + $0x32] sm:$0xff]
      %v1495 = vld [vmem:[#allocation2 + $0x3a] sm:$0xff]
      %v1496 = vld [vmem:[#allocation2 + $0x4a] sm:$0xff]
      %v1497 = vld [vmem:[#allocation2 + $0x52] sm:$0xff]
      %v1498 = vld [vmem:[#allocation2 + $0x62] sm:$0xff]
      %v1499 = vld [vmem:[#allocation2 + $0x6a] sm:$0xff]
      %v1500 = vld [vmem:[#allocation2 + $0x7a] sm:$0xff]
      %v1501 = vld [vmem:[#allocation2 + $0x82] sm:$0xff]
      %v1502 = vld [vmem:[#allocation2 + $0x92] sm:$0xff]
      %v1503 = vld [vmem:[#allocation2 + $0x9a] sm:$0xff]
      %v1504 = vld [vmem:[#allocation2 + $0xaa] sm:$0xff]
      %v1505 = vld [vmem:[#allocation2 + $0xb2] sm:$0xff]
      %v1506 = vld [vmem:[#allocation2 + $0xc2] sm:$0xff]
      %v1507 = vld [vmem:[#allocation2 + $0xca] sm:$0xff]
      %v1508 = vld [vmem:[#allocation2 + $0xda] sm:$0xff]
      %v1509 = vld [vmem:[#allocation2 + $0xe2] sm:$0xff]
      %v1510 = vld [vmem:[#allocation2 + $0xf2] sm:$0xff]
      %v1511 = vld [vmem:[#allocation2 + $0xfa] sm:$0xff]
      %v1512 = vld [vmem:[#allocation2 + $0x10a] sm:$0xff]
      %v1513 = vld [vmem:[#allocation2 + $0x112] sm:$0xff]
      %v1514 = vld [vmem:[#allocation2 + $0x122] sm:$0xff]
      %v1515 = vld [vmem:[#allocation2 + $0x12a] sm:$0xff]
      %v1516 = vld [vmem:[#allocation2 + $0x13a] sm:$0xff]
      %v1517 = vld [vmem:[#allocation2 + $0x142] sm:$0xff]
      %v1518 = vld [vmem:[#allocation2 + $0x152] sm:$0xff]
      %v1519 = vld [vmem:[#allocation2 + $0x15a] sm:$0xff]
      %v1520 = vld [vmem:[#allocation2 + $0x16a] sm:$0xff]
      %v1521 = vld [vmem:[#allocation2 + $0x172] sm:$0xff]
      %v1522 = vpack.c.bf16 %v1491, %v1490
      %v1523 = vpack.c.bf16 %v1493, %v1492
      %v1524 = vpack.c.bf16 %v1495, %v1494
      %v1525 = vpack.c.bf16 %v1497, %v1496
      %v1526 = vpack.c.bf16 %v1499, %v1498
      %v1527 = vpack.c.bf16 %v1501, %v1500
      %v1528 = vpack.c.bf16 %v1503, %v1502
      %v1529 = vpack.c.bf16 %v1505, %v1504
      %v1530 = vpack.c.bf16 %v1507, %v1506
      %v1531 = vpack.c.bf16 %v1509, %v1508
      %v1532 = vpack.c.bf16 %v1511, %v1510
      %v1533 = vpack.c.bf16 %v1513, %v1512
      %v1534 = vpack.c.bf16 %v1515, %v1514
      %v1535 = vpack.c.bf16 %v1517, %v1516
      %v1536 = vpack.c.bf16 %v1519, %v1518
      %v1537 = vpack.c.bf16 %v1521, %v1520
      %s1538 = scalar_lea.vmem %s4, 4
      %v1539 = vld [vmem:[%s1538] sm:$0x3]
      %v1541 = vsel %vm442, %v1522, 0
      %v1544 = vsel %vm442, %v1523, 0
      %v1547 = vsel %vm442, %v1524, 0
      %v1550 = vsel %vm442, %v1525, 0
      %v1553 = vsel %vm442, %v1526, 0
      %v1556 = vsel %vm442, %v1527, 0
      %v1559 = vsel %vm442, %v1528, 0
      %v1562 = vsel %vm442, %v1529, 0
      %v1565 = vsel %vm442, %v1530, 0
      %v1568 = vsel %vm442, %v1531, 0
      %v1571 = vsel %vm442, %v1532, 0
      %v1574 = vsel %vm442, %v1533, 0
      %v1577 = vsel %vm442, %v1534, 0
      %v1580 = vsel %vm442, %v1535, 0
      %v1583 = vsel %vm442, %v1536, 0
      %v1586 = vsel %vm442, %v1537, 0
      %v1589 = vsel %vm659, %v1539, 0
      %1591 = vmatprep.subr.bf16.mxu0 0
      %1592 = vmatpush1.bf16.msra.mxu0 %v1589
      %1593 = vmatprep.subr.bf16.mxu0 0
      %1594 = vmatpush1.bf16.msra.mxu0 0
      %1595 = vmatprep.subr.bf16.mxu0 0
      %1596 = vmatpush1.bf16.msra.mxu0 0
      %1597 = vmatprep.subr.bf16.mxu0 0
      %1598 = vmatpush1.bf16.msra.mxu0 0
      %1599 = vmatprep.subr.bf16.mxu0 0
      %1600 = vmatpush1.bf16.msra.mxu0 0
      %1601 = vmatprep.subr.bf16.mxu0 0
      %1602 = vmatpush1.bf16.msra.mxu0 0
      %1603 = vmatprep.subr.bf16.mxu0 0
      %1604 = vmatpush1.bf16.msra.mxu0 0
      %1605 = vmatprep.subr.bf16.mxu0 0
      %1606 = vmatpush1.bf16.msra.mxu0 0
      %1607 = vmatprep.subr.bf16.mxu0 0
      %1608 = vmatpush1.bf16.msra.mxu0 0
      %1609 = vmatprep.subr.bf16.mxu0 0
      %1610 = vmatpush1.bf16.msra.mxu0 0
      %1611 = vmatprep.subr.bf16.mxu0 0
      %1612 = vmatpush1.bf16.msra.mxu0 0
      %1613 = vmatprep.subr.bf16.mxu0 0
      %1614 = vmatpush1.bf16.msra.mxu0 0
      %1615 = vmatprep.subr.bf16.mxu0 0
      %1616 = vmatpush1.bf16.msra.mxu0 0
      %1617 = vmatprep.subr.bf16.mxu0 0
      %1618 = vmatpush1.bf16.msra.mxu0 0
      %1619 = vmatprep.subr.bf16.mxu0 0
      %1620 = vmatpush1.bf16.msra.mxu0 0
      %1621 = vmatprep.subr.bf16.mxu0 0
      %1622 = vmatpush1.bf16.msra.mxu0 0
      %1623 = vmatprep.mubr.bf16.mxu0 0
      %1624 = vmatmul.mubr.bf16.gmra.mrb[0].mxu0 %v1541
      %v1625 = vpop.f32.mrb[0].mxu0
      %v1626 = vadd.f32 0.0, %v1625
      %v1627 = vpop.f32.mrb[0].mxu0
      %v1628 = vpop.f32.mrb[0].mxu0
      %v1629 = vadd.f32 0.0, %v1628
      %v1630 = vpop.f32.mrb[0].mxu0
      %1631 = vmatprep.mubr.bf16.mxu0 0
      %1632 = vmatmul.mubr.bf16.gmra.mrb[0].mxu0 %v1544
      %v1633 = vpop.f32.mrb[0].mxu0
      %v1634 = vadd.f32 0.0, %v1633
      %v1635 = vpop.f32.mrb[0].mxu0
      %v1636 = vpop.f32.mrb[0].mxu0
      %v1637 = vadd.f32 0.0, %v1636
      %v1638 = vpop.f32.mrb[0].mxu0
      %1639 = vmatprep.mubr.bf16.mxu0 0
      %1640 = vmatmul.mubr.bf16.gmra.mrb[0].mxu0 %v1547
      %v1641 = vpop.f32.mrb[0].mxu0
      %v1642 = vadd.f32 0.0, %v1641
      %v1643 = vpop.f32.mrb[0].mxu0
      %v1644 = vpop.f32.mrb[0].mxu0
      %v1645 = vadd.f32 0.0, %v1644
      %v1646 = vpop.f32.mrb[0].mxu0
      %1647 = vmatprep.mubr.bf16.mxu0 0
      %1648 = vmatmul.mubr.bf16.gmra.mrb[0].mxu0 %v1550
      %v1649 = vpop.f32.mrb[0].mxu0
      %v1650 = vadd.f32 0.0, %v1649
      %v1651 = vpop.f32.mrb[0].mxu0
      %v1652 = vpop.f32.mrb[0].mxu0
      %v1653 = vadd.f32 0.0, %v1652
      %v1654 = vpop.f32.mrb[0].mxu0
      %1655 = vmatprep.mubr.bf16.mxu0 0
      %1656 = vmatmul.mubr.bf16.gmra.mrb[0].mxu0 %v1553
      %v1657 = vpop.f32.mrb[0].mxu0
      %v1658 = vadd.f32 0.0, %v1657
      %v1659 = vpop.f32.mrb[0].mxu0
      %v1660 = vpop.f32.mrb[0].mxu0
      %v1661 = vadd.f32 0.0, %v1660
      %v1662 = vpop.f32.mrb[0].mxu0
      %1663 = vmatprep.mubr.bf16.mxu0 0
      %1664 = vmatmul.mubr.bf16.gmra.mrb[0].mxu0 %v1556
      %v1665 = vpop.f32.mrb[0].mxu0
      %v1666 = vadd.f32 0.0, %v1665
      %v1667 = vpop.f32.mrb[0].mxu0
      %v1668 = vpop.f32.mrb[0].mxu0
      %v1669 = vadd.f32 0.0, %v1668
      %v1670 = vpop.f32.mrb[0].mxu0
      %1671 = vmatprep.mubr.bf16.mxu0 0
      %1672 = vmatmul.mubr.bf16.gmra.mrb[0].mxu0 %v1559
      %v1673 = vpop.f32.mrb[0].mxu0
      %v1674 = vadd.f32 0.0, %v1673
      %v1675 = vpop.f32.mrb[0].mxu0
      %v1676 = vpop.f32.mrb[0].mxu0
      %v1677 = vadd.f32 0.0, %v1676
      %v1678 = vpop.f32.mrb[0].mxu0
      %1679 = vmatprep.mubr.bf16.mxu0 0
      %1680 = vmatmul.mubr.bf16.gmra.mrb[0].mxu0 %v1562
      %v1681 = vpop.f32.mrb[0].mxu0
      %v1682 = vadd.f32 0.0, %v1681
      %v1683 = vpop.f32.mrb[0].mxu0
      %v1684 = vpop.f32.mrb[0].mxu0
      %v1685 = vadd.f32 0.0, %v1684
      %v1686 = vpop.f32.mrb[0].mxu0
      %1687 = vmatprep.mubr.bf16.mxu0 0
      %1688 = vmatmul.mubr.bf16.gmra.mrb[0].mxu0 %v1565
      %v1689 = vpop.f32.mrb[0].mxu0
      %v1690 = vadd.f32 0.0, %v1689
      %v1691 = vpop.f32.mrb[0].mxu0
      %v1692 = vpop.f32.mrb[0].mxu0
      %v1693 = vadd.f32 0.0, %v1692
      %v1694 = vpop.f32.mrb[0].mxu0
      %1695 = vmatprep.mubr.bf16.mxu0 0
      %1696 = vmatmul.mubr.bf16.gmra.mrb[0].mxu0 %v1568
      %v1697 = vpop.f32.mrb[0].mxu0
      %v1698 = vadd.f32 0.0, %v1697
      %v1699 = vpop.f32.mrb[0].mxu0
      %v1700 = vpop.f32.mrb[0].mxu0
      %v1701 = vadd.f32 0.0, %v1700
      %v1702 = vpop.f32.mrb[0].mxu0
      %1703 = vmatprep.mubr.bf16.mxu0 0
      %1704 = vmatmul.mubr.bf16.gmra.mrb[0].mxu0 %v1571
      %v1705 = vpop.f32.mrb[0].mxu0
      %v1706 = vadd.f32 0.0, %v1705
      %v1707 = vpop.f32.mrb[0].mxu0
      %v1708 = vpop.f32.mrb[0].mxu0
      %v1709 = vadd.f32 0.0, %v1708
      %v1710 = vpop.f32.mrb[0].mxu0
      %1711 = vmatprep.mubr.bf16.mxu0 0
      %1712 = vmatmul.mubr.bf16.gmra.mrb[0].mxu0 %v1574
      %v1713 = vpop.f32.mrb[0].mxu0
      %v1714 = vadd.f32 0.0, %v1713
      %v1715 = vpop.f32.mrb[0].mxu0
      %v1716 = vpop.f32.mrb[0].mxu0
      %v1717 = vadd.f32 0.0, %v1716
      %v1718 = vpop.f32.mrb[0].mxu0
      %1719 = vmatprep.mubr.bf16.mxu0 0
      %1720 = vmatmul.mubr.bf16.gmra.mrb[0].mxu0 %v1577
      %v1721 = vpop.f32.mrb[0].mxu0
      %v1722 = vadd.f32 0.0, %v1721
      %v1723 = vpop.f32.mrb[0].mxu0
      %v1724 = vpop.f32.mrb[0].mxu0
      %v1725 = vadd.f32 0.0, %v1724
      %v1726 = vpop.f32.mrb[0].mxu0
      %1727 = vmatprep.mubr.bf16.mxu0 0
      %1728 = vmatmul.mubr.bf16.gmra.mrb[0].mxu0 %v1580
      %v1729 = vpop.f32.mrb[0].mxu0
      %v1730 = vadd.f32 0.0, %v1729
      %v1731 = vpop.f32.mrb[0].mxu0
      %v1732 = vpop.f32.mrb[0].mxu0
      %v1733 = vadd.f32 0.0, %v1732
      %v1734 = vpop.f32.mrb[0].mxu0
      %1735 = vmatprep.mubr.bf16.mxu0 0
      %1736 = vmatmul.mubr.bf16.gmra.mrb[0].mxu0 %v1583
      %v1737 = vpop.f32.mrb[0].mxu0
      %v1738 = vadd.f32 0.0, %v1737
      %v1739 = vpop.f32.mrb[0].mxu0
      %v1740 = vpop.f32.mrb[0].mxu0
      %v1741 = vadd.f32 0.0, %v1740
      %v1742 = vpop.f32.mrb[0].mxu0
      %1743 = vmatprep.mubr.bf16.mxu0 0
      %1744 = vmatmul.mubr.bf16.gmra.mrb[0].mxu0 %v1586
      %v1745 = vpop.f32.mrb[0].mxu0
      %v1746 = vadd.f32 0.0, %v1745
      %v1747 = vpop.f32.mrb[0].mxu0
      %v1748 = vpop.f32.mrb[0].mxu0
      %v1749 = vadd.f32 0.0, %v1748
      %v1750 = vpop.f32.mrb[0].mxu0
      %1751 = vdwg.mxu0
      %v1752 = vadd.f32 %v1364, %v1626
      %v1753 = vadd.f32 %v1367, %v1629
      %v1754 = vadd.f32 %v1372, %v1634
      %v1755 = vadd.f32 %v1375, %v1637
      %v1756 = vadd.f32 %v1380, %v1642
      %v1757 = vadd.f32 %v1383, %v1645
      %v1758 = vadd.f32 %v1388, %v1650
      %v1759 = vadd.f32 %v1391, %v1653
      %v1760 = vadd.f32 %v1396, %v1658
      %v1761 = vadd.f32 %v1399, %v1661
      %v1762 = vadd.f32 %v1404, %v1666
      %v1763 = vadd.f32 %v1407, %v1669
      %v1764 = vadd.f32 %v1412, %v1674
      %v1765 = vadd.f32 %v1415, %v1677
      %v1766 = vadd.f32 %v1420, %v1682
      %v1767 = vadd.f32 %v1423, %v1685
      %v1768 = vadd.f32 %v1428, %v1690
      %v1769 = vadd.f32 %v1431, %v1693
      %v1770 = vadd.f32 %v1436, %v1698
      %v1771 = vadd.f32 %v1439, %v1701
      %v1772 = vadd.f32 %v1444, %v1706
      %v1773 = vadd.f32 %v1447, %v1709
      %v1774 = vadd.f32 %v1452, %v1714
      %v1775 = vadd.f32 %v1455, %v1717
      %v1776 = vadd.f32 %v1460, %v1722
      %v1777 = vadd.f32 %v1463, %v1725
      %v1778 = vadd.f32 %v1468, %v1730
      %v1779 = vadd.f32 %v1471, %v1733
      %v1780 = vadd.f32 %v1476, %v1738
      %v1781 = vadd.f32 %v1479, %v1741
      %v1782 = vadd.f32 %v1484, %v1746
      %v1783 = vadd.f32 %v1487, %v1749
      %v1784 = vld [vmem:[%s934] sm:$0xff]
      %v1785 = vld [vmem:[%s934 + $0x8] sm:$0xff]
      %v1786 = vld [vmem:[%s934 + $0x18] sm:$0xff]
      %v1787 = vld [vmem:[%s934 + $0x20] sm:$0xff]
      %v1788 = vld [vmem:[%s934 + $0x30] sm:$0xff]
      %v1789 = vld [vmem:[%s934 + $0x38] sm:$0xff]
      %v1790 = vld [vmem:[%s934 + $0x48] sm:$0xff]
      %v1791 = vld [vmem:[%s934 + $0x50] sm:$0xff]
      %v1792 = vld [vmem:[%s934 + $0x60] sm:$0xff]
      %v1793 = vld [vmem:[%s934 + $0x68] sm:$0xff]
      %v1794 = vld [vmem:[%s934 + $0x78] sm:$0xff]
      %v1795 = vld [vmem:[%s934 + $0x80] sm:$0xff]
      %v1796 = vld [vmem:[%s934 + $0x90] sm:$0xff]
      %v1797 = vld [vmem:[%s934 + $0x98] sm:$0xff]
      %v1798 = vld [vmem:[%s934 + $0xa8] sm:$0xff]
      %v1799 = vld [vmem:[%s934 + $0xb0] sm:$0xff]
      %v1800 = vld [vmem:[%s934 + $0xc0] sm:$0xff]
      %v1801 = vld [vmem:[%s934 + $0xc8] sm:$0xff]
      %v1802 = vld [vmem:[%s934 + $0xd8] sm:$0xff]
      %v1803 = vld [vmem:[%s934 + $0xe0] sm:$0xff]
      %v1804 = vld [vmem:[%s934 + $0xf0] sm:$0xff]
      %v1805 = vld [vmem:[%s934 + $0xf8] sm:$0xff]
      %v1806 = vld [vmem:[%s934 + $0x108] sm:$0xff]
      %v1807 = vld [vmem:[%s934 + $0x110] sm:$0xff]
      %v1808 = vld [vmem:[%s934 + $0x120] sm:$0xff]
      %v1809 = vld [vmem:[%s934 + $0x128] sm:$0xff]
      %v1810 = vld [vmem:[%s934 + $0x138] sm:$0xff]
      %v1811 = vld [vmem:[%s934 + $0x140] sm:$0xff]
      %v1812 = vld [vmem:[%s934 + $0x150] sm:$0xff]
      %v1813 = vld [vmem:[%s934 + $0x158] sm:$0xff]
      %v1814 = vld [vmem:[%s934 + $0x168] sm:$0xff]
      %v1815 = vld [vmem:[%s934 + $0x170] sm:$0xff]
      %v1816 = vpack.c.bf16 %v1785, %v1784
      %v1817 = vpack.c.bf16 %v1787, %v1786
      %v1818 = vpack.c.bf16 %v1789, %v1788
      %v1819 = vpack.c.bf16 %v1791, %v1790
      %v1820 = vpack.c.bf16 %v1793, %v1792
      %v1821 = vpack.c.bf16 %v1795, %v1794
      %v1822 = vpack.c.bf16 %v1797, %v1796
      %v1823 = vpack.c.bf16 %v1799, %v1798
      %v1824 = vpack.c.bf16 %v1801, %v1800
      %v1825 = vpack.c.bf16 %v1803, %v1802
      %v1826 = vpack.c.bf16 %v1805, %v1804
      %v1827 = vpack.c.bf16 %v1807, %v1806
      %v1828 = vpack.c.bf16 %v1809, %v1808
      %v1829 = vpack.c.bf16 %v1811, %v1810
      %v1830 = vpack.c.bf16 %v1813, %v1812
      %v1831 = vpack.c.bf16 %v1815, %v1814
      %s1832 = scalar_lea.vmem %s4, 6
      %v1833 = vld [vmem:[%s1832] sm:$0x3]
      %v1835 = vsel %vm442, %v1816, 0
      %v1838 = vsel %vm442, %v1817, 0
      %v1841 = vsel %vm442, %v1818, 0
      %v1844 = vsel %vm442, %v1819, 0
      %v1847 = vsel %vm442, %v1820, 0
      %v1850 = vsel %vm442, %v1821, 0
      %v1853 = vsel %vm442, %v1822, 0
      %v1856 = vsel %vm442, %v1823, 0
      %v1859 = vsel %vm442, %v1824, 0
      %v1862 = vsel %vm442, %v1825, 0
      %v1865 = vsel %vm442, %v1826, 0
      %v1868 = vsel %vm442, %v1827, 0
      %v1871 = vsel %vm442, %v1828, 0
      %v1874 = vsel %vm442, %v1829, 0
      %v1877 = vsel %vm442, %v1830, 0
      %v1880 = vsel %vm442, %v1831, 0
      %v1883 = vsel %vm659, %v1833, 0
      %1885 = vmatprep.subr.bf16.mxu0 0
      %1886 = vmatpush1.bf16.msra.mxu0 %v1883
      %1887 = vmatprep.subr.bf16.mxu0 0
      %1888 = vmatpush1.bf16.msra.mxu0 0
      %1889 = vmatprep.subr.bf16.mxu0 0
      %1890 = vmatpush1.bf16.msra.mxu0 0
      %1891 = vmatprep.subr.bf16.mxu0 0
      %1892 = vmatpush1.bf16.msra.mxu0 0
      %1893 = vmatprep.subr.bf16.mxu0 0
      %1894 = vmatpush1.bf16.msra.mxu0 0
      %1895 = vmatprep.subr.bf16.mxu0 0
      %1896 = vmatpush1.bf16.msra.mxu0 0
      %1897 = vmatprep.subr.bf16.mxu0 0
      %1898 = vmatpush1.bf16.msra.mxu0 0
      %1899 = vmatprep.subr.bf16.mxu0 0
      %1900 = vmatpush1.bf16.msra.mxu0 0
      %1901 = vmatprep.subr.bf16.mxu0 0
      %1902 = vmatpush1.bf16.msra.mxu0 0
      %1903 = vmatprep.subr.bf16.mxu0 0
      %1904 = vmatpush1.bf16.msra.mxu0 0
      %1905 = vmatprep.subr.bf16.mxu0 0
      %1906 = vmatpush1.bf16.msra.mxu0 0
      %1907 = vmatprep.subr.bf16.mxu0 0
      %1908 = vmatpush1.bf16.msra.mxu0 0
      %1909 = vmatprep.subr.bf16.mxu0 0
      %1910 = vmatpush1.bf16.msra.mxu0 0
      %1911 = vmatprep.subr.bf16.mxu0 0
      %1912 = vmatpush1.bf16.msra.mxu0 0
      %1913 = vmatprep.subr.bf16.mxu0 0
      %1914 = vmatpush1.bf16.msra.mxu0 0
      %1915 = vmatprep.subr.bf16.mxu0 0
      %1916 = vmatpush1.bf16.msra.mxu0 0
      %1917 = vmatprep.mubr.bf16.mxu0 0
      %1918 = vmatmul.mubr.bf16.gmra.mrb[0].mxu0 %v1835
      %v1919 = vpop.f32.mrb[0].mxu0
      %v1920 = vadd.f32 0.0, %v1919
      %v1921 = vpop.f32.mrb[0].mxu0
      %v1922 = vpop.f32.mrb[0].mxu0
      %v1923 = vadd.f32 0.0, %v1922
      %v1924 = vpop.f32.mrb[0].mxu0
      %1925 = vmatprep.mubr.bf16.mxu0 0
      %1926 = vmatmul.mubr.bf16.gmra.mrb[0].mxu0 %v1838
      %v1927 = vpop.f32.mrb[0].mxu0
      %v1928 = vadd.f32 0.0, %v1927
      %v1929 = vpop.f32.mrb[0].mxu0
      %v1930 = vpop.f32.mrb[0].mxu0
      %v1931 = vadd.f32 0.0, %v1930
      %v1932 = vpop.f32.mrb[0].mxu0
      %1933 = vmatprep.mubr.bf16.mxu0 0
      %1934 = vmatmul.mubr.bf16.gmra.mrb[0].mxu0 %v1841
      %v1935 = vpop.f32.mrb[0].mxu0
      %v1936 = vadd.f32 0.0, %v1935
      %v1937 = vpop.f32.mrb[0].mxu0
      %v1938 = vpop.f32.mrb[0].mxu0
      %v1939 = vadd.f32 0.0, %v1938
      %v1940 = vpop.f32.mrb[0].mxu0
      %1941 = vmatprep.mubr.bf16.mxu0 0
      %1942 = vmatmul.mubr.bf16.gmra.mrb[0].mxu0 %v1844
      %v1943 = vpop.f32.mrb[0].mxu0
      %v1944 = vadd.f32 0.0, %v1943
      %v1945 = vpop.f32.mrb[0].mxu0
      %v1946 = vpop.f32.mrb[0].mxu0
      %v1947 = vadd.f32 0.0, %v1946
      %v1948 = vpop.f32.mrb[0].mxu0
      %1949 = vmatprep.mubr.bf16.mxu0 0
      %1950 = vmatmul.mubr.bf16.gmra.mrb[0].mxu0 %v1847
      %v1951 = vpop.f32.mrb[0].mxu0
      %v1952 = vadd.f32 0.0, %v1951
      %v1953 = vpop.f32.mrb[0].mxu0
      %v1954 = vpop.f32.mrb[0].mxu0
      %v1955 = vadd.f32 0.0, %v1954
      %v1956 = vpop.f32.mrb[0].mxu0
      %1957 = vmatprep.mubr.bf16.mxu0 0
      %1958 = vmatmul.mubr.bf16.gmra.mrb[0].mxu0 %v1850
      %v1959 = vpop.f32.mrb[0].mxu0
      %v1960 = vadd.f32 0.0, %v1959
      %v1961 = vpop.f32.mrb[0].mxu0
      %v1962 = vpop.f32.mrb[0].mxu0
      %v1963 = vadd.f32 0.0, %v1962
      %v1964 = vpop.f32.mrb[0].mxu0
      %1965 = vmatprep.mubr.bf16.mxu0 0
      %1966 = vmatmul.mubr.bf16.gmra.mrb[0].mxu0 %v1853
      %v1967 = vpop.f32.mrb[0].mxu0
      %v1968 = vadd.f32 0.0, %v1967
      %v1969 = vpop.f32.mrb[0].mxu0
      %v1970 = vpop.f32.mrb[0].mxu0
      %v1971 = vadd.f32 0.0, %v1970
      %v1972 = vpop.f32.mrb[0].mxu0
      %1973 = vmatprep.mubr.bf16.mxu0 0
      %1974 = vmatmul.mubr.bf16.gmra.mrb[0].mxu0 %v1856
      %v1975 = vpop.f32.mrb[0].mxu0
      %v1976 = vadd.f32 0.0, %v1975
      %v1977 = vpop.f32.mrb[0].mxu0
      %v1978 = vpop.f32.mrb[0].mxu0
      %v1979 = vadd.f32 0.0, %v1978
      %v1980 = vpop.f32.mrb[0].mxu0
      %1981 = vmatprep.mubr.bf16.mxu0 0
      %1982 = vmatmul.mubr.bf16.gmra.mrb[0].mxu0 %v1859
      %v1983 = vpop.f32.mrb[0].mxu0
      %v1984 = vadd.f32 0.0, %v1983
      %v1985 = vpop.f32.mrb[0].mxu0
      %v1986 = vpop.f32.mrb[0].mxu0
      %v1987 = vadd.f32 0.0, %v1986
      %v1988 = vpop.f32.mrb[0].mxu0
      %1989 = vmatprep.mubr.bf16.mxu0 0
      %1990 = vmatmul.mubr.bf16.gmra.mrb[0].mxu0 %v1862
      %v1991 = vpop.f32.mrb[0].mxu0
      %v1992 = vadd.f32 0.0, %v1991
      %v1993 = vpop.f32.mrb[0].mxu0
      %v1994 = vpop.f32.mrb[0].mxu0
      %v1995 = vadd.f32 0.0, %v1994
      %v1996 = vpop.f32.mrb[0].mxu0
      %1997 = vmatprep.mubr.bf16.mxu0 0
      %1998 = vmatmul.mubr.bf16.gmra.mrb[0].mxu0 %v1865
      %v1999 = vpop.f32.mrb[0].mxu0
      %v2000 = vadd.f32 0.0, %v1999
      %v2001 = vpop.f32.mrb[0].mxu0
      %v2002 = vpop.f32.mrb[0].mxu0
      %v2003 = vadd.f32 0.0, %v2002
      %v2004 = vpop.f32.mrb[0].mxu0
      %2005 = vmatprep.mubr.bf16.mxu0 0
      %2006 = vmatmul.mubr.bf16.gmra.mrb[0].mxu0 %v1868
      %v2007 = vpop.f32.mrb[0].mxu0
      %v2008 = vadd.f32 0.0, %v2007
      %v2009 = vpop.f32.mrb[0].mxu0
      %v2010 = vpop.f32.mrb[0].mxu0
      %v2011 = vadd.f32 0.0, %v2010
      %v2012 = vpop.f32.mrb[0].mxu0
      %2013 = vmatprep.mubr.bf16.mxu0 0
      %2014 = vmatmul.mubr.bf16.gmra.mrb[0].mxu0 %v1871
      %v2015 = vpop.f32.mrb[0].mxu0
      %v2016 = vadd.f32 0.0, %v2015
      %v2017 = vpop.f32.mrb[0].mxu0
      %v2018 = vpop.f32.mrb[0].mxu0
      %v2019 = vadd.f32 0.0, %v2018
      %v2020 = vpop.f32.mrb[0].mxu0
      %2021 = vmatprep.mubr.bf16.mxu0 0
      %2022 = vmatmul.mubr.bf16.gmra.mrb[0].mxu0 %v1874
      %v2023 = vpop.f32.mrb[0].mxu0
      %v2024 = vadd.f32 0.0, %v2023
      %v2025 = vpop.f32.mrb[0].mxu0
      %v2026 = vpop.f32.mrb[0].mxu0
      %v2027 = vadd.f32 0.0, %v2026
      %v2028 = vpop.f32.mrb[0].mxu0
      %2029 = vmatprep.mubr.bf16.mxu0 0
      %2030 = vmatmul.mubr.bf16.gmra.mrb[0].mxu0 %v1877
      %v2031 = vpop.f32.mrb[0].mxu0
      %v2032 = vadd.f32 0.0, %v2031
      %v2033 = vpop.f32.mrb[0].mxu0
      %v2034 = vpop.f32.mrb[0].mxu0
      %v2035 = vadd.f32 0.0, %v2034
      %v2036 = vpop.f32.mrb[0].mxu0
      %2037 = vmatprep.mubr.bf16.mxu0 0
      %2038 = vmatmul.mubr.bf16.gmra.mrb[0].mxu0 %v1880
      %v2039 = vpop.f32.mrb[0].mxu0
      %v2040 = vadd.f32 0.0, %v2039
      %v2041 = vpop.f32.mrb[0].mxu0
      %v2042 = vpop.f32.mrb[0].mxu0
      %v2043 = vadd.f32 0.0, %v2042
      %v2044 = vpop.f32.mrb[0].mxu0
      %2045 = vdwg.mxu0
      %v2046 = vadd.f32 %v1752, %v1920
      %v2047 = vadd.f32 %v1753, %v1923
      %v2048 = vadd.f32 %v1754, %v1928
      %v2049 = vadd.f32 %v1755, %v1931
      %v2050 = vadd.f32 %v1756, %v1936
      %v2051 = vadd.f32 %v1757, %v1939
      %v2052 = vadd.f32 %v1758, %v1944
      %v2053 = vadd.f32 %v1759, %v1947
      %v2054 = vadd.f32 %v1760, %v1952
      %v2055 = vadd.f32 %v1761, %v1955
      %v2056 = vadd.f32 %v1762, %v1960
      %v2057 = vadd.f32 %v1763, %v1963
      %v2058 = vadd.f32 %v1764, %v1968
      %v2059 = vadd.f32 %v1765, %v1971
      %v2060 = vadd.f32 %v1766, %v1976
      %v2061 = vadd.f32 %v1767, %v1979
      %v2062 = vadd.f32 %v1768, %v1984
      %v2063 = vadd.f32 %v1769, %v1987
      %v2064 = vadd.f32 %v1770, %v1992
      %v2065 = vadd.f32 %v1771, %v1995
      %v2066 = vadd.f32 %v1772, %v2000
      %v2067 = vadd.f32 %v1773, %v2003
      %v2068 = vadd.f32 %v1774, %v2008
      %v2069 = vadd.f32 %v1775, %v2011
      %v2070 = vadd.f32 %v1776, %v2016
      %v2071 = vadd.f32 %v1777, %v2019
      %v2072 = vadd.f32 %v1778, %v2024
      %v2073 = vadd.f32 %v1779, %v2027
      %v2074 = vadd.f32 %v1780, %v2032
      %v2075 = vadd.f32 %v1781, %v2035
      %v2076 = vadd.f32 %v1782, %v2040
      %v2077 = vadd.f32 %v1783, %v2043
      %v2078 = vld [vmem:[%s934 + $0x1] sm:$0xff]
      %v2079 = vld [vmem:[%s934 + $0x9] sm:$0xff]
      %v2080 = vld [vmem:[%s934 + $0x19] sm:$0xff]
      %v2081 = vld [vmem:[%s934 + $0x21] sm:$0xff]
      %v2082 = vld [vmem:[%s934 + $0x31] sm:$0xff]
      %v2083 = vld [vmem:[%s934 + $0x39] sm:$0xff]
      %v2084 = vld [vmem:[%s934 + $0x49] sm:$0xff]
      %v2085 = vld [vmem:[%s934 + $0x51] sm:$0xff]
      %v2086 = vld [vmem:[%s934 + $0x61] sm:$0xff]
      %v2087 = vld [vmem:[%s934 + $0x69] sm:$0xff]
      %v2088 = vld [vmem:[%s934 + $0x79] sm:$0xff]
      %v2089 = vld [vmem:[%s934 + $0x81] sm:$0xff]
      %v2090 = vld [vmem:[%s934 + $0x91] sm:$0xff]
      %v2091 = vld [vmem:[%s934 + $0x99] sm:$0xff]
      %v2092 = vld [vmem:[%s934 + $0xa9] sm:$0xff]
      %v2093 = vld [vmem:[%s934 + $0xb1] sm:$0xff]
      %v2094 = vld [vmem:[%s934 + $0xc1] sm:$0xff]
      %v2095 = vld [vmem:[%s934 + $0xc9] sm:$0xff]
      %v2096 = vld [vmem:[%s934 + $0xd9] sm:$0xff]
      %v2097 = vld [vmem:[%s934 + $0xe1] sm:$0xff]
      %v2098 = vld [vmem:[%s934 + $0xf1] sm:$0xff]
      %v2099 = vld [vmem:[%s934 + $0xf9] sm:$0xff]
      %v2100 = vld [vmem:[%s934 + $0x109] sm:$0xff]
      %v2101 = vld [vmem:[%s934 + $0x111] sm:$0xff]
      %v2102 = vld [vmem:[%s934 + $0x121] sm:$0xff]
      %v2103 = vld [vmem:[%s934 + $0x129] sm:$0xff]
      %v2104 = vld [vmem:[%s934 + $0x139] sm:$0xff]
      %v2105 = vld [vmem:[%s934 + $0x141] sm:$0xff]
      %v2106 = vld [vmem:[%s934 + $0x151] sm:$0xff]
      %v2107 = vld [vmem:[%s934 + $0x159] sm:$0xff]
      %v2108 = vld [vmem:[%s934 + $0x169] sm:$0xff]
      %v2109 = vld [vmem:[%s934 + $0x171] sm:$0xff]
      %v2110 = vpack.c.bf16 %v2079, %v2078
      %v2111 = vpack.c.bf16 %v2081, %v2080
      %v2112 = vpack.c.bf16 %v2083, %v2082
      %v2113 = vpack.c.bf16 %v2085, %v2084
      %v2114 = vpack.c.bf16 %v2087, %v2086
      %v2115 = vpack.c.bf16 %v2089, %v2088
      %v2116 = vpack.c.bf16 %v2091, %v2090
      %v2117 = vpack.c.bf16 %v2093, %v2092
      %v2118 = vpack.c.bf16 %v2095, %v2094
      %v2119 = vpack.c.bf16 %v2097, %v2096
      %v2120 = vpack.c.bf16 %v2099, %v2098
      %v2121 = vpack.c.bf16 %v2101, %v2100
      %v2122 = vpack.c.bf16 %v2103, %v2102
      %v2123 = vpack.c.bf16 %v2105, %v2104
      %v2124 = vpack.c.bf16 %v2107, %v2106
      %v2125 = vpack.c.bf16 %v2109, %v2108
      %s2126 = scalar_lea.vmem %s4, 8
      %v2127 = vld [vmem:[%s2126] sm:$0x3]
      %v2129 = vsel %vm442, %v2110, 0
      %v2132 = vsel %vm442, %v2111, 0
      %v2135 = vsel %vm442, %v2112, 0
      %v2138 = vsel %vm442, %v2113, 0
      %v2141 = vsel %vm442, %v2114, 0
      %v2144 = vsel %vm442, %v2115, 0
      %v2147 = vsel %vm442, %v2116, 0
      %v2150 = vsel %vm442, %v2117, 0
      %v2153 = vsel %vm442, %v2118, 0
      %v2156 = vsel %vm442, %v2119, 0
      %v2159 = vsel %vm442, %v2120, 0
      %v2162 = vsel %vm442, %v2121, 0
      %v2165 = vsel %vm442, %v2122, 0
      %v2168 = vsel %vm442, %v2123, 0
      %v2171 = vsel %vm442, %v2124, 0
      %v2174 = vsel %vm442, %v2125, 0
      %v2177 = vsel %vm659, %v2127, 0
      %2179 = vmatprep.subr.bf16.mxu0 0
      %2180 = vmatpush1.bf16.msra.mxu0 %v2177
      %2181 = vmatprep.subr.bf16.mxu0 0
      %2182 = vmatpush1.bf16.msra.mxu0 0
      %2183 = vmatprep.subr.bf16.mxu0 0
      %2184 = vmatpush1.bf16.msra.mxu0 0
      %2185 = vmatprep.subr.bf16.mxu0 0
      %2186 = vmatpush1.bf16.msra.mxu0 0
      %2187 = vmatprep.subr.bf16.mxu0 0
      %2188 = vmatpush1.bf16.msra.mxu0 0
      %2189 = vmatprep.subr.bf16.mxu0 0
      %2190 = vmatpush1.bf16.msra.mxu0 0
      %2191 = vmatprep.subr.bf16.mxu0 0
      %2192 = vmatpush1.bf16.msra.mxu0 0
      %2193 = vmatprep.subr.bf16.mxu0 0
      %2194 = vmatpush1.bf16.msra.mxu0 0
      %2195 = vmatprep.subr.bf16.mxu0 0
      %2196 = vmatpush1.bf16.msra.mxu0 0
      %2197 = vmatprep.subr.bf16.mxu0 0
      %2198 = vmatpush1.bf16.msra.mxu0 0
      %2199 = vmatprep.subr.bf16.mxu0 0
      %2200 = vmatpush1.bf16.msra.mxu0 0
      %2201 = vmatprep.subr.bf16.mxu0 0
      %2202 = vmatpush1.bf16.msra.mxu0 0
      %2203 = vmatprep.subr.bf16.mxu0 0
      %2204 = vmatpush1.bf16.msra.mxu0 0
      %2205 = vmatprep.subr.bf16.mxu0 0
      %2206 = vmatpush1.bf16.msra.mxu0 0
      %2207 = vmatprep.subr.bf16.mxu0 0
      %2208 = vmatpush1.bf16.msra.mxu0 0
      %2209 = vmatprep.subr.bf16.mxu0 0
      %2210 = vmatpush1.bf16.msra.mxu0 0
      %2211 = vmatprep.mubr.bf16.mxu0 0
      %2212 = vmatmul.mubr.bf16.gmra.mrb[0].mxu0 %v2129
      %v2213 = vpop.f32.mrb[0].mxu0
      %v2214 = vadd.f32 0.0, %v2213
      %v2215 = vpop.f32.mrb[0].mxu0
      %v2216 = vpop.f32.mrb[0].mxu0
      %v2217 = vadd.f32 0.0, %v2216
      %v2218 = vpop.f32.mrb[0].mxu0
      %2219 = vmatprep.mubr.bf16.mxu0 0
      %2220 = vmatmul.mubr.bf16.gmra.mrb[0].mxu0 %v2132
      %v2221 = vpop.f32.mrb[0].mxu0
      %v2222 = vadd.f32 0.0, %v2221
      %v2223 = vpop.f32.mrb[0].mxu0
      %v2224 = vpop.f32.mrb[0].mxu0
      %v2225 = vadd.f32 0.0, %v2224
      %v2226 = vpop.f32.mrb[0].mxu0
      %2227 = vmatprep.mubr.bf16.mxu0 0
      %2228 = vmatmul.mubr.bf16.gmra.mrb[0].mxu0 %v2135
      %v2229 = vpop.f32.mrb[0].mxu0
      %v2230 = vadd.f32 0.0, %v2229
      %v2231 = vpop.f32.mrb[0].mxu0
      %v2232 = vpop.f32.mrb[0].mxu0
      %v2233 = vadd.f32 0.0, %v2232
      %v2234 = vpop.f32.mrb[0].mxu0
      %2235 = vmatprep.mubr.bf16.mxu0 0
      %2236 = vmatmul.mubr.bf16.gmra.mrb[0].mxu0 %v2138
      %v2237 = vpop.f32.mrb[0].mxu0
      %v2238 = vadd.f32 0.0, %v2237
      %v2239 = vpop.f32.mrb[0].mxu0
      %v2240 = vpop.f32.mrb[0].mxu0
      %v2241 = vadd.f32 0.0, %v2240
      %v2242 = vpop.f32.mrb[0].mxu0
      %2243 = vmatprep.mubr.bf16.mxu0 0
      %2244 = vmatmul.mubr.bf16.gmra.mrb[0].mxu0 %v2141
      %v2245 = vpop.f32.mrb[0].mxu0
      %v2246 = vadd.f32 0.0, %v2245
      %v2247 = vpop.f32.mrb[0].mxu0
      %v2248 = vpop.f32.mrb[0].mxu0
      %v2249 = vadd.f32 0.0, %v2248
      %v2250 = vpop.f32.mrb[0].mxu0
      %2251 = vmatprep.mubr.bf16.mxu0 0
      %2252 = vmatmul.mubr.bf16.gmra.mrb[0].mxu0 %v2144
      %v2253 = vpop.f32.mrb[0].mxu0
      %v2254 = vadd.f32 0.0, %v2253
      %v2255 = vpop.f32.mrb[0].mxu0
      %v2256 = vpop.f32.mrb[0].mxu0
      %v2257 = vadd.f32 0.0, %v2256
      %v2258 = vpop.f32.mrb[0].mxu0
      %2259 = vmatprep.mubr.bf16.mxu0 0
      %2260 = vmatmul.mubr.bf16.gmra.mrb[0].mxu0 %v2147
      %v2261 = vpop.f32.mrb[0].mxu0
      %v2262 = vadd.f32 0.0, %v2261
      %v2263 = vpop.f32.mrb[0].mxu0
      %v2264 = vpop.f32.mrb[0].mxu0
      %v2265 = vadd.f32 0.0, %v2264
      %v2266 = vpop.f32.mrb[0].mxu0
      %2267 = vmatprep.mubr.bf16.mxu0 0
      %2268 = vmatmul.mubr.bf16.gmra.mrb[0].mxu0 %v2150
      %v2269 = vpop.f32.mrb[0].mxu0
      %v2270 = vadd.f32 0.0, %v2269
      %v2271 = vpop.f32.mrb[0].mxu0
      %v2272 = vpop.f32.mrb[0].mxu0
      %v2273 = vadd.f32 0.0, %v2272
      %v2274 = vpop.f32.mrb[0].mxu0
      %2275 = vmatprep.mubr.bf16.mxu0 0
      %2276 = vmatmul.mubr.bf16.gmra.mrb[0].mxu0 %v2153
      %v2277 = vpop.f32.mrb[0].mxu0
      %v2278 = vadd.f32 0.0, %v2277
      %v2279 = vpop.f32.mrb[0].mxu0
      %v2280 = vpop.f32.mrb[0].mxu0
      %v2281 = vadd.f32 0.0, %v2280
      %v2282 = vpop.f32.mrb[0].mxu0
      %2283 = vmatprep.mubr.bf16.mxu0 0
      %2284 = vmatmul.mubr.bf16.gmra.mrb[0].mxu0 %v2156
      %v2285 = vpop.f32.mrb[0].mxu0
      %v2286 = vadd.f32 0.0, %v2285
      %v2287 = vpop.f32.mrb[0].mxu0
      %v2288 = vpop.f32.mrb[0].mxu0
      %v2289 = vadd.f32 0.0, %v2288
      %v2290 = vpop.f32.mrb[0].mxu0
      %2291 = vmatprep.mubr.bf16.mxu0 0
      %2292 = vmatmul.mubr.bf16.gmra.mrb[0].mxu0 %v2159
      %v2293 = vpop.f32.mrb[0].mxu0
      %v2294 = vadd.f32 0.0, %v2293
      %v2295 = vpop.f32.mrb[0].mxu0
      %v2296 = vpop.f32.mrb[0].mxu0
      %v2297 = vadd.f32 0.0, %v2296
      %v2298 = vpop.f32.mrb[0].mxu0
      %2299 = vmatprep.mubr.bf16.mxu0 0
      %2300 = vmatmul.mubr.bf16.gmra.mrb[0].mxu0 %v2162
      %v2301 = vpop.f32.mrb[0].mxu0
      %v2302 = vadd.f32 0.0, %v2301
      %v2303 = vpop.f32.mrb[0].mxu0
      %v2304 = vpop.f32.mrb[0].mxu0
      %v2305 = vadd.f32 0.0, %v2304
      %v2306 = vpop.f32.mrb[0].mxu0
      %2307 = vmatprep.mubr.bf16.mxu0 0
      %2308 = vmatmul.mubr.bf16.gmra.mrb[0].mxu0 %v2165
      %v2309 = vpop.f32.mrb[0].mxu0
      %v2310 = vadd.f32 0.0, %v2309
      %v2311 = vpop.f32.mrb[0].mxu0
      %v2312 = vpop.f32.mrb[0].mxu0
      %v2313 = vadd.f32 0.0, %v2312
      %v2314 = vpop.f32.mrb[0].mxu0
      %2315 = vmatprep.mubr.bf16.mxu0 0
      %2316 = vmatmul.mubr.bf16.gmra.mrb[0].mxu0 %v2168
      %v2317 = vpop.f32.mrb[0].mxu0
      %v2318 = vadd.f32 0.0, %v2317
      %v2319 = vpop.f32.mrb[0].mxu0
      %v2320 = vpop.f32.mrb[0].mxu0
      %v2321 = vadd.f32 0.0, %v2320
      %v2322 = vpop.f32.mrb[0].mxu0
      %2323 = vmatprep.mubr.bf16.mxu0 0
      %2324 = vmatmul.mubr.bf16.gmra.mrb[0].mxu0 %v2171
      %v2325 = vpop.f32.mrb[0].mxu0
      %v2326 = vadd.f32 0.0, %v2325
      %v2327 = vpop.f32.mrb[0].mxu0
      %v2328 = vpop.f32.mrb[0].mxu0
      %v2329 = vadd.f32 0.0, %v2328
      %v2330 = vpop.f32.mrb[0].mxu0
      %2331 = vmatprep.mubr.bf16.mxu0 0
      %2332 = vmatmul.mubr.bf16.gmra.mrb[0].mxu0 %v2174
      %v2333 = vpop.f32.mrb[0].mxu0
      %v2334 = vadd.f32 0.0, %v2333
      %v2335 = vpop.f32.mrb[0].mxu0
      %v2336 = vpop.f32.mrb[0].mxu0
      %v2337 = vadd.f32 0.0, %v2336
      %v2338 = vpop.f32.mrb[0].mxu0
      %2339 = vdwg.mxu0
      %v2340 = vadd.f32 %v2046, %v2214
      %v2341 = vadd.f32 %v2047, %v2217
      %v2342 = vadd.f32 %v2048, %v2222
      %v2343 = vadd.f32 %v2049, %v2225
      %v2344 = vadd.f32 %v2050, %v2230
      %v2345 = vadd.f32 %v2051, %v2233
      %v2346 = vadd.f32 %v2052, %v2238
      %v2347 = vadd.f32 %v2053, %v2241
      %v2348 = vadd.f32 %v2054, %v2246
      %v2349 = vadd.f32 %v2055, %v2249
      %v2350 = vadd.f32 %v2056, %v2254
      %v2351 = vadd.f32 %v2057, %v2257
      %v2352 = vadd.f32 %v2058, %v2262
      %v2353 = vadd.f32 %v2059, %v2265
      %v2354 = vadd.f32 %v2060, %v2270
      %v2355 = vadd.f32 %v2061, %v2273
      %v2356 = vadd.f32 %v2062, %v2278
      %v2357 = vadd.f32 %v2063, %v2281
      %v2358 = vadd.f32 %v2064, %v2286
      %v2359 = vadd.f32 %v2065, %v2289
      %v2360 = vadd.f32 %v2066, %v2294
      %v2361 = vadd.f32 %v2067, %v2297
      %v2362 = vadd.f32 %v2068, %v2302
      %v2363 = vadd.f32 %v2069, %v2305
      %v2364 = vadd.f32 %v2070, %v2310
      %v2365 = vadd.f32 %v2071, %v2313
      %v2366 = vadd.f32 %v2072, %v2318
      %v2367 = vadd.f32 %v2073, %v2321
      %v2368 = vadd.f32 %v2074, %v2326
      %v2369 = vadd.f32 %v2075, %v2329
      %v2370 = vadd.f32 %v2076, %v2334
      %v2371 = vadd.f32 %v2077, %v2337
      %v2372 = vld [vmem:[%s934 + $0x2] sm:$0xff]
      %v2373 = vld [vmem:[%s934 + $0xa] sm:$0xff]
      %v2374 = vld [vmem:[%s934 + $0x1a] sm:$0xff]
      %v2375 = vld [vmem:[%s934 + $0x22] sm:$0xff]
      %v2376 = vld [vmem:[%s934 + $0x32] sm:$0xff]
      %v2377 = vld [vmem:[%s934 + $0x3a] sm:$0xff]
      %v2378 = vld [vmem:[%s934 + $0x4a] sm:$0xff]
      %v2379 = vld [vmem:[%s934 + $0x52] sm:$0xff]
      %v2380 = vld [vmem:[%s934 + $0x62] sm:$0xff]
      %v2381 = vld [vmem:[%s934 + $0x6a] sm:$0xff]
      %v2382 = vld [vmem:[%s934 + $0x7a] sm:$0xff]
      %v2383 = vld [vmem:[%s934 + $0x82] sm:$0xff]
      %v2384 = vld [vmem:[%s934 + $0x92] sm:$0xff]
      %v2385 = vld [vmem:[%s934 + $0x9a] sm:$0xff]
      %v2386 = vld [vmem:[%s934 + $0xaa] sm:$0xff]
      %v2387 = vld [vmem:[%s934 + $0xb2] sm:$0xff]
      %v2388 = vld [vmem:[%s934 + $0xc2] sm:$0xff]
      %v2389 = vld [vmem:[%s934 + $0xca] sm:$0xff]
      %v2390 = vld [vmem:[%s934 + $0xda] sm:$0xff]
      %v2391 = vld [vmem:[%s934 + $0xe2] sm:$0xff]
      %v2392 = vld [vmem:[%s934 + $0xf2] sm:$0xff]
      %v2393 = vld [vmem:[%s934 + $0xfa] sm:$0xff]
      %v2394 = vld [vmem:[%s934 + $0x10a] sm:$0xff]
      %v2395 = vld [vmem:[%s934 + $0x112] sm:$0xff]
      %v2396 = vld [vmem:[%s934 + $0x122] sm:$0xff]
      %v2397 = vld [vmem:[%s934 + $0x12a] sm:$0xff]
      %v2398 = vld [vmem:[%s934 + $0x13a] sm:$0xff]
      %v2399 = vld [vmem:[%s934 + $0x142] sm:$0xff]
      %v2400 = vld [vmem:[%s934 + $0x152] sm:$0xff]
      %v2401 = vld [vmem:[%s934 + $0x15a] sm:$0xff]
      %v2402 = vld [vmem:[%s934 + $0x16a] sm:$0xff]
      %v2403 = vld [vmem:[%s934 + $0x172] sm:$0xff]
      %v2404 = vpack.c.bf16 %v2373, %v2372
      %v2405 = vpack.c.bf16 %v2375, %v2374
      %v2406 = vpack.c.bf16 %v2377, %v2376
      %v2407 = vpack.c.bf16 %v2379, %v2378
      %v2408 = vpack.c.bf16 %v2381, %v2380
      %v2409 = vpack.c.bf16 %v2383, %v2382
      %v2410 = vpack.c.bf16 %v2385, %v2384
      %v2411 = vpack.c.bf16 %v2387, %v2386
      %v2412 = vpack.c.bf16 %v2389, %v2388
      %v2413 = vpack.c.bf16 %v2391, %v2390
      %v2414 = vpack.c.bf16 %v2393, %v2392
      %v2415 = vpack.c.bf16 %v2395, %v2394
      %v2416 = vpack.c.bf16 %v2397, %v2396
      %v2417 = vpack.c.bf16 %v2399, %v2398
      %v2418 = vpack.c.bf16 %v2401, %v2400
      %v2419 = vpack.c.bf16 %v2403, %v2402
      %s2420 = scalar_lea.vmem %s4, 10
      %v2421 = vld [vmem:[%s2420] sm:$0x3]
      %v2423 = vsel %vm442, %v2404, 0
      %v2426 = vsel %vm442, %v2405, 0
      %v2429 = vsel %vm442, %v2406, 0
      %v2432 = vsel %vm442, %v2407, 0
      %v2435 = vsel %vm442, %v2408, 0
      %v2438 = vsel %vm442, %v2409, 0
      %v2441 = vsel %vm442, %v2410, 0
      %v2444 = vsel %vm442, %v2411, 0
      %v2447 = vsel %vm442, %v2412, 0
      %v2450 = vsel %vm442, %v2413, 0
      %v2453 = vsel %vm442, %v2414, 0
      %v2456 = vsel %vm442, %v2415, 0
      %v2459 = vsel %vm442, %v2416, 0
      %v2462 = vsel %vm442, %v2417, 0
      %v2465 = vsel %vm442, %v2418, 0
      %v2468 = vsel %vm442, %v2419, 0
      %v2471 = vsel %vm659, %v2421, 0
      %2473 = vmatprep.subr.bf16.mxu0 0
      %2474 = vmatpush1.bf16.msra.mxu0 %v2471
      %2475 = vmatprep.subr.bf16.mxu0 0
      %2476 = vmatpush1.bf16.msra.mxu0 0
      %2477 = vmatprep.subr.bf16.mxu0 0
      %2478 = vmatpush1.bf16.msra.mxu0 0
      %2479 = vmatprep.subr.bf16.mxu0 0
      %2480 = vmatpush1.bf16.msra.mxu0 0
      %2481 = vmatprep.subr.bf16.mxu0 0
      %2482 = vmatpush1.bf16.msra.mxu0 0
      %2483 = vmatprep.subr.bf16.mxu0 0
      %2484 = vmatpush1.bf16.msra.mxu0 0
      %2485 = vmatprep.subr.bf16.mxu0 0
      %2486 = vmatpush1.bf16.msra.mxu0 0
      %2487 = vmatprep.subr.bf16.mxu0 0
      %2488 = vmatpush1.bf16.msra.mxu0 0
      %2489 = vmatprep.subr.bf16.mxu0 0
      %2490 = vmatpush1.bf16.msra.mxu0 0
      %2491 = vmatprep.subr.bf16.mxu0 0
      %2492 = vmatpush1.bf16.msra.mxu0 0
      %2493 = vmatprep.subr.bf16.mxu0 0
      %2494 = vmatpush1.bf16.msra.mxu0 0
      %2495 = vmatprep.subr.bf16.mxu0 0
      %2496 = vmatpush1.bf16.msra.mxu0 0
      %2497 = vmatprep.subr.bf16.mxu0 0
      %2498 = vmatpush1.bf16.msra.mxu0 0
      %2499 = vmatprep.subr.bf16.mxu0 0
      %2500 = vmatpush1.bf16.msra.mxu0 0
      %2501 = vmatprep.subr.bf16.mxu0 0
      %2502 = vmatpush1.bf16.msra.mxu0 0
      %2503 = vmatprep.subr.bf16.mxu0 0
      %2504 = vmatpush1.bf16.msra.mxu0 0
      %2505 = vmatprep.mubr.bf16.mxu0 0
      %2506 = vmatmul.mubr.bf16.gmra.mrb[0].mxu0 %v2423
      %v2507 = vpop.f32.mrb[0].mxu0
      %v2508 = vadd.f32 0.0, %v2507
      %v2509 = vpop.f32.mrb[0].mxu0
      %v2510 = vpop.f32.mrb[0].mxu0
      %v2511 = vadd.f32 0.0, %v2510
      %v2512 = vpop.f32.mrb[0].mxu0
      %2513 = vmatprep.mubr.bf16.mxu0 0
      %2514 = vmatmul.mubr.bf16.gmra.mrb[0].mxu0 %v2426
      %v2515 = vpop.f32.mrb[0].mxu0
      %v2516 = vadd.f32 0.0, %v2515
      %v2517 = vpop.f32.mrb[0].mxu0
      %v2518 = vpop.f32.mrb[0].mxu0
      %v2519 = vadd.f32 0.0, %v2518
      %v2520 = vpop.f32.mrb[0].mxu0
      %2521 = vmatprep.mubr.bf16.mxu0 0
      %2522 = vmatmul.mubr.bf16.gmra.mrb[0].mxu0 %v2429
      %v2523 = vpop.f32.mrb[0].mxu0
      %v2524 = vadd.f32 0.0, %v2523
      %v2525 = vpop.f32.mrb[0].mxu0
      %v2526 = vpop.f32.mrb[0].mxu0
      %v2527 = vadd.f32 0.0, %v2526
      %v2528 = vpop.f32.mrb[0].mxu0
      %2529 = vmatprep.mubr.bf16.mxu0 0
      %2530 = vmatmul.mubr.bf16.gmra.mrb[0].mxu0 %v2432
      %v2531 = vpop.f32.mrb[0].mxu0
      %v2532 = vadd.f32 0.0, %v2531
      %v2533 = vpop.f32.mrb[0].mxu0
      %v2534 = vpop.f32.mrb[0].mxu0
      %v2535 = vadd.f32 0.0, %v2534
      %v2536 = vpop.f32.mrb[0].mxu0
      %2537 = vmatprep.mubr.bf16.mxu0 0
      %2538 = vmatmul.mubr.bf16.gmra.mrb[0].mxu0 %v2435
      %v2539 = vpop.f32.mrb[0].mxu0
      %v2540 = vadd.f32 0.0, %v2539
      %v2541 = vpop.f32.mrb[0].mxu0
      %v2542 = vpop.f32.mrb[0].mxu0
      %v2543 = vadd.f32 0.0, %v2542
      %v2544 = vpop.f32.mrb[0].mxu0
      %2545 = vmatprep.mubr.bf16.mxu0 0
      %2546 = vmatmul.mubr.bf16.gmra.mrb[0].mxu0 %v2438
      %v2547 = vpop.f32.mrb[0].mxu0
      %v2548 = vadd.f32 0.0, %v2547
      %v2549 = vpop.f32.mrb[0].mxu0
      %v2550 = vpop.f32.mrb[0].mxu0
      %v2551 = vadd.f32 0.0, %v2550
      %v2552 = vpop.f32.mrb[0].mxu0
      %2553 = vmatprep.mubr.bf16.mxu0 0
      %2554 = vmatmul.mubr.bf16.gmra.mrb[0].mxu0 %v2441
      %v2555 = vpop.f32.mrb[0].mxu0
      %v2556 = vadd.f32 0.0, %v2555
      %v2557 = vpop.f32.mrb[0].mxu0
      %v2558 = vpop.f32.mrb[0].mxu0
      %v2559 = vadd.f32 0.0, %v2558
      %v2560 = vpop.f32.mrb[0].mxu0
      %2561 = vmatprep.mubr.bf16.mxu0 0
      %2562 = vmatmul.mubr.bf16.gmra.mrb[0].mxu0 %v2444
      %v2563 = vpop.f32.mrb[0].mxu0
      %v2564 = vadd.f32 0.0, %v2563
      %v2565 = vpop.f32.mrb[0].mxu0
      %v2566 = vpop.f32.mrb[0].mxu0
      %v2567 = vadd.f32 0.0, %v2566
      %v2568 = vpop.f32.mrb[0].mxu0
      %2569 = vmatprep.mubr.bf16.mxu0 0
      %2570 = vmatmul.mubr.bf16.gmra.mrb[0].mxu0 %v2447
      %v2571 = vpop.f32.mrb[0].mxu0
      %v2572 = vadd.f32 0.0, %v2571
      %v2573 = vpop.f32.mrb[0].mxu0
      %v2574 = vpop.f32.mrb[0].mxu0
      %v2575 = vadd.f32 0.0, %v2574
      %v2576 = vpop.f32.mrb[0].mxu0
      %2577 = vmatprep.mubr.bf16.mxu0 0
      %2578 = vmatmul.mubr.bf16.gmra.mrb[0].mxu0 %v2450
      %v2579 = vpop.f32.mrb[0].mxu0
      %v2580 = vadd.f32 0.0, %v2579
      %v2581 = vpop.f32.mrb[0].mxu0
      %v2582 = vpop.f32.mrb[0].mxu0
      %v2583 = vadd.f32 0.0, %v2582
      %v2584 = vpop.f32.mrb[0].mxu0
      %2585 = vmatprep.mubr.bf16.mxu0 0
      %2586 = vmatmul.mubr.bf16.gmra.mrb[0].mxu0 %v2453
      %v2587 = vpop.f32.mrb[0].mxu0
      %v2588 = vadd.f32 0.0, %v2587
      %v2589 = vpop.f32.mrb[0].mxu0
      %v2590 = vpop.f32.mrb[0].mxu0
      %v2591 = vadd.f32 0.0, %v2590
      %v2592 = vpop.f32.mrb[0].mxu0
      %2593 = vmatprep.mubr.bf16.mxu0 0
      %2594 = vmatmul.mubr.bf16.gmra.mrb[0].mxu0 %v2456
      %v2595 = vpop.f32.mrb[0].mxu0
      %v2596 = vadd.f32 0.0, %v2595
      %v2597 = vpop.f32.mrb[0].mxu0
      %v2598 = vpop.f32.mrb[0].mxu0
      %v2599 = vadd.f32 0.0, %v2598
      %v2600 = vpop.f32.mrb[0].mxu0
      %2601 = vmatprep.mubr.bf16.mxu0 0
      %2602 = vmatmul.mubr.bf16.gmra.mrb[0].mxu0 %v2459
      %v2603 = vpop.f32.mrb[0].mxu0
      %v2604 = vadd.f32 0.0, %v2603
      %v2605 = vpop.f32.mrb[0].mxu0
      %v2606 = vpop.f32.mrb[0].mxu0
      %v2607 = vadd.f32 0.0, %v2606
      %v2608 = vpop.f32.mrb[0].mxu0
      %2609 = vmatprep.mubr.bf16.mxu0 0
      %2610 = vmatmul.mubr.bf16.gmra.mrb[0].mxu0 %v2462
      %v2611 = vpop.f32.mrb[0].mxu0
      %v2612 = vadd.f32 0.0, %v2611
      %v2613 = vpop.f32.mrb[0].mxu0
      %v2614 = vpop.f32.mrb[0].mxu0
      %v2615 = vadd.f32 0.0, %v2614
      %v2616 = vpop.f32.mrb[0].mxu0
      %2617 = vmatprep.mubr.bf16.mxu0 0
      %2618 = vmatmul.mubr.bf16.gmra.mrb[0].mxu0 %v2465
      %v2619 = vpop.f32.mrb[0].mxu0
      %v2620 = vadd.f32 0.0, %v2619
      %v2621 = vpop.f32.mrb[0].mxu0
      %v2622 = vpop.f32.mrb[0].mxu0
      %v2623 = vadd.f32 0.0, %v2622
      %v2624 = vpop.f32.mrb[0].mxu0
      %2625 = vmatprep.mubr.bf16.mxu0 0
      %2626 = vmatmul.mubr.bf16.gmra.mrb[0].mxu0 %v2468
      %v2627 = vpop.f32.mrb[0].mxu0
      %v2628 = vadd.f32 0.0, %v2627
      %v2629 = vpop.f32.mrb[0].mxu0
      %v2630 = vpop.f32.mrb[0].mxu0
      %v2631 = vadd.f32 0.0, %v2630
      %v2632 = vpop.f32.mrb[0].mxu0
      %2633 = vdwg.mxu0
      %v2634 = vadd.f32 %v2340, %v2508
      %v2635 = vadd.f32 %v2341, %v2511
      %v2636 = vadd.f32 %v2342, %v2516
      %v2637 = vadd.f32 %v2343, %v2519
      %v2638 = vadd.f32 %v2344, %v2524
      %v2639 = vadd.f32 %v2345, %v2527
      %v2640 = vadd.f32 %v2346, %v2532
      %v2641 = vadd.f32 %v2347, %v2535
      %v2642 = vadd.f32 %v2348, %v2540
      %v2643 = vadd.f32 %v2349, %v2543
      %v2644 = vadd.f32 %v2350, %v2548
      %v2645 = vadd.f32 %v2351, %v2551
      %v2646 = vadd.f32 %v2352, %v2556
      %v2647 = vadd.f32 %v2353, %v2559
      %v2648 = vadd.f32 %v2354, %v2564
      %v2649 = vadd.f32 %v2355, %v2567
      %v2650 = vadd.f32 %v2356, %v2572
      %v2651 = vadd.f32 %v2357, %v2575
      %v2652 = vadd.f32 %v2358, %v2580
      %v2653 = vadd.f32 %v2359, %v2583
      %v2654 = vadd.f32 %v2360, %v2588
      %v2655 = vadd.f32 %v2361, %v2591
      %v2656 = vadd.f32 %v2362, %v2596
      %v2657 = vadd.f32 %v2363, %v2599
      %v2658 = vadd.f32 %v2364, %v2604
      %v2659 = vadd.f32 %v2365, %v2607
      %v2660 = vadd.f32 %v2366, %v2612
      %v2661 = vadd.f32 %v2367, %v2615
      %v2662 = vadd.f32 %v2368, %v2620
      %v2663 = vadd.f32 %v2369, %v2623
      %v2664 = vadd.f32 %v2370, %v2628
      %v2665 = vadd.f32 %v2371, %v2631
      %s2666 = scalar_lea.vmem [#allocation2], 48
      %v2667 = vld [vmem:[%s2666] sm:$0xff]
      %v2668 = vld [vmem:[%s2666 + $0x8] sm:$0xff]
      %v2669 = vld [vmem:[%s2666 + $0x18] sm:$0xff]
      %v2670 = vld [vmem:[%s2666 + $0x20] sm:$0xff]
      %v2671 = vld [vmem:[%s2666 + $0x30] sm:$0xff]
      %v2672 = vld [vmem:[%s2666 + $0x38] sm:$0xff]
      %v2673 = vld [vmem:[%s2666 + $0x48] sm:$0xff]
      %v2674 = vld [vmem:[%s2666 + $0x50] sm:$0xff]
      %v2675 = vld [vmem:[%s2666 + $0x60] sm:$0xff]
      %v2676 = vld [vmem:[%s2666 + $0x68] sm:$0xff]
      %v2677 = vld [vmem:[%s2666 + $0x78] sm:$0xff]
      %v2678 = vld [vmem:[%s2666 + $0x80] sm:$0xff]
      %v2679 = vld [vmem:[%s2666 + $0x90] sm:$0xff]
      %v2680 = vld [vmem:[%s2666 + $0x98] sm:$0xff]
      %v2681 = vld [vmem:[%s2666 + $0xa8] sm:$0xff]
      %v2682 = vld [vmem:[%s2666 + $0xb0] sm:$0xff]
      %v2683 = vld [vmem:[%s2666 + $0xc0] sm:$0xff]
      %v2684 = vld [vmem:[%s2666 + $0xc8] sm:$0xff]
      %v2685 = vld [vmem:[%s2666 + $0xd8] sm:$0xff]
      %v2686 = vld [vmem:[%s2666 + $0xe0] sm:$0xff]
      %v2687 = vld [vmem:[%s2666 + $0xf0] sm:$0xff]
      %v2688 = vld [vmem:[%s2666 + $0xf8] sm:$0xff]
      %v2689 = vld [vmem:[%s2666 + $0x108] sm:$0xff]
      %v2690 = vld [vmem:[%s2666 + $0x110] sm:$0xff]
      %v2691 = vld [vmem:[%s2666 + $0x120] sm:$0xff]
      %v2692 = vld [vmem:[%s2666 + $0x128] sm:$0xff]
      %v2693 = vld [vmem:[%s2666 + $0x138] sm:$0xff]
      %v2694 = vld [vmem:[%s2666 + $0x140] sm:$0xff]
      %v2695 = vld [vmem:[%s2666 + $0x150] sm:$0xff]
      %v2696 = vld [vmem:[%s2666 + $0x158] sm:$0xff]
      %v2697 = vld [vmem:[%s2666 + $0x168] sm:$0xff]
      %v2698 = vld [vmem:[%s2666 + $0x170] sm:$0xff]
      %v2699 = vpack.c.bf16 %v2668, %v2667
      %v2700 = vpack.c.bf16 %v2670, %v2669
      %v2701 = vpack.c.bf16 %v2672, %v2671
      %v2702 = vpack.c.bf16 %v2674, %v2673
      %v2703 = vpack.c.bf16 %v2676, %v2675
      %v2704 = vpack.c.bf16 %v2678, %v2677
      %v2705 = vpack.c.bf16 %v2680, %v2679
      %v2706 = vpack.c.bf16 %v2682, %v2681
      %v2707 = vpack.c.bf16 %v2684, %v2683
      %v2708 = vpack.c.bf16 %v2686, %v2685
      %v2709 = vpack.c.bf16 %v2688, %v2687
      %v2710 = vpack.c.bf16 %v2690, %v2689
      %v2711 = vpack.c.bf16 %v2692, %v2691
      %v2712 = vpack.c.bf16 %v2694, %v2693
      %v2713 = vpack.c.bf16 %v2696, %v2695
      %v2714 = vpack.c.bf16 %v2698, %v2697
      %s2715 = scalar_lea.vmem %s4, 12
      %v2716 = vld [vmem:[%s2715] sm:$0x3]
      %v2718 = vsel %vm442, %v2699, 0
      %v2721 = vsel %vm442, %v2700, 0
      %v2724 = vsel %vm442, %v2701, 0
      %v2727 = vsel %vm442, %v2702, 0
      %v2730 = vsel %vm442, %v2703, 0
      %v2733 = vsel %vm442, %v2704, 0
      %v2736 = vsel %vm442, %v2705, 0
      %v2739 = vsel %vm442, %v2706, 0
      %v2742 = vsel %vm442, %v2707, 0
      %v2745 = vsel %vm442, %v2708, 0
      %v2748 = vsel %vm442, %v2709, 0
      %v2751 = vsel %vm442, %v2710, 0
      %v2754 = vsel %vm442, %v2711, 0
      %v2757 = vsel %vm442, %v2712, 0
      %v2760 = vsel %vm442, %v2713, 0
      %v2763 = vsel %vm442, %v2714, 0
      %v2766 = vsel %vm659, %v2716, 0
      %2768 = vmatprep.subr.bf16.mxu0 0
      %2769 = vmatpush1.bf16.msra.mxu0 %v2766
      %2770 = vmatprep.subr.bf16.mxu0 0
      %2771 = vmatpush1.bf16.msra.mxu0 0
      %2772 = vmatprep.subr.bf16.mxu0 0
      %2773 = vmatpush1.bf16.msra.mxu0 0
      %2774 = vmatprep.subr.bf16.mxu0 0
      %2775 = vmatpush1.bf16.msra.mxu0 0
      %2776 = vmatprep.subr.bf16.mxu0 0
      %2777 = vmatpush1.bf16.msra.mxu0 0
      %2778 = vmatprep.subr.bf16.mxu0 0
      %2779 = vmatpush1.bf16.msra.mxu0 0
      %2780 = vmatprep.subr.bf16.mxu0 0
      %2781 = vmatpush1.bf16.msra.mxu0 0
      %2782 = vmatprep.subr.bf16.mxu0 0
      %2783 = vmatpush1.bf16.msra.mxu0 0
      %2784 = vmatprep.subr.bf16.mxu0 0
      %2785 = vmatpush1.bf16.msra.mxu0 0
      %2786 = vmatprep.subr.bf16.mxu0 0
      %2787 = vmatpush1.bf16.msra.mxu0 0
      %2788 = vmatprep.subr.bf16.mxu0 0
      %2789 = vmatpush1.bf16.msra.mxu0 0
      %2790 = vmatprep.subr.bf16.mxu0 0
      %2791 = vmatpush1.bf16.msra.mxu0 0
      %2792 = vmatprep.subr.bf16.mxu0 0
      %2793 = vmatpush1.bf16.msra.mxu0 0
      %2794 = vmatprep.subr.bf16.mxu0 0
      %2795 = vmatpush1.bf16.msra.mxu0 0
      %2796 = vmatprep.subr.bf16.mxu0 0
      %2797 = vmatpush1.bf16.msra.mxu0 0
      %2798 = vmatprep.subr.bf16.mxu0 0
      %2799 = vmatpush1.bf16.msra.mxu0 0
      %2800 = vmatprep.mubr.bf16.mxu0 0
      %2801 = vmatmul.mubr.bf16.gmra.mrb[0].mxu0 %v2718
      %v2802 = vpop.f32.mrb[0].mxu0
      %v2803 = vadd.f32 0.0, %v2802
      %v2804 = vpop.f32.mrb[0].mxu0
      %v2805 = vpop.f32.mrb[0].mxu0
      %v2806 = vadd.f32 0.0, %v2805
      %v2807 = vpop.f32.mrb[0].mxu0
      %2808 = vmatprep.mubr.bf16.mxu0 0
      %2809 = vmatmul.mubr.bf16.gmra.mrb[0].mxu0 %v2721
      %v2810 = vpop.f32.mrb[0].mxu0
      %v2811 = vadd.f32 0.0, %v2810
      %v2812 = vpop.f32.mrb[0].mxu0
      %v2813 = vpop.f32.mrb[0].mxu0
      %v2814 = vadd.f32 0.0, %v2813
      %v2815 = vpop.f32.mrb[0].mxu0
      %2816 = vmatprep.mubr.bf16.mxu0 0
      %2817 = vmatmul.mubr.bf16.gmra.mrb[0].mxu0 %v2724
      %v2818 = vpop.f32.mrb[0].mxu0
      %v2819 = vadd.f32 0.0, %v2818
      %v2820 = vpop.f32.mrb[0].mxu0
      %v2821 = vpop.f32.mrb[0].mxu0
      %v2822 = vadd.f32 0.0, %v2821
      %v2823 = vpop.f32.mrb[0].mxu0
      %2824 = vmatprep.mubr.bf16.mxu0 0
      %2825 = vmatmul.mubr.bf16.gmra.mrb[0].mxu0 %v2727
      %v2826 = vpop.f32.mrb[0].mxu0
      %v2827 = vadd.f32 0.0, %v2826
      %v2828 = vpop.f32.mrb[0].mxu0
      %v2829 = vpop.f32.mrb[0].mxu0
      %v2830 = vadd.f32 0.0, %v2829
      %v2831 = vpop.f32.mrb[0].mxu0
      %2832 = vmatprep.mubr.bf16.mxu0 0
      %2833 = vmatmul.mubr.bf16.gmra.mrb[0].mxu0 %v2730
      %v2834 = vpop.f32.mrb[0].mxu0
      %v2835 = vadd.f32 0.0, %v2834
      %v2836 = vpop.f32.mrb[0].mxu0
      %v2837 = vpop.f32.mrb[0].mxu0
      %v2838 = vadd.f32 0.0, %v2837
      %v2839 = vpop.f32.mrb[0].mxu0
      %2840 = vmatprep.mubr.bf16.mxu0 0
      %2841 = vmatmul.mubr.bf16.gmra.mrb[0].mxu0 %v2733
      %v2842 = vpop.f32.mrb[0].mxu0
      %v2843 = vadd.f32 0.0, %v2842
      %v2844 = vpop.f32.mrb[0].mxu0
      %v2845 = vpop.f32.mrb[0].mxu0
      %v2846 = vadd.f32 0.0, %v2845
      %v2847 = vpop.f32.mrb[0].mxu0
      %2848 = vmatprep.mubr.bf16.mxu0 0
      %2849 = vmatmul.mubr.bf16.gmra.mrb[0].mxu0 %v2736
      %v2850 = vpop.f32.mrb[0].mxu0
      %v2851 = vadd.f32 0.0, %v2850
      %v2852 = vpop.f32.mrb[0].mxu0
      %v2853 = vpop.f32.mrb[0].mxu0
      %v2854 = vadd.f32 0.0, %v2853
      %v2855 = vpop.f32.mrb[0].mxu0
      %2856 = vmatprep.mubr.bf16.mxu0 0
      %2857 = vmatmul.mubr.bf16.gmra.mrb[0].mxu0 %v2739
      %v2858 = vpop.f32.mrb[0].mxu0
      %v2859 = vadd.f32 0.0, %v2858
      %v2860 = vpop.f32.mrb[0].mxu0
      %v2861 = vpop.f32.mrb[0].mxu0
      %v2862 = vadd.f32 0.0, %v2861
      %v2863 = vpop.f32.mrb[0].mxu0
      %2864 = vmatprep.mubr.bf16.mxu0 0
      %2865 = vmatmul.mubr.bf16.gmra.mrb[0].mxu0 %v2742
      %v2866 = vpop.f32.mrb[0].mxu0
      %v2867 = vadd.f32 0.0, %v2866
      %v2868 = vpop.f32.mrb[0].mxu0
      %v2869 = vpop.f32.mrb[0].mxu0
      %v2870 = vadd.f32 0.0, %v2869
      %v2871 = vpop.f32.mrb[0].mxu0
      %2872 = vmatprep.mubr.bf16.mxu0 0
      %2873 = vmatmul.mubr.bf16.gmra.mrb[0].mxu0 %v2745
      %v2874 = vpop.f32.mrb[0].mxu0
      %v2875 = vadd.f32 0.0, %v2874
      %v2876 = vpop.f32.mrb[0].mxu0
      %v2877 = vpop.f32.mrb[0].mxu0
      %v2878 = vadd.f32 0.0, %v2877
      %v2879 = vpop.f32.mrb[0].mxu0
      %2880 = vmatprep.mubr.bf16.mxu0 0
      %2881 = vmatmul.mubr.bf16.gmra.mrb[0].mxu0 %v2748
      %v2882 = vpop.f32.mrb[0].mxu0
      %v2883 = vadd.f32 0.0, %v2882
      %v2884 = vpop.f32.mrb[0].mxu0
      %v2885 = vpop.f32.mrb[0].mxu0
      %v2886 = vadd.f32 0.0, %v2885
      %v2887 = vpop.f32.mrb[0].mxu0
      %2888 = vmatprep.mubr.bf16.mxu0 0
      %2889 = vmatmul.mubr.bf16.gmra.mrb[0].mxu0 %v2751
      %v2890 = vpop.f32.mrb[0].mxu0
      %v2891 = vadd.f32 0.0, %v2890
      %v2892 = vpop.f32.mrb[0].mxu0
      %v2893 = vpop.f32.mrb[0].mxu0
      %v2894 = vadd.f32 0.0, %v2893
      %v2895 = vpop.f32.mrb[0].mxu0
      %2896 = vmatprep.mubr.bf16.mxu0 0
      %2897 = vmatmul.mubr.bf16.gmra.mrb[0].mxu0 %v2754
      %v2898 = vpop.f32.mrb[0].mxu0
      %v2899 = vadd.f32 0.0, %v2898
      %v2900 = vpop.f32.mrb[0].mxu0
      %v2901 = vpop.f32.mrb[0].mxu0
      %v2902 = vadd.f32 0.0, %v2901
      %v2903 = vpop.f32.mrb[0].mxu0
      %2904 = vmatprep.mubr.bf16.mxu0 0
      %2905 = vmatmul.mubr.bf16.gmra.mrb[0].mxu0 %v2757
      %v2906 = vpop.f32.mrb[0].mxu0
      %v2907 = vadd.f32 0.0, %v2906
      %v2908 = vpop.f32.mrb[0].mxu0
      %v2909 = vpop.f32.mrb[0].mxu0
      %v2910 = vadd.f32 0.0, %v2909
      %v2911 = vpop.f32.mrb[0].mxu0
      %2912 = vmatprep.mubr.bf16.mxu0 0
      %2913 = vmatmul.mubr.bf16.gmra.mrb[0].mxu0 %v2760
      %v2914 = vpop.f32.mrb[0].mxu0
      %v2915 = vadd.f32 0.0, %v2914
      %v2916 = vpop.f32.mrb[0].mxu0
      %v2917 = vpop.f32.mrb[0].mxu0
      %v2918 = vadd.f32 0.0, %v2917
      %v2919 = vpop.f32.mrb[0].mxu0
      %2920 = vmatprep.mubr.bf16.mxu0 0
      %2921 = vmatmul.mubr.bf16.gmra.mrb[0].mxu0 %v2763
      %v2922 = vpop.f32.mrb[0].mxu0
      %v2923 = vadd.f32 0.0, %v2922
      %v2924 = vpop.f32.mrb[0].mxu0
      %v2925 = vpop.f32.mrb[0].mxu0
      %v2926 = vadd.f32 0.0, %v2925
      %v2927 = vpop.f32.mrb[0].mxu0
      %2928 = vdwg.mxu0
      %v2929 = vadd.f32 %v2634, %v2803
      %v2930 = vadd.f32 %v2635, %v2806
      %v2931 = vadd.f32 %v2636, %v2811
      %v2932 = vadd.f32 %v2637, %v2814
      %v2933 = vadd.f32 %v2638, %v2819
      %v2934 = vadd.f32 %v2639, %v2822
      %v2935 = vadd.f32 %v2640, %v2827
      %v2936 = vadd.f32 %v2641, %v2830
      %v2937 = vadd.f32 %v2642, %v2835
      %v2938 = vadd.f32 %v2643, %v2838
      %v2939 = vadd.f32 %v2644, %v2843
      %v2940 = vadd.f32 %v2645, %v2846
      %v2941 = vadd.f32 %v2646, %v2851
      %v2942 = vadd.f32 %v2647, %v2854
      %v2943 = vadd.f32 %v2648, %v2859
      %v2944 = vadd.f32 %v2649, %v2862
      %v2945 = vadd.f32 %v2650, %v2867
      %v2946 = vadd.f32 %v2651, %v2870
      %v2947 = vadd.f32 %v2652, %v2875
      %v2948 = vadd.f32 %v2653, %v2878
      %v2949 = vadd.f32 %v2654, %v2883
      %v2950 = vadd.f32 %v2655, %v2886
      %v2951 = vadd.f32 %v2656, %v2891
      %v2952 = vadd.f32 %v2657, %v2894
      %v2953 = vadd.f32 %v2658, %v2899
      %v2954 = vadd.f32 %v2659, %v2902
      %v2955 = vadd.f32 %v2660, %v2907
      %v2956 = vadd.f32 %v2661, %v2910
      %v2957 = vadd.f32 %v2662, %v2915
      %v2958 = vadd.f32 %v2663, %v2918
      %v2959 = vadd.f32 %v2664, %v2923
      %v2960 = vadd.f32 %v2665, %v2926
      %v2961 = vld [vmem:[%s2666 + $0x1] sm:$0xff]
      %v2962 = vld [vmem:[%s2666 + $0x9] sm:$0xff]
      %v2963 = vld [vmem:[%s2666 + $0x19] sm:$0xff]
      %v2964 = vld [vmem:[%s2666 + $0x21] sm:$0xff]
      %v2965 = vld [vmem:[%s2666 + $0x31] sm:$0xff]
      %v2966 = vld [vmem:[%s2666 + $0x39] sm:$0xff]
      %v2967 = vld [vmem:[%s2666 + $0x49] sm:$0xff]
      %v2968 = vld [vmem:[%s2666 + $0x51] sm:$0xff]
      %v2969 = vld [vmem:[%s2666 + $0x61] sm:$0xff]
      %v2970 = vld [vmem:[%s2666 + $0x69] sm:$0xff]
      %v2971 = vld [vmem:[%s2666 + $0x79] sm:$0xff]
      %v2972 = vld [vmem:[%s2666 + $0x81] sm:$0xff]
      %v2973 = vld [vmem:[%s2666 + $0x91] sm:$0xff]
      %v2974 = vld [vmem:[%s2666 + $0x99] sm:$0xff]
      %v2975 = vld [vmem:[%s2666 + $0xa9] sm:$0xff]
      %v2976 = vld [vmem:[%s2666 + $0xb1] sm:$0xff]
      %v2977 = vld [vmem:[%s2666 + $0xc1] sm:$0xff]
      %v2978 = vld [vmem:[%s2666 + $0xc9] sm:$0xff]
      %v2979 = vld [vmem:[%s2666 + $0xd9] sm:$0xff]
      %v2980 = vld [vmem:[%s2666 + $0xe1] sm:$0xff]
      %v2981 = vld [vmem:[%s2666 + $0xf1] sm:$0xff]
      %v2982 = vld [vmem:[%s2666 + $0xf9] sm:$0xff]
      %v2983 = vld [vmem:[%s2666 + $0x109] sm:$0xff]
      %v2984 = vld [vmem:[%s2666 + $0x111] sm:$0xff]
      %v2985 = vld [vmem:[%s2666 + $0x121] sm:$0xff]
      %v2986 = vld [vmem:[%s2666 + $0x129] sm:$0xff]
      %v2987 = vld [vmem:[%s2666 + $0x139] sm:$0xff]
      %v2988 = vld [vmem:[%s2666 + $0x141] sm:$0xff]
      %v2989 = vld [vmem:[%s2666 + $0x151] sm:$0xff]
      %v2990 = vld [vmem:[%s2666 + $0x159] sm:$0xff]
      %v2991 = vld [vmem:[%s2666 + $0x169] sm:$0xff]
      %v2992 = vld [vmem:[%s2666 + $0x171] sm:$0xff]
      %v2993 = vpack.c.bf16 %v2962, %v2961
      %v2994 = vpack.c.bf16 %v2964, %v2963
      %v2995 = vpack.c.bf16 %v2966, %v2965
      %v2996 = vpack.c.bf16 %v2968, %v2967
      %v2997 = vpack.c.bf16 %v2970, %v2969
      %v2998 = vpack.c.bf16 %v2972, %v2971
      %v2999 = vpack.c.bf16 %v2974, %v2973
      %v3000 = vpack.c.bf16 %v2976, %v2975
      %v3001 = vpack.c.bf16 %v2978, %v2977
      %v3002 = vpack.c.bf16 %v2980, %v2979
      %v3003 = vpack.c.bf16 %v2982, %v2981
      %v3004 = vpack.c.bf16 %v2984, %v2983
      %v3005 = vpack.c.bf16 %v2986, %v2985
      %v3006 = vpack.c.bf16 %v2988, %v2987
      %v3007 = vpack.c.bf16 %v2990, %v2989
      %v3008 = vpack.c.bf16 %v2992, %v2991
      %s3009 = scalar_lea.vmem %s4, 14
      %v3010 = vld [vmem:[%s3009] sm:$0x3]
      %v3012 = vsel %vm442, %v2993, 0
      %v3015 = vsel %vm442, %v2994, 0
      %v3018 = vsel %vm442, %v2995, 0
      %v3021 = vsel %vm442, %v2996, 0
      %v3024 = vsel %vm442, %v2997, 0
      %v3027 = vsel %vm442, %v2998, 0
      %v3030 = vsel %vm442, %v2999, 0
      %v3033 = vsel %vm442, %v3000, 0
      %v3036 = vsel %vm442, %v3001, 0
      %v3039 = vsel %vm442, %v3002, 0
      %v3042 = vsel %vm442, %v3003, 0
      %v3045 = vsel %vm442, %v3004, 0
      %v3048 = vsel %vm442, %v3005, 0
      %v3051 = vsel %vm442, %v3006, 0
      %v3054 = vsel %vm442, %v3007, 0
      %v3057 = vsel %vm442, %v3008, 0
      %v3060 = vsel %vm659, %v3010, 0
      %3062 = vmatprep.subr.bf16.mxu0 0
      %3063 = vmatpush1.bf16.msra.mxu0 %v3060
      %3064 = vmatprep.subr.bf16.mxu0 0
      %3065 = vmatpush1.bf16.msra.mxu0 0
      %3066 = vmatprep.subr.bf16.mxu0 0
      %3067 = vmatpush1.bf16.msra.mxu0 0
      %3068 = vmatprep.subr.bf16.mxu0 0
      %3069 = vmatpush1.bf16.msra.mxu0 0
      %3070 = vmatprep.subr.bf16.mxu0 0
      %3071 = vmatpush1.bf16.msra.mxu0 0
      %3072 = vmatprep.subr.bf16.mxu0 0
      %3073 = vmatpush1.bf16.msra.mxu0 0
      %3074 = vmatprep.subr.bf16.mxu0 0
      %3075 = vmatpush1.bf16.msra.mxu0 0
      %3076 = vmatprep.subr.bf16.mxu0 0
      %3077 = vmatpush1.bf16.msra.mxu0 0
      %3078 = vmatprep.subr.bf16.mxu0 0
      %3079 = vmatpush1.bf16.msra.mxu0 0
      %3080 = vmatprep.subr.bf16.mxu0 0
      %3081 = vmatpush1.bf16.msra.mxu0 0
      %3082 = vmatprep.subr.bf16.mxu0 0
      %3083 = vmatpush1.bf16.msra.mxu0 0
      %3084 = vmatprep.subr.bf16.mxu0 0
      %3085 = vmatpush1.bf16.msra.mxu0 0
      %3086 = vmatprep.subr.bf16.mxu0 0
      %3087 = vmatpush1.bf16.msra.mxu0 0
      %3088 = vmatprep.subr.bf16.mxu0 0
      %3089 = vmatpush1.bf16.msra.mxu0 0
      %3090 = vmatprep.subr.bf16.mxu0 0
      %3091 = vmatpush1.bf16.msra.mxu0 0
      %3092 = vmatprep.subr.bf16.mxu0 0
      %3093 = vmatpush1.bf16.msra.mxu0 0
      %3094 = vmatprep.mubr.bf16.mxu0 0
      %3095 = vmatmul.mubr.bf16.gmra.mrb[0].mxu0 %v3012
      %v3096 = vpop.f32.mrb[0].mxu0
      %v3097 = vadd.f32 0.0, %v3096
      %v3098 = vpop.f32.mrb[0].mxu0
      %v3099 = vpop.f32.mrb[0].mxu0
      %v3100 = vadd.f32 0.0, %v3099
      %v3101 = vpop.f32.mrb[0].mxu0
      %3102 = vmatprep.mubr.bf16.mxu0 0
      %3103 = vmatmul.mubr.bf16.gmra.mrb[0].mxu0 %v3015
      %v3104 = vpop.f32.mrb[0].mxu0
      %v3105 = vadd.f32 0.0, %v3104
      %v3106 = vpop.f32.mrb[0].mxu0
      %v3107 = vpop.f32.mrb[0].mxu0
      %v3108 = vadd.f32 0.0, %v3107
      %v3109 = vpop.f32.mrb[0].mxu0
      %3110 = vmatprep.mubr.bf16.mxu0 0
      %3111 = vmatmul.mubr.bf16.gmra.mrb[0].mxu0 %v3018
      %v3112 = vpop.f32.mrb[0].mxu0
      %v3113 = vadd.f32 0.0, %v3112
      %v3114 = vpop.f32.mrb[0].mxu0
      %v3115 = vpop.f32.mrb[0].mxu0
      %v3116 = vadd.f32 0.0, %v3115
      %v3117 = vpop.f32.mrb[0].mxu0
      %3118 = vmatprep.mubr.bf16.mxu0 0
      %3119 = vmatmul.mubr.bf16.gmra.mrb[0].mxu0 %v3021
      %v3120 = vpop.f32.mrb[0].mxu0
      %v3121 = vadd.f32 0.0, %v3120
      %v3122 = vpop.f32.mrb[0].mxu0
      %v3123 = vpop.f32.mrb[0].mxu0
      %v3124 = vadd.f32 0.0, %v3123
      %v3125 = vpop.f32.mrb[0].mxu0
      %3126 = vmatprep.mubr.bf16.mxu0 0
      %3127 = vmatmul.mubr.bf16.gmra.mrb[0].mxu0 %v3024
      %v3128 = vpop.f32.mrb[0].mxu0
      %v3129 = vadd.f32 0.0, %v3128
      %v3130 = vpop.f32.mrb[0].mxu0
      %v3131 = vpop.f32.mrb[0].mxu0
      %v3132 = vadd.f32 0.0, %v3131
      %v3133 = vpop.f32.mrb[0].mxu0
      %3134 = vmatprep.mubr.bf16.mxu0 0
      %3135 = vmatmul.mubr.bf16.gmra.mrb[0].mxu0 %v3027
      %v3136 = vpop.f32.mrb[0].mxu0
      %v3137 = vadd.f32 0.0, %v3136
      %v3138 = vpop.f32.mrb[0].mxu0
      %v3139 = vpop.f32.mrb[0].mxu0
      %v3140 = vadd.f32 0.0, %v3139
      %v3141 = vpop.f32.mrb[0].mxu0
      %3142 = vmatprep.mubr.bf16.mxu0 0
      %3143 = vmatmul.mubr.bf16.gmra.mrb[0].mxu0 %v3030
      %v3144 = vpop.f32.mrb[0].mxu0
      %v3145 = vadd.f32 0.0, %v3144
      %v3146 = vpop.f32.mrb[0].mxu0
      %v3147 = vpop.f32.mrb[0].mxu0
      %v3148 = vadd.f32 0.0, %v3147
      %v3149 = vpop.f32.mrb[0].mxu0
      %3150 = vmatprep.mubr.bf16.mxu0 0
      %3151 = vmatmul.mubr.bf16.gmra.mrb[0].mxu0 %v3033
      %v3152 = vpop.f32.mrb[0].mxu0
      %v3153 = vadd.f32 0.0, %v3152
      %v3154 = vpop.f32.mrb[0].mxu0
      %v3155 = vpop.f32.mrb[0].mxu0
      %v3156 = vadd.f32 0.0, %v3155
      %v3157 = vpop.f32.mrb[0].mxu0
      %3158 = vmatprep.mubr.bf16.mxu0 0
      %3159 = vmatmul.mubr.bf16.gmra.mrb[0].mxu0 %v3036
      %v3160 = vpop.f32.mrb[0].mxu0
      %v3161 = vadd.f32 0.0, %v3160
      %v3162 = vpop.f32.mrb[0].mxu0
      %v3163 = vpop.f32.mrb[0].mxu0
      %v3164 = vadd.f32 0.0, %v3163
      %v3165 = vpop.f32.mrb[0].mxu0
      %3166 = vmatprep.mubr.bf16.mxu0 0
      %3167 = vmatmul.mubr.bf16.gmra.mrb[0].mxu0 %v3039
      %v3168 = vpop.f32.mrb[0].mxu0
      %v3169 = vadd.f32 0.0, %v3168
      %v3170 = vpop.f32.mrb[0].mxu0
      %v3171 = vpop.f32.mrb[0].mxu0
      %v3172 = vadd.f32 0.0, %v3171
      %v3173 = vpop.f32.mrb[0].mxu0
      %3174 = vmatprep.mubr.bf16.mxu0 0
      %3175 = vmatmul.mubr.bf16.gmra.mrb[0].mxu0 %v3042
      %v3176 = vpop.f32.mrb[0].mxu0
      %v3177 = vadd.f32 0.0, %v3176
      %v3178 = vpop.f32.mrb[0].mxu0
      %v3179 = vpop.f32.mrb[0].mxu0
      %v3180 = vadd.f32 0.0, %v3179
      %v3181 = vpop.f32.mrb[0].mxu0
      %3182 = vmatprep.mubr.bf16.mxu0 0
      %3183 = vmatmul.mubr.bf16.gmra.mrb[0].mxu0 %v3045
      %v3184 = vpop.f32.mrb[0].mxu0
      %v3185 = vadd.f32 0.0, %v3184
      %v3186 = vpop.f32.mrb[0].mxu0
      %v3187 = vpop.f32.mrb[0].mxu0
      %v3188 = vadd.f32 0.0, %v3187
      %v3189 = vpop.f32.mrb[0].mxu0
      %3190 = vmatprep.mubr.bf16.mxu0 0
      %3191 = vmatmul.mubr.bf16.gmra.mrb[0].mxu0 %v3048
      %v3192 = vpop.f32.mrb[0].mxu0
      %v3193 = vadd.f32 0.0, %v3192
      %v3194 = vpop.f32.mrb[0].mxu0
      %v3195 = vpop.f32.mrb[0].mxu0
      %v3196 = vadd.f32 0.0, %v3195
      %v3197 = vpop.f32.mrb[0].mxu0
      %3198 = vmatprep.mubr.bf16.mxu0 0
      %3199 = vmatmul.mubr.bf16.gmra.mrb[0].mxu0 %v3051
      %v3200 = vpop.f32.mrb[0].mxu0
      %v3201 = vadd.f32 0.0, %v3200
      %v3202 = vpop.f32.mrb[0].mxu0
      %v3203 = vpop.f32.mrb[0].mxu0
      %v3204 = vadd.f32 0.0, %v3203
      %v3205 = vpop.f32.mrb[0].mxu0
      %3206 = vmatprep.mubr.bf16.mxu0 0
      %3207 = vmatmul.mubr.bf16.gmra.mrb[0].mxu0 %v3054
      %v3208 = vpop.f32.mrb[0].mxu0
      %v3209 = vadd.f32 0.0, %v3208
      %v3210 = vpop.f32.mrb[0].mxu0
      %v3211 = vpop.f32.mrb[0].mxu0
      %v3212 = vadd.f32 0.0, %v3211
      %v3213 = vpop.f32.mrb[0].mxu0
      %3214 = vmatprep.mubr.bf16.mxu0 0
      %3215 = vmatmul.mubr.bf16.gmra.mrb[0].mxu0 %v3057
      %v3216 = vpop.f32.mrb[0].mxu0
      %v3217 = vadd.f32 0.0, %v3216
      %v3218 = vpop.f32.mrb[0].mxu0
      %v3219 = vpop.f32.mrb[0].mxu0
      %v3220 = vadd.f32 0.0, %v3219
      %v3221 = vpop.f32.mrb[0].mxu0
      %3222 = vdwg.mxu0
      %v3223 = vadd.f32 %v2929, %v3097
      %v3224 = vadd.f32 %v2930, %v3100
      %v3225 = vadd.f32 %v2931, %v3105
      %v3226 = vadd.f32 %v2932, %v3108
      %v3227 = vadd.f32 %v2933, %v3113
      %v3228 = vadd.f32 %v2934, %v3116
      %v3229 = vadd.f32 %v2935, %v3121
      %v3230 = vadd.f32 %v2936, %v3124
      %v3231 = vadd.f32 %v2937, %v3129
      %v3232 = vadd.f32 %v2938, %v3132
      %v3233 = vadd.f32 %v2939, %v3137
      %v3234 = vadd.f32 %v2940, %v3140
      %v3235 = vadd.f32 %v2941, %v3145
      %v3236 = vadd.f32 %v2942, %v3148
      %v3237 = vadd.f32 %v2943, %v3153
      %v3238 = vadd.f32 %v2944, %v3156
      %v3239 = vadd.f32 %v2945, %v3161
      %v3240 = vadd.f32 %v2946, %v3164
      %v3241 = vadd.f32 %v2947, %v3169
      %v3242 = vadd.f32 %v2948, %v3172
      %v3243 = vadd.f32 %v2949, %v3177
      %v3244 = vadd.f32 %v2950, %v3180
      %v3245 = vadd.f32 %v2951, %v3185
      %v3246 = vadd.f32 %v2952, %v3188
      %v3247 = vadd.f32 %v2953, %v3193
      %v3248 = vadd.f32 %v2954, %v3196
      %v3249 = vadd.f32 %v2955, %v3201
      %v3250 = vadd.f32 %v2956, %v3204
      %v3251 = vadd.f32 %v2957, %v3209
      %v3252 = vadd.f32 %v2958, %v3212
      %v3253 = vadd.f32 %v2959, %v3217
      %v3254 = vadd.f32 %v2960, %v3220
      %v3255 = vld [vmem:[%s2666 + $0x2] sm:$0xff]
      %v3256 = vld [vmem:[%s2666 + $0xa] sm:$0xff]
      %v3257 = vld [vmem:[%s2666 + $0x1a] sm:$0xff]
      %v3258 = vld [vmem:[%s2666 + $0x22] sm:$0xff]
      %v3259 = vld [vmem:[%s2666 + $0x32] sm:$0xff]
      %v3260 = vld [vmem:[%s2666 + $0x3a] sm:$0xff]
      %v3261 = vld [vmem:[%s2666 + $0x4a] sm:$0xff]
      %v3262 = vld [vmem:[%s2666 + $0x52] sm:$0xff]
      %v3263 = vld [vmem:[%s2666 + $0x62] sm:$0xff]
      %v3264 = vld [vmem:[%s2666 + $0x6a] sm:$0xff]
      %v3265 = vld [vmem:[%s2666 + $0x7a] sm:$0xff]
      %v3266 = vld [vmem:[%s2666 + $0x82] sm:$0xff]
      %v3267 = vld [vmem:[%s2666 + $0x92] sm:$0xff]
      %v3268 = vld [vmem:[%s2666 + $0x9a] sm:$0xff]
      %v3269 = vld [vmem:[%s2666 + $0xaa] sm:$0xff]
      %v3270 = vld [vmem:[%s2666 + $0xb2] sm:$0xff]
      %v3271 = vld [vmem:[%s2666 + $0xc2] sm:$0xff]
      %v3272 = vld [vmem:[%s2666 + $0xca] sm:$0xff]
      %v3273 = vld [vmem:[%s2666 + $0xda] sm:$0xff]
      %v3274 = vld [vmem:[%s2666 + $0xe2] sm:$0xff]
      %v3275 = vld [vmem:[%s2666 + $0xf2] sm:$0xff]
      %v3276 = vld [vmem:[%s2666 + $0xfa] sm:$0xff]
      %v3277 = vld [vmem:[%s2666 + $0x10a] sm:$0xff]
      %v3278 = vld [vmem:[%s2666 + $0x112] sm:$0xff]
      %v3279 = vld [vmem:[%s2666 + $0x122] sm:$0xff]
      %v3280 = vld [vmem:[%s2666 + $0x12a] sm:$0xff]
      %v3281 = vld [vmem:[%s2666 + $0x13a] sm:$0xff]
      %v3282 = vld [vmem:[%s2666 + $0x142] sm:$0xff]
      %v3283 = vld [vmem:[%s2666 + $0x152] sm:$0xff]
      %v3284 = vld [vmem:[%s2666 + $0x15a] sm:$0xff]
      %v3285 = vld [vmem:[%s2666 + $0x16a] sm:$0xff]
      %v3286 = vld [vmem:[%s2666 + $0x172] sm:$0xff]
      %v3287 = vpack.c.bf16 %v3256, %v3255
      %v3288 = vpack.c.bf16 %v3258, %v3257
      %v3289 = vpack.c.bf16 %v3260, %v3259
      %v3290 = vpack.c.bf16 %v3262, %v3261
      %v3291 = vpack.c.bf16 %v3264, %v3263
      %v3292 = vpack.c.bf16 %v3266, %v3265
      %v3293 = vpack.c.bf16 %v3268, %v3267
      %v3294 = vpack.c.bf16 %v3270, %v3269
      %v3295 = vpack.c.bf16 %v3272, %v3271
      %v3296 = vpack.c.bf16 %v3274, %v3273
      %v3297 = vpack.c.bf16 %v3276, %v3275
      %v3298 = vpack.c.bf16 %v3278, %v3277
      %v3299 = vpack.c.bf16 %v3280, %v3279
      %v3300 = vpack.c.bf16 %v3282, %v3281
      %v3301 = vpack.c.bf16 %v3284, %v3283
      %v3302 = vpack.c.bf16 %v3286, %v3285
      %s3303 = scalar_lea.vmem %s4, 16
      %v3304 = vld [vmem:[%s3303] sm:$0x3]
      %v3306 = vsel %vm442, %v3287, 0
      %v3309 = vsel %vm442, %v3288, 0
      %v3312 = vsel %vm442, %v3289, 0
      %v3315 = vsel %vm442, %v3290, 0
      %v3318 = vsel %vm442, %v3291, 0
      %v3321 = vsel %vm442, %v3292, 0
      %v3324 = vsel %vm442, %v3293, 0
      %v3327 = vsel %vm442, %v3294, 0
      %v3330 = vsel %vm442, %v3295, 0
      %v3333 = vsel %vm442, %v3296, 0
      %v3336 = vsel %vm442, %v3297, 0
      %v3339 = vsel %vm442, %v3298, 0
      %v3342 = vsel %vm442, %v3299, 0
      %v3345 = vsel %vm442, %v3300, 0
      %v3348 = vsel %vm442, %v3301, 0
      %v3351 = vsel %vm442, %v3302, 0
      %v3354 = vsel %vm659, %v3304, 0
      %3356 = vmatprep.subr.bf16.mxu0 0
      %3357 = vmatpush1.bf16.msra.mxu0 %v3354
      %3358 = vmatprep.subr.bf16.mxu0 0
      %3359 = vmatpush1.bf16.msra.mxu0 0
      %3360 = vmatprep.subr.bf16.mxu0 0
      %3361 = vmatpush1.bf16.msra.mxu0 0
      %3362 = vmatprep.subr.bf16.mxu0 0
      %3363 = vmatpush1.bf16.msra.mxu0 0
      %3364 = vmatprep.subr.bf16.mxu0 0
      %3365 = vmatpush1.bf16.msra.mxu0 0
      %3366 = vmatprep.subr.bf16.mxu0 0
      %3367 = vmatpush1.bf16.msra.mxu0 0
      %3368 = vmatprep.subr.bf16.mxu0 0
      %3369 = vmatpush1.bf16.msra.mxu0 0
      %3370 = vmatprep.subr.bf16.mxu0 0
      %3371 = vmatpush1.bf16.msra.mxu0 0
      %3372 = vmatprep.subr.bf16.mxu0 0
      %3373 = vmatpush1.bf16.msra.mxu0 0
      %3374 = vmatprep.subr.bf16.mxu0 0
      %3375 = vmatpush1.bf16.msra.mxu0 0
      %3376 = vmatprep.subr.bf16.mxu0 0
      %3377 = vmatpush1.bf16.msra.mxu0 0
      %3378 = vmatprep.subr.bf16.mxu0 0
      %3379 = vmatpush1.bf16.msra.mxu0 0
      %3380 = vmatprep.subr.bf16.mxu0 0
      %3381 = vmatpush1.bf16.msra.mxu0 0
      %3382 = vmatprep.subr.bf16.mxu0 0
      %3383 = vmatpush1.bf16.msra.mxu0 0
      %3384 = vmatprep.subr.bf16.mxu0 0
      %3385 = vmatpush1.bf16.msra.mxu0 0
      %3386 = vmatprep.subr.bf16.mxu0 0
      %3387 = vmatpush1.bf16.msra.mxu0 0
      %3388 = vmatprep.mubr.bf16.mxu0 0
      %3389 = vmatmul.mubr.bf16.gmra.mrb[0].mxu0 %v3306
      %v3390 = vpop.f32.mrb[0].mxu0
      %v3391 = vadd.f32 0.0, %v3390
      %v3392 = vpop.f32.mrb[0].mxu0
      %v3393 = vpop.f32.mrb[0].mxu0
      %v3394 = vadd.f32 0.0, %v3393
      %v3395 = vpop.f32.mrb[0].mxu0
      %3396 = vmatprep.mubr.bf16.mxu0 0
      %3397 = vmatmul.mubr.bf16.gmra.mrb[0].mxu0 %v3309
      %v3398 = vpop.f32.mrb[0].mxu0
      %v3399 = vadd.f32 0.0, %v3398
      %v3400 = vpop.f32.mrb[0].mxu0
      %v3401 = vpop.f32.mrb[0].mxu0
      %v3402 = vadd.f32 0.0, %v3401
      %v3403 = vpop.f32.mrb[0].mxu0
      %3404 = vmatprep.mubr.bf16.mxu0 0
      %3405 = vmatmul.mubr.bf16.gmra.mrb[0].mxu0 %v3312
      %v3406 = vpop.f32.mrb[0].mxu0
      %v3407 = vadd.f32 0.0, %v3406
      %v3408 = vpop.f32.mrb[0].mxu0
      %v3409 = vpop.f32.mrb[0].mxu0
      %v3410 = vadd.f32 0.0, %v3409
      %v3411 = vpop.f32.mrb[0].mxu0
      %3412 = vmatprep.mubr.bf16.mxu0 0
      %3413 = vmatmul.mubr.bf16.gmra.mrb[0].mxu0 %v3315
      %v3414 = vpop.f32.mrb[0].mxu0
      %v3415 = vadd.f32 0.0, %v3414
      %v3416 = vpop.f32.mrb[0].mxu0
      %v3417 = vpop.f32.mrb[0].mxu0
      %v3418 = vadd.f32 0.0, %v3417
      %v3419 = vpop.f32.mrb[0].mxu0
      %3420 = vmatprep.mubr.bf16.mxu0 0
      %3421 = vmatmul.mubr.bf16.gmra.mrb[0].mxu0 %v3318
      %v3422 = vpop.f32.mrb[0].mxu0
      %v3423 = vadd.f32 0.0, %v3422
      %v3424 = vpop.f32.mrb[0].mxu0
      %v3425 = vpop.f32.mrb[0].mxu0
      %v3426 = vadd.f32 0.0, %v3425
      %v3427 = vpop.f32.mrb[0].mxu0
      %3428 = vmatprep.mubr.bf16.mxu0 0
      %3429 = vmatmul.mubr.bf16.gmra.mrb[0].mxu0 %v3321
      %v3430 = vpop.f32.mrb[0].mxu0
      %v3431 = vadd.f32 0.0, %v3430
      %v3432 = vpop.f32.mrb[0].mxu0
      %v3433 = vpop.f32.mrb[0].mxu0
      %v3434 = vadd.f32 0.0, %v3433
      %v3435 = vpop.f32.mrb[0].mxu0
      %3436 = vmatprep.mubr.bf16.mxu0 0
      %3437 = vmatmul.mubr.bf16.gmra.mrb[0].mxu0 %v3324
      %v3438 = vpop.f32.mrb[0].mxu0
      %v3439 = vadd.f32 0.0, %v3438
      %v3440 = vpop.f32.mrb[0].mxu0
      %v3441 = vpop.f32.mrb[0].mxu0
      %v3442 = vadd.f32 0.0, %v3441
      %v3443 = vpop.f32.mrb[0].mxu0
      %3444 = vmatprep.mubr.bf16.mxu0 0
      %3445 = vmatmul.mubr.bf16.gmra.mrb[0].mxu0 %v3327
      %v3446 = vpop.f32.mrb[0].mxu0
      %v3447 = vadd.f32 0.0, %v3446
      %v3448 = vpop.f32.mrb[0].mxu0
      %v3449 = vpop.f32.mrb[0].mxu0
      %v3450 = vadd.f32 0.0, %v3449
      %v3451 = vpop.f32.mrb[0].mxu0
      %3452 = vmatprep.mubr.bf16.mxu0 0
      %3453 = vmatmul.mubr.bf16.gmra.mrb[0].mxu0 %v3330
      %v3454 = vpop.f32.mrb[0].mxu0
      %v3455 = vadd.f32 0.0, %v3454
      %v3456 = vpop.f32.mrb[0].mxu0
      %v3457 = vpop.f32.mrb[0].mxu0
      %v3458 = vadd.f32 0.0, %v3457
      %v3459 = vpop.f32.mrb[0].mxu0
      %3460 = vmatprep.mubr.bf16.mxu0 0
      %3461 = vmatmul.mubr.bf16.gmra.mrb[0].mxu0 %v3333
      %v3462 = vpop.f32.mrb[0].mxu0
      %v3463 = vadd.f32 0.0, %v3462
      %v3464 = vpop.f32.mrb[0].mxu0
      %v3465 = vpop.f32.mrb[0].mxu0
      %v3466 = vadd.f32 0.0, %v3465
      %v3467 = vpop.f32.mrb[0].mxu0
      %3468 = vmatprep.mubr.bf16.mxu0 0
      %3469 = vmatmul.mubr.bf16.gmra.mrb[0].mxu0 %v3336
      %v3470 = vpop.f32.mrb[0].mxu0
      %v3471 = vadd.f32 0.0, %v3470
      %v3472 = vpop.f32.mrb[0].mxu0
      %v3473 = vpop.f32.mrb[0].mxu0
      %v3474 = vadd.f32 0.0, %v3473
      %v3475 = vpop.f32.mrb[0].mxu0
      %3476 = vmatprep.mubr.bf16.mxu0 0
      %3477 = vmatmul.mubr.bf16.gmra.mrb[0].mxu0 %v3339
      %v3478 = vpop.f32.mrb[0].mxu0
      %v3479 = vadd.f32 0.0, %v3478
      %v3480 = vpop.f32.mrb[0].mxu0
      %v3481 = vpop.f32.mrb[0].mxu0
      %v3482 = vadd.f32 0.0, %v3481
      %v3483 = vpop.f32.mrb[0].mxu0
      %3484 = vmatprep.mubr.bf16.mxu0 0
      %3485 = vmatmul.mubr.bf16.gmra.mrb[0].mxu0 %v3342
      %v3486 = vpop.f32.mrb[0].mxu0
      %v3487 = vadd.f32 0.0, %v3486
      %v3488 = vpop.f32.mrb[0].mxu0
      %v3489 = vpop.f32.mrb[0].mxu0
      %v3490 = vadd.f32 0.0, %v3489
      %v3491 = vpop.f32.mrb[0].mxu0
      %3492 = vmatprep.mubr.bf16.mxu0 0
      %3493 = vmatmul.mubr.bf16.gmra.mrb[0].mxu0 %v3345
      %v3494 = vpop.f32.mrb[0].mxu0
      %v3495 = vadd.f32 0.0, %v3494
      %v3496 = vpop.f32.mrb[0].mxu0
      %v3497 = vpop.f32.mrb[0].mxu0
      %v3498 = vadd.f32 0.0, %v3497
      %v3499 = vpop.f32.mrb[0].mxu0
      %3500 = vmatprep.mubr.bf16.mxu0 0
      %3501 = vmatmul.mubr.bf16.gmra.mrb[0].mxu0 %v3348
      %v3502 = vpop.f32.mrb[0].mxu0
      %v3503 = vadd.f32 0.0, %v3502
      %v3504 = vpop.f32.mrb[0].mxu0
      %v3505 = vpop.f32.mrb[0].mxu0
      %v3506 = vadd.f32 0.0, %v3505
      %v3507 = vpop.f32.mrb[0].mxu0
      %3508 = vmatprep.mubr.bf16.mxu0 0
      %3509 = vmatmul.mubr.bf16.gmra.mrb[0].mxu0 %v3351
      %v3510 = vpop.f32.mrb[0].mxu0
      %v3511 = vadd.f32 0.0, %v3510
      %v3512 = vpop.f32.mrb[0].mxu0
      %v3513 = vpop.f32.mrb[0].mxu0
      %v3514 = vadd.f32 0.0, %v3513
      %v3515 = vpop.f32.mrb[0].mxu0
      %3516 = vdwg.mxu0
      %v3517 = vadd.f32 %v3223, %v3391
      %v3518 = vadd.f32 %v3224, %v3394
      %v3519 = vadd.f32 %v3225, %v3399
      %v3520 = vadd.f32 %v3226, %v3402
      %v3521 = vadd.f32 %v3227, %v3407
      %v3522 = vadd.f32 %v3228, %v3410
      %v3523 = vadd.f32 %v3229, %v3415
      %v3524 = vadd.f32 %v3230, %v3418
      %v3525 = vadd.f32 %v3231, %v3423
      %v3526 = vadd.f32 %v3232, %v3426
      %v3527 = vadd.f32 %v3233, %v3431
      %v3528 = vadd.f32 %v3234, %v3434
      %v3529 = vadd.f32 %v3235, %v3439
      %v3530 = vadd.f32 %v3236, %v3442
      %v3531 = vadd.f32 %v3237, %v3447
      %v3532 = vadd.f32 %v3238, %v3450
      %v3533 = vadd.f32 %v3239, %v3455
      %v3534 = vadd.f32 %v3240, %v3458
      %v3535 = vadd.f32 %v3241, %v3463
      %v3536 = vadd.f32 %v3242, %v3466
      %v3537 = vadd.f32 %v3243, %v3471
      %v3538 = vadd.f32 %v3244, %v3474
      %v3539 = vadd.f32 %v3245, %v3479
      %v3540 = vadd.f32 %v3246, %v3482
      %v3541 = vadd.f32 %v3247, %v3487
      %v3542 = vadd.f32 %v3248, %v3490
      %v3543 = vadd.f32 %v3249, %v3495
      %v3544 = vadd.f32 %v3250, %v3498
      %v3545 = vadd.f32 %v3251, %v3503
      %v3546 = vadd.f32 %v3252, %v3506
      %v3547 = vadd.f32 %v3253, %v3511
      %v3548 = vadd.f32 %v3254, %v3514
      %v3549 = vld [vmem:[%s5] sm:$0x1]
      %v3551 = vlaneseq
      %v3552 = vshrl.u32 %v3551, 7
      %v3553 = vsub.s32 0, %v3552
      %v3554 = vrot.slane %v3549, %v3553
      %v3556 = vmul.f32 %v3517, %v3554
      %v3557 = vmul.f32 %v3518, %v3554
      %v3558 = vmul.f32 %v3519, %v3554
      %v3559 = vmul.f32 %v3520, %v3554
      %v3560 = vmul.f32 %v3521, %v3554
      %v3561 = vmul.f32 %v3522, %v3554
      %v3562 = vmul.f32 %v3523, %v3554
      %v3563 = vmul.f32 %v3524, %v3554
      %v3564 = vmul.f32 %v3525, %v3554
      %v3565 = vmul.f32 %v3526, %v3554
      %v3566 = vmul.f32 %v3527, %v3554
      %v3567 = vmul.f32 %v3528, %v3554
      %v3568 = vmul.f32 %v3529, %v3554
      %v3569 = vmul.f32 %v3530, %v3554
      %v3570 = vmul.f32 %v3531, %v3554
      %v3571 = vmul.f32 %v3532, %v3554
      %v3572 = vmul.f32 %v3533, %v3554
      %v3573 = vmul.f32 %v3534, %v3554
      %v3574 = vmul.f32 %v3535, %v3554
      %v3575 = vmul.f32 %v3536, %v3554
      %v3576 = vmul.f32 %v3537, %v3554
      %v3577 = vmul.f32 %v3538, %v3554
      %v3578 = vmul.f32 %v3539, %v3554
      %v3579 = vmul.f32 %v3540, %v3554
      %v3580 = vmul.f32 %v3541, %v3554
      %v3581 = vmul.f32 %v3542, %v3554
      %v3582 = vmul.f32 %v3543, %v3554
      %v3583 = vmul.f32 %v3544, %v3554
      %v3584 = vmul.f32 %v3545, %v3554
      %v3585 = vmul.f32 %v3546, %v3554
      %v3586 = vmul.f32 %v3547, %v3554
      %v3587 = vmul.f32 %v3548, %v3554
      %v3588 = vld [vmem:[%s6] sm:$0x1]
      %v3590 = vlaneseq
      %v3591 = vshrl.u32 %v3590, 7
      %v3592 = vsub.s32 0, %v3591
      %v3593 = vrot.slane %v3588, %v3592
      %v3595 = vadd.f32 %v3556, %v3593
      %v3596 = vadd.f32 %v3557, %v3593
      %v3597 = vadd.f32 %v3558, %v3593
      %v3598 = vadd.f32 %v3559, %v3593
      %v3599 = vadd.f32 %v3560, %v3593
      %v3600 = vadd.f32 %v3561, %v3593
      %v3601 = vadd.f32 %v3562, %v3593
      %v3602 = vadd.f32 %v3563, %v3593
      %v3603 = vadd.f32 %v3564, %v3593
      %v3604 = vadd.f32 %v3565, %v3593
      %v3605 = vadd.f32 %v3566, %v3593
      %v3606 = vadd.f32 %v3567, %v3593
      %v3607 = vadd.f32 %v3568, %v3593
      %v3608 = vadd.f32 %v3569, %v3593
      %v3609 = vadd.f32 %v3570, %v3593
      %v3610 = vadd.f32 %v3571, %v3593
      %v3611 = vadd.f32 %v3572, %v3593
      %v3612 = vadd.f32 %v3573, %v3593
      %v3613 = vadd.f32 %v3574, %v3593
      %v3614 = vadd.f32 %v3575, %v3593
      %v3615 = vadd.f32 %v3576, %v3593
      %v3616 = vadd.f32 %v3577, %v3593
      %v3617 = vadd.f32 %v3578, %v3593
      %v3618 = vadd.f32 %v3579, %v3593
      %v3619 = vadd.f32 %v3580, %v3593
      %v3620 = vadd.f32 %v3581, %v3593
      %v3621 = vadd.f32 %v3582, %v3593
      %v3622 = vadd.f32 %v3583, %v3593
      %v3623 = vadd.f32 %v3584, %v3593
      %v3624 = vadd.f32 %v3585, %v3593
      %v3625 = vadd.f32 %v3586, %v3593
      %v3626 = vadd.f32 %v3587, %v3593
      %v3627 = vmax.f32 %v3595, 0.0
      %v3628 = vmax.f32 %v3596, 0.0
      %v3629 = vmax.f32 %v3597, 0.0
      %v3630 = vmax.f32 %v3598, 0.0
      %v3631 = vmax.f32 %v3599, 0.0
      %v3632 = vmax.f32 %v3600, 0.0
      %v3633 = vmax.f32 %v3601, 0.0
      %v3634 = vmax.f32 %v3602, 0.0
      %v3635 = vmax.f32 %v3603, 0.0
      %v3636 = vmax.f32 %v3604, 0.0
      %v3637 = vmax.f32 %v3605, 0.0
      %v3638 = vmax.f32 %v3606, 0.0
      %v3639 = vmax.f32 %v3607, 0.0
      %v3640 = vmax.f32 %v3608, 0.0
      %v3641 = vmax.f32 %v3609, 0.0
      %v3642 = vmax.f32 %v3610, 0.0
      %v3643 = vmax.f32 %v3611, 0.0
      %v3644 = vmax.f32 %v3612, 0.0
      %v3645 = vmax.f32 %v3613, 0.0
      %v3646 = vmax.f32 %v3614, 0.0
      %v3647 = vmax.f32 %v3615, 0.0
      %v3648 = vmax.f32 %v3616, 0.0
      %v3649 = vmax.f32 %v3617, 0.0
      %v3650 = vmax.f32 %v3618, 0.0
      %v3651 = vmax.f32 %v3619, 0.0
      %v3652 = vmax.f32 %v3620, 0.0
      %v3653 = vmax.f32 %v3621, 0.0
      %v3654 = vmax.f32 %v3622, 0.0
      %v3655 = vmax.f32 %v3623, 0.0
      %v3656 = vmax.f32 %v3624, 0.0
      %v3657 = vmax.f32 %v3625, 0.0
      %v3658 = vmax.f32 %v3626, 0.0
      %v3659 = vpack.c.bf16 %v3628, %v3627
      %v3660 = vpack.c.bf16 %v3630, %v3629
      %v3661 = vpack.c.bf16 %v3632, %v3631
      %v3662 = vpack.c.bf16 %v3634, %v3633
      %v3663 = vpack.c.bf16 %v3636, %v3635
      %v3664 = vpack.c.bf16 %v3638, %v3637
      %v3665 = vpack.c.bf16 %v3640, %v3639
      %v3666 = vpack.c.bf16 %v3642, %v3641
      %v3667 = vpack.c.bf16 %v3644, %v3643
      %v3668 = vpack.c.bf16 %v3646, %v3645
      %v3669 = vpack.c.bf16 %v3648, %v3647
      %v3670 = vpack.c.bf16 %v3650, %v3649
      %v3671 = vpack.c.bf16 %v3652, %v3651
      %v3672 = vpack.c.bf16 %v3654, %v3653
      %v3673 = vpack.c.bf16 %v3656, %v3655
      %v3674 = vpack.c.bf16 %v3658, %v3657
      %v3675 = vld [vmem:[%s7] sm:$0x3]
      %v3677 = vsel %vm442, %v3659, 0
      %v3680 = vsel %vm442, %v3660, 0
      %v3683 = vsel %vm442, %v3661, 0
      %v3686 = vsel %vm442, %v3662, 0
      %v3689 = vsel %vm442, %v3663, 0
      %v3692 = vsel %vm442, %v3664, 0
      %v3695 = vsel %vm442, %v3665, 0
      %v3698 = vsel %vm442, %v3666, 0
      %v3701 = vsel %vm442, %v3667, 0
      %v3704 = vsel %vm442, %v3668, 0
      %v3707 = vsel %vm442, %v3669, 0
      %v3710 = vsel %vm442, %v3670, 0
      %v3713 = vsel %vm442, %v3671, 0
      %v3716 = vsel %vm442, %v3672, 0
      %v3719 = vsel %vm442, %v3673, 0
      %v3722 = vsel %vm442, %v3674, 0
      %v3725 = vsel %vm659, %v3675, 0
      %3727 = vmatprep.subr.bf16.mxu0 0
      %3728 = vmatpush1.bf16.msra.mxu0 %v3725
      %3729 = vmatprep.subr.bf16.mxu0 0
      %3730 = vmatpush1.bf16.msra.mxu0 0
      %3731 = vmatprep.subr.bf16.mxu0 0
      %3732 = vmatpush1.bf16.msra.mxu0 0
      %3733 = vmatprep.subr.bf16.mxu0 0
      %3734 = vmatpush1.bf16.msra.mxu0 0
      %3735 = vmatprep.subr.bf16.mxu0 0
      %3736 = vmatpush1.bf16.msra.mxu0 0
      %3737 = vmatprep.subr.bf16.mxu0 0
      %3738 = vmatpush1.bf16.msra.mxu0 0
      %3739 = vmatprep.subr.bf16.mxu0 0
      %3740 = vmatpush1.bf16.msra.mxu0 0
      %3741 = vmatprep.subr.bf16.mxu0 0
      %3742 = vmatpush1.bf16.msra.mxu0 0
      %3743 = vmatprep.subr.bf16.mxu0 0
      %3744 = vmatpush1.bf16.msra.mxu0 0
      %3745 = vmatprep.subr.bf16.mxu0 0
      %3746 = vmatpush1.bf16.msra.mxu0 0
      %3747 = vmatprep.subr.bf16.mxu0 0
      %3748 = vmatpush1.bf16.msra.mxu0 0
      %3749 = vmatprep.subr.bf16.mxu0 0
      %3750 = vmatpush1.bf16.msra.mxu0 0
      %3751 = vmatprep.subr.bf16.mxu0 0
      %3752 = vmatpush1.bf16.msra.mxu0 0
      %3753 = vmatprep.subr.bf16.mxu0 0
      %3754 = vmatpush1.bf16.msra.mxu0 0
      %3755 = vmatprep.subr.bf16.mxu0 0
      %3756 = vmatpush1.bf16.msra.mxu0 0
      %3757 = vmatprep.subr.bf16.mxu0 0
      %3758 = vmatpush1.bf16.msra.mxu0 0
      %3759 = vmatprep.mubr.bf16.mxu0 0
      %3760 = vmatmul.mubr.bf16.gmra.mrb[0].mxu0 %v3677
      %v3761 = vpop.f32.mrb[0].mxu0
      %v3762 = vadd.f32 0.0, %v3761
      %v3763 = vpop.f32.mrb[0].mxu0
      %v3764 = vpop.f32.mrb[0].mxu0
      %v3765 = vadd.f32 0.0, %v3764
      %v3766 = vpop.f32.mrb[0].mxu0
      %3767 = vmatprep.mubr.bf16.mxu0 0
      %3768 = vmatmul.mubr.bf16.gmra.mrb[0].mxu0 %v3680
      %v3769 = vpop.f32.mrb[0].mxu0
      %v3770 = vadd.f32 0.0, %v3769
      %v3771 = vpop.f32.mrb[0].mxu0
      %v3772 = vpop.f32.mrb[0].mxu0
      %v3773 = vadd.f32 0.0, %v3772
      %v3774 = vpop.f32.mrb[0].mxu0
      %3775 = vmatprep.mubr.bf16.mxu0 0
      %3776 = vmatmul.mubr.bf16.gmra.mrb[0].mxu0 %v3683
      %v3777 = vpop.f32.mrb[0].mxu0
      %v3778 = vadd.f32 0.0, %v3777
      %v3779 = vpop.f32.mrb[0].mxu0
      %v3780 = vpop.f32.mrb[0].mxu0
      %v3781 = vadd.f32 0.0, %v3780
      %v3782 = vpop.f32.mrb[0].mxu0
      %3783 = vmatprep.mubr.bf16.mxu0 0
      %3784 = vmatmul.mubr.bf16.gmra.mrb[0].mxu0 %v3686
      %v3785 = vpop.f32.mrb[0].mxu0
      %v3786 = vadd.f32 0.0, %v3785
      %v3787 = vpop.f32.mrb[0].mxu0
      %v3788 = vpop.f32.mrb[0].mxu0
      %v3789 = vadd.f32 0.0, %v3788
      %v3790 = vpop.f32.mrb[0].mxu0
      %3791 = vmatprep.mubr.bf16.mxu0 0
      %3792 = vmatmul.mubr.bf16.gmra.mrb[0].mxu0 %v3689
      %v3793 = vpop.f32.mrb[0].mxu0
      %v3794 = vadd.f32 0.0, %v3793
      %v3795 = vpop.f32.mrb[0].mxu0
      %v3796 = vpop.f32.mrb[0].mxu0
      %v3797 = vadd.f32 0.0, %v3796
      %v3798 = vpop.f32.mrb[0].mxu0
      %3799 = vmatprep.mubr.bf16.mxu0 0
      %3800 = vmatmul.mubr.bf16.gmra.mrb[0].mxu0 %v3692
      %v3801 = vpop.f32.mrb[0].mxu0
      %v3802 = vadd.f32 0.0, %v3801
      %v3803 = vpop.f32.mrb[0].mxu0
      %v3804 = vpop.f32.mrb[0].mxu0
      %v3805 = vadd.f32 0.0, %v3804
      %v3806 = vpop.f32.mrb[0].mxu0
      %3807 = vmatprep.mubr.bf16.mxu0 0
      %3808 = vmatmul.mubr.bf16.gmra.mrb[0].mxu0 %v3695
      %v3809 = vpop.f32.mrb[0].mxu0
      %v3810 = vadd.f32 0.0, %v3809
      %v3811 = vpop.f32.mrb[0].mxu0
      %v3812 = vpop.f32.mrb[0].mxu0
      %v3813 = vadd.f32 0.0, %v3812
      %v3814 = vpop.f32.mrb[0].mxu0
      %3815 = vmatprep.mubr.bf16.mxu0 0
      %3816 = vmatmul.mubr.bf16.gmra.mrb[0].mxu0 %v3698
      %v3817 = vpop.f32.mrb[0].mxu0
      %v3818 = vadd.f32 0.0, %v3817
      %v3819 = vpop.f32.mrb[0].mxu0
      %v3820 = vpop.f32.mrb[0].mxu0
      %v3821 = vadd.f32 0.0, %v3820
      %v3822 = vpop.f32.mrb[0].mxu0
      %3823 = vmatprep.mubr.bf16.mxu0 0
      %3824 = vmatmul.mubr.bf16.gmra.mrb[0].mxu0 %v3701
      %v3825 = vpop.f32.mrb[0].mxu0
      %v3826 = vadd.f32 0.0, %v3825
      %v3827 = vpop.f32.mrb[0].mxu0
      %v3828 = vpop.f32.mrb[0].mxu0
      %v3829 = vadd.f32 0.0, %v3828
      %v3830 = vpop.f32.mrb[0].mxu0
      %3831 = vmatprep.mubr.bf16.mxu0 0
      %3832 = vmatmul.mubr.bf16.gmra.mrb[0].mxu0 %v3704
      %v3833 = vpop.f32.mrb[0].mxu0
      %v3834 = vadd.f32 0.0, %v3833
      %v3835 = vpop.f32.mrb[0].mxu0
      %v3836 = vpop.f32.mrb[0].mxu0
      %v3837 = vadd.f32 0.0, %v3836
      %v3838 = vpop.f32.mrb[0].mxu0
      %3839 = vmatprep.mubr.bf16.mxu0 0
      %3840 = vmatmul.mubr.bf16.gmra.mrb[0].mxu0 %v3707
      %v3841 = vpop.f32.mrb[0].mxu0
      %v3842 = vadd.f32 0.0, %v3841
      %v3843 = vpop.f32.mrb[0].mxu0
      %v3844 = vpop.f32.mrb[0].mxu0
      %v3845 = vadd.f32 0.0, %v3844
      %v3846 = vpop.f32.mrb[0].mxu0
      %3847 = vmatprep.mubr.bf16.mxu0 0
      %3848 = vmatmul.mubr.bf16.gmra.mrb[0].mxu0 %v3710
      %v3849 = vpop.f32.mrb[0].mxu0
      %v3850 = vadd.f32 0.0, %v3849
      %v3851 = vpop.f32.mrb[0].mxu0
      %v3852 = vpop.f32.mrb[0].mxu0
      %v3853 = vadd.f32 0.0, %v3852
      %v3854 = vpop.f32.mrb[0].mxu0
      %3855 = vmatprep.mubr.bf16.mxu0 0
      %3856 = vmatmul.mubr.bf16.gmra.mrb[0].mxu0 %v3713
      %v3857 = vpop.f32.mrb[0].mxu0
      %v3858 = vadd.f32 0.0, %v3857
      %v3859 = vpop.f32.mrb[0].mxu0
      %v3860 = vpop.f32.mrb[0].mxu0
      %v3861 = vadd.f32 0.0, %v3860
      %v3862 = vpop.f32.mrb[0].mxu0
      %3863 = vmatprep.mubr.bf16.mxu0 0
      %3864 = vmatmul.mubr.bf16.gmra.mrb[0].mxu0 %v3716
      %v3865 = vpop.f32.mrb[0].mxu0
      %v3866 = vadd.f32 0.0, %v3865
      %v3867 = vpop.f32.mrb[0].mxu0
      %v3868 = vpop.f32.mrb[0].mxu0
      %v3869 = vadd.f32 0.0, %v3868
      %v3870 = vpop.f32.mrb[0].mxu0
      %3871 = vmatprep.mubr.bf16.mxu0 0
      %3872 = vmatmul.mubr.bf16.gmra.mrb[0].mxu0 %v3719
      %v3873 = vpop.f32.mrb[0].mxu0
      %v3874 = vadd.f32 0.0, %v3873
      %v3875 = vpop.f32.mrb[0].mxu0
      %v3876 = vpop.f32.mrb[0].mxu0
      %v3877 = vadd.f32 0.0, %v3876
      %v3878 = vpop.f32.mrb[0].mxu0
      %3879 = vmatprep.mubr.bf16.mxu0 0
      %3880 = vmatmul.mubr.bf16.gmra.mrb[0].mxu0 %v3722
      %v3881 = vpop.f32.mrb[0].mxu0
      %v3882 = vadd.f32 0.0, %v3881
      %v3883 = vpop.f32.mrb[0].mxu0
      %v3884 = vpop.f32.mrb[0].mxu0
      %v3885 = vadd.f32 0.0, %v3884
      %v3886 = vpop.f32.mrb[0].mxu0
      %3887 = vdwg.mxu0
      %v3888 = vld [vmem:[%s8] sm:$0x1]
      %v3890 = vlaneseq
      %v3891 = vshrl.u32 %v3890, 7
      %v3892 = vsub.s32 0, %v3891
      %v3893 = vrot.slane %v3888, %v3892
      %v3895 = vmul.f32 %v3762, %v3893
      %v3896 = vmul.f32 %v3765, %v3893
      %v3897 = vmul.f32 %v3770, %v3893
      %v3898 = vmul.f32 %v3773, %v3893
      %v3899 = vmul.f32 %v3778, %v3893
      %v3900 = vmul.f32 %v3781, %v3893
      %v3901 = vmul.f32 %v3786, %v3893
      %v3902 = vmul.f32 %v3789, %v3893
      %v3903 = vmul.f32 %v3794, %v3893
      %v3904 = vmul.f32 %v3797, %v3893
      %v3905 = vmul.f32 %v3802, %v3893
      %v3906 = vmul.f32 %v3805, %v3893
      %v3907 = vmul.f32 %v3810, %v3893
      %v3908 = vmul.f32 %v3813, %v3893
      %v3909 = vmul.f32 %v3818, %v3893
      %v3910 = vmul.f32 %v3821, %v3893
      %v3911 = vmul.f32 %v3826, %v3893
      %v3912 = vmul.f32 %v3829, %v3893
      %v3913 = vmul.f32 %v3834, %v3893
      %v3914 = vmul.f32 %v3837, %v3893
      %v3915 = vmul.f32 %v3842, %v3893
      %v3916 = vmul.f32 %v3845, %v3893
      %v3917 = vmul.f32 %v3850, %v3893
      %v3918 = vmul.f32 %v3853, %v3893
      %v3919 = vmul.f32 %v3858, %v3893
      %v3920 = vmul.f32 %v3861, %v3893
      %v3921 = vmul.f32 %v3866, %v3893
      %v3922 = vmul.f32 %v3869, %v3893
      %v3923 = vmul.f32 %v3874, %v3893
      %v3924 = vmul.f32 %v3877, %v3893
      %v3925 = vmul.f32 %v3882, %v3893
      %v3926 = vmul.f32 %v3885, %v3893
      %v3927 = vld [vmem:[%s9] sm:$0x1]
      %v3929 = vlaneseq
      %v3930 = vshrl.u32 %v3929, 7
      %v3931 = vsub.s32 0, %v3930
      %v3932 = vrot.slane %v3927, %v3931
      %v3934 = vadd.f32 %v3895, %v3932
      %v3935 = vadd.f32 %v3896, %v3932
      %v3936 = vadd.f32 %v3897, %v3932
      %v3937 = vadd.f32 %v3898, %v3932
      %v3938 = vadd.f32 %v3899, %v3932
      %v3939 = vadd.f32 %v3900, %v3932
      %v3940 = vadd.f32 %v3901, %v3932
      %v3941 = vadd.f32 %v3902, %v3932
      %v3942 = vadd.f32 %v3903, %v3932
      %v3943 = vadd.f32 %v3904, %v3932
      %v3944 = vadd.f32 %v3905, %v3932
      %v3945 = vadd.f32 %v3906, %v3932
      %v3946 = vadd.f32 %v3907, %v3932
      %v3947 = vadd.f32 %v3908, %v3932
      %v3948 = vadd.f32 %v3909, %v3932
      %v3949 = vadd.f32 %v3910, %v3932
      %v3950 = vadd.f32 %v3911, %v3932
      %v3951 = vadd.f32 %v3912, %v3932
      %v3952 = vadd.f32 %v3913, %v3932
      %v3953 = vadd.f32 %v3914, %v3932
      %v3954 = vadd.f32 %v3915, %v3932
      %v3955 = vadd.f32 %v3916, %v3932
      %v3956 = vadd.f32 %v3917, %v3932
      %v3957 = vadd.f32 %v3918, %v3932
      %v3958 = vadd.f32 %v3919, %v3932
      %v3959 = vadd.f32 %v3920, %v3932
      %v3960 = vadd.f32 %v3921, %v3932
      %v3961 = vadd.f32 %v3922, %v3932
      %v3962 = vadd.f32 %v3923, %v3932
      %v3963 = vadd.f32 %v3924, %v3932
      %v3964 = vadd.f32 %v3925, %v3932
      %v3965 = vadd.f32 %v3926, %v3932
      %v3966 = vld [vmem:[%s10] sm:$0x3]
      %v3968 = vsel %vm659, %v3966, 0
      %3970 = vmatprep.subr.bf16.mxu0 0
      %3971 = vmatpush1.bf16.msra.mxu0 %v3968
      %3972 = vmatprep.subr.bf16.mxu0 0
      %3973 = vmatpush1.bf16.msra.mxu0 0
      %3974 = vmatprep.subr.bf16.mxu0 0
      %3975 = vmatpush1.bf16.msra.mxu0 0
      %3976 = vmatprep.subr.bf16.mxu0 0
      %3977 = vmatpush1.bf16.msra.mxu0 0
      %3978 = vmatprep.subr.bf16.mxu0 0
      %3979 = vmatpush1.bf16.msra.mxu0 0
      %3980 = vmatprep.subr.bf16.mxu0 0
      %3981 = vmatpush1.bf16.msra.mxu0 0
      %3982 = vmatprep.subr.bf16.mxu0 0
      %3983 = vmatpush1.bf16.msra.mxu0 0
      %3984 = vmatprep.subr.bf16.mxu0 0
      %3985 = vmatpush1.bf16.msra.mxu0 0
      %3986 = vmatprep.subr.bf16.mxu0 0
      %3987 = vmatpush1.bf16.msra.mxu0 0
      %3988 = vmatprep.subr.bf16.mxu0 0
      %3989 = vmatpush1.bf16.msra.mxu0 0
      %3990 = vmatprep.subr.bf16.mxu0 0
      %3991 = vmatpush1.bf16.msra.mxu0 0
      %3992 = vmatprep.subr.bf16.mxu0 0
      %3993 = vmatpush1.bf16.msra.mxu0 0
      %3994 = vmatprep.subr.bf16.mxu0 0
      %3995 = vmatpush1.bf16.msra.mxu0 0
      %3996 = vmatprep.subr.bf16.mxu0 0
      %3997 = vmatpush1.bf16.msra.mxu0 0
      %3998 = vmatprep.subr.bf16.mxu0 0
      %3999 = vmatpush1.bf16.msra.mxu0 0
      %4000 = vmatprep.subr.bf16.mxu0 0
      %4001 = vmatpush1.bf16.msra.mxu0 0
      %4002 = vmatprep.mubr.bf16.mxu0 0
      %4003 = vmatmul.mubr.bf16.gmra.mrb[0].mxu0 %v612
      %v4004 = vpop.f32.mrb[0].mxu0
      %v4005 = vadd.f32 0.0, %v4004
      %v4006 = vpop.f32.mrb[0].mxu0
      %v4007 = vpop.f32.mrb[0].mxu0
      %v4008 = vadd.f32 0.0, %v4007
      %v4009 = vpop.f32.mrb[0].mxu0
      %4010 = vmatprep.mubr.bf16.mxu0 0
      %4011 = vmatmul.mubr.bf16.gmra.mrb[0].mxu0 %v615
      %v4012 = vpop.f32.mrb[0].mxu0
      %v4013 = vadd.f32 0.0, %v4012
      %v4014 = vpop.f32.mrb[0].mxu0
      %v4015 = vpop.f32.mrb[0].mxu0
      %v4016 = vadd.f32 0.0, %v4015
      %v4017 = vpop.f32.mrb[0].mxu0
      %4018 = vmatprep.mubr.bf16.mxu0 0
      %4019 = vmatmul.mubr.bf16.gmra.mrb[0].mxu0 %v618
      %v4020 = vpop.f32.mrb[0].mxu0
      %v4021 = vadd.f32 0.0, %v4020
      %v4022 = vpop.f32.mrb[0].mxu0
      %v4023 = vpop.f32.mrb[0].mxu0
      %v4024 = vadd.f32 0.0, %v4023
      %v4025 = vpop.f32.mrb[0].mxu0
      %4026 = vmatprep.mubr.bf16.mxu0 0
      %4027 = vmatmul.mubr.bf16.gmra.mrb[0].mxu0 %v621
      %v4028 = vpop.f32.mrb[0].mxu0
      %v4029 = vadd.f32 0.0, %v4028
      %v4030 = vpop.f32.mrb[0].mxu0
      %v4031 = vpop.f32.mrb[0].mxu0
      %v4032 = vadd.f32 0.0, %v4031
      %v4033 = vpop.f32.mrb[0].mxu0
      %4034 = vmatprep.mubr.bf16.mxu0 0
      %4035 = vmatmul.mubr.bf16.gmra.mrb[0].mxu0 %v624
      %v4036 = vpop.f32.mrb[0].mxu0
      %v4037 = vadd.f32 0.0, %v4036
      %v4038 = vpop.f32.mrb[0].mxu0
      %v4039 = vpop.f32.mrb[0].mxu0
      %v4040 = vadd.f32 0.0, %v4039
      %v4041 = vpop.f32.mrb[0].mxu0
      %4042 = vmatprep.mubr.bf16.mxu0 0
      %4043 = vmatmul.mubr.bf16.gmra.mrb[0].mxu0 %v627
      %v4044 = vpop.f32.mrb[0].mxu0
      %v4045 = vadd.f32 0.0, %v4044
      %v4046 = vpop.f32.mrb[0].mxu0
      %v4047 = vpop.f32.mrb[0].mxu0
      %v4048 = vadd.f32 0.0, %v4047
      %v4049 = vpop.f32.mrb[0].mxu0
      %4050 = vmatprep.mubr.bf16.mxu0 0
      %4051 = vmatmul.mubr.bf16.gmra.mrb[0].mxu0 %v630
      %v4052 = vpop.f32.mrb[0].mxu0
      %v4053 = vadd.f32 0.0, %v4052
      %v4054 = vpop.f32.mrb[0].mxu0
      %v4055 = vpop.f32.mrb[0].mxu0
      %v4056 = vadd.f32 0.0, %v4055
      %v4057 = vpop.f32.mrb[0].mxu0
      %4058 = vmatprep.mubr.bf16.mxu0 0
      %4059 = vmatmul.mubr.bf16.gmra.mrb[0].mxu0 %v633
      %v4060 = vpop.f32.mrb[0].mxu0
      %v4061 = vadd.f32 0.0, %v4060
      %v4062 = vpop.f32.mrb[0].mxu0
      %v4063 = vpop.f32.mrb[0].mxu0
      %v4064 = vadd.f32 0.0, %v4063
      %v4065 = vpop.f32.mrb[0].mxu0
      %4066 = vmatprep.mubr.bf16.mxu0 0
      %4067 = vmatmul.mubr.bf16.gmra.mrb[0].mxu0 %v636
      %v4068 = vpop.f32.mrb[0].mxu0
      %v4069 = vadd.f32 0.0, %v4068
      %v4070 = vpop.f32.mrb[0].mxu0
      %v4071 = vpop.f32.mrb[0].mxu0
      %v4072 = vadd.f32 0.0, %v4071
      %v4073 = vpop.f32.mrb[0].mxu0
      %4074 = vmatprep.mubr.bf16.mxu0 0
      %4075 = vmatmul.mubr.bf16.gmra.mrb[0].mxu0 %v639
      %v4076 = vpop.f32.mrb[0].mxu0
      %v4077 = vadd.f32 0.0, %v4076
      %v4078 = vpop.f32.mrb[0].mxu0
      %v4079 = vpop.f32.mrb[0].mxu0
      %v4080 = vadd.f32 0.0, %v4079
      %v4081 = vpop.f32.mrb[0].mxu0
      %4082 = vmatprep.mubr.bf16.mxu0 0
      %4083 = vmatmul.mubr.bf16.gmra.mrb[0].mxu0 %v642
      %v4084 = vpop.f32.mrb[0].mxu0
      %v4085 = vadd.f32 0.0, %v4084
      %v4086 = vpop.f32.mrb[0].mxu0
      %v4087 = vpop.f32.mrb[0].mxu0
      %v4088 = vadd.f32 0.0, %v4087
      %v4089 = vpop.f32.mrb[0].mxu0
      %4090 = vmatprep.mubr.bf16.mxu0 0
      %4091 = vmatmul.mubr.bf16.gmra.mrb[0].mxu0 %v645
      %v4092 = vpop.f32.mrb[0].mxu0
      %v4093 = vadd.f32 0.0, %v4092
      %v4094 = vpop.f32.mrb[0].mxu0
      %v4095 = vpop.f32.mrb[0].mxu0
      %v4096 = vadd.f32 0.0, %v4095
      %v4097 = vpop.f32.mrb[0].mxu0
      %4098 = vmatprep.mubr.bf16.mxu0 0
      %4099 = vmatmul.mubr.bf16.gmra.mrb[0].mxu0 %v648
      %v4100 = vpop.f32.mrb[0].mxu0
      %v4101 = vadd.f32 0.0, %v4100
      %v4102 = vpop.f32.mrb[0].mxu0
      %v4103 = vpop.f32.mrb[0].mxu0
      %v4104 = vadd.f32 0.0, %v4103
      %v4105 = vpop.f32.mrb[0].mxu0
      %4106 = vmatprep.mubr.bf16.mxu0 0
      %4107 = vmatmul.mubr.bf16.gmra.mrb[0].mxu0 %v651
      %v4108 = vpop.f32.mrb[0].mxu0
      %v4109 = vadd.f32 0.0, %v4108
      %v4110 = vpop.f32.mrb[0].mxu0
      %v4111 = vpop.f32.mrb[0].mxu0
      %v4112 = vadd.f32 0.0, %v4111
      %v4113 = vpop.f32.mrb[0].mxu0
      %4114 = vmatprep.mubr.bf16.mxu0 0
      %4115 = vmatmul.mubr.bf16.gmra.mrb[0].mxu0 %v654
      %v4116 = vpop.f32.mrb[0].mxu0
      %v4117 = vadd.f32 0.0, %v4116
      %v4118 = vpop.f32.mrb[0].mxu0
      %v4119 = vpop.f32.mrb[0].mxu0
      %v4120 = vadd.f32 0.0, %v4119
      %v4121 = vpop.f32.mrb[0].mxu0
      %4122 = vmatprep.mubr.bf16.mxu0 0
      %4123 = vmatmul.mubr.bf16.gmra.mrb[0].mxu0 %v657
      %v4124 = vpop.f32.mrb[0].mxu0
      %v4125 = vadd.f32 0.0, %v4124
      %v4126 = vpop.f32.mrb[0].mxu0
      %v4127 = vpop.f32.mrb[0].mxu0
      %v4128 = vadd.f32 0.0, %v4127
      %v4129 = vpop.f32.mrb[0].mxu0
      %4130 = vdwg.mxu0
      %v4131 = vld [vmem:[%s11] sm:$0x1]
      %v4133 = vlaneseq
      %v4134 = vshrl.u32 %v4133, 7
      %v4135 = vsub.s32 0, %v4134
      %v4136 = vrot.slane %v4131, %v4135
      %v4138 = vmul.f32 %v4005, %v4136
      %v4139 = vmul.f32 %v4008, %v4136
      %v4140 = vmul.f32 %v4013, %v4136
      %v4141 = vmul.f32 %v4016, %v4136
      %v4142 = vmul.f32 %v4021, %v4136
      %v4143 = vmul.f32 %v4024, %v4136
      %v4144 = vmul.f32 %v4029, %v4136
      %v4145 = vmul.f32 %v4032, %v4136
      %v4146 = vmul.f32 %v4037, %v4136
      %v4147 = vmul.f32 %v4040, %v4136
      %v4148 = vmul.f32 %v4045, %v4136
      %v4149 = vmul.f32 %v4048, %v4136
      %v4150 = vmul.f32 %v4053, %v4136
      %v4151 = vmul.f32 %v4056, %v4136
      %v4152 = vmul.f32 %v4061, %v4136
      %v4153 = vmul.f32 %v4064, %v4136
      %v4154 = vmul.f32 %v4069, %v4136
      %v4155 = vmul.f32 %v4072, %v4136
      %v4156 = vmul.f32 %v4077, %v4136
      %v4157 = vmul.f32 %v4080, %v4136
      %v4158 = vmul.f32 %v4085, %v4136
      %v4159 = vmul.f32 %v4088, %v4136
      %v4160 = vmul.f32 %v4093, %v4136
      %v4161 = vmul.f32 %v4096, %v4136
      %v4162 = vmul.f32 %v4101, %v4136
      %v4163 = vmul.f32 %v4104, %v4136
      %v4164 = vmul.f32 %v4109, %v4136
      %v4165 = vmul.f32 %v4112, %v4136
      %v4166 = vmul.f32 %v4117, %v4136
      %v4167 = vmul.f32 %v4120, %v4136
      %v4168 = vmul.f32 %v4125, %v4136
      %v4169 = vmul.f32 %v4128, %v4136
      %v4170 = vld [vmem:[%s12] sm:$0x1]
      %v4172 = vlaneseq
      %v4173 = vshrl.u32 %v4172, 7
      %v4174 = vsub.s32 0, %v4173
      %v4175 = vrot.slane %v4170, %v4174
      %v4177 = vadd.f32 %v4138, %v4175
      %v4178 = vadd.f32 %v4139, %v4175
      %v4179 = vadd.f32 %v4140, %v4175
      %v4180 = vadd.f32 %v4141, %v4175
      %v4181 = vadd.f32 %v4142, %v4175
      %v4182 = vadd.f32 %v4143, %v4175
      %v4183 = vadd.f32 %v4144, %v4175
      %v4184 = vadd.f32 %v4145, %v4175
      %v4185 = vadd.f32 %v4146, %v4175
      %v4186 = vadd.f32 %v4147, %v4175
      %v4187 = vadd.f32 %v4148, %v4175
      %v4188 = vadd.f32 %v4149, %v4175
      %v4189 = vadd.f32 %v4150, %v4175
      %v4190 = vadd.f32 %v4151, %v4175
      %v4191 = vadd.f32 %v4152, %v4175
      %v4192 = vadd.f32 %v4153, %v4175
      %v4193 = vadd.f32 %v4154, %v4175
      %v4194 = vadd.f32 %v4155, %v4175
      %v4195 = vadd.f32 %v4156, %v4175
      %v4196 = vadd.f32 %v4157, %v4175
      %v4197 = vadd.f32 %v4158, %v4175
      %v4198 = vadd.f32 %v4159, %v4175
      %v4199 = vadd.f32 %v4160, %v4175
      %v4200 = vadd.f32 %v4161, %v4175
      %v4201 = vadd.f32 %v4162, %v4175
      %v4202 = vadd.f32 %v4163, %v4175
      %v4203 = vadd.f32 %v4164, %v4175
      %v4204 = vadd.f32 %v4165, %v4175
      %v4205 = vadd.f32 %v4166, %v4175
      %v4206 = vadd.f32 %v4167, %v4175
      %v4207 = vadd.f32 %v4168, %v4175
      %v4208 = vadd.f32 %v4169, %v4175
      %v4209 = vadd.f32 %v3934, %v4177
      %v4210 = vadd.f32 %v3935, %v4178
      %v4211 = vadd.f32 %v3936, %v4179
      %v4212 = vadd.f32 %v3937, %v4180
      %v4213 = vadd.f32 %v3938, %v4181
      %v4214 = vadd.f32 %v3939, %v4182
      %v4215 = vadd.f32 %v3940, %v4183
      %v4216 = vadd.f32 %v3941, %v4184
      %v4217 = vadd.f32 %v3942, %v4185
      %v4218 = vadd.f32 %v3943, %v4186
      %v4219 = vadd.f32 %v3944, %v4187
      %v4220 = vadd.f32 %v3945, %v4188
      %v4221 = vadd.f32 %v3946, %v4189
      %v4222 = vadd.f32 %v3947, %v4190
      %v4223 = vadd.f32 %v3948, %v4191
      %v4224 = vadd.f32 %v3949, %v4192
      %v4225 = vadd.f32 %v3950, %v4193
      %v4226 = vadd.f32 %v3951, %v4194
      %v4227 = vadd.f32 %v3952, %v4195
      %v4228 = vadd.f32 %v3953, %v4196
      %v4229 = vadd.f32 %v3954, %v4197
      %v4230 = vadd.f32 %v3955, %v4198
      %v4231 = vadd.f32 %v3956, %v4199
      %v4232 = vadd.f32 %v3957, %v4200
      %v4233 = vadd.f32 %v3958, %v4201
      %v4234 = vadd.f32 %v3959, %v4202
      %v4235 = vadd.f32 %v3960, %v4203
      %v4236 = vadd.f32 %v3961, %v4204
      %v4237 = vadd.f32 %v3962, %v4205
      %v4238 = vadd.f32 %v3963, %v4206
      %v4239 = vadd.f32 %v3964, %v4207
      %v4240 = vadd.f32 %v3965, %v4208
      %v4241 = vmax.f32 %v4209, 0.0
      %v4242 = vmax.f32 %v4210, 0.0
      %v4243 = vmax.f32 %v4211, 0.0
      %v4244 = vmax.f32 %v4212, 0.0
      %v4245 = vmax.f32 %v4213, 0.0
      %v4246 = vmax.f32 %v4214, 0.0
      %v4247 = vmax.f32 %v4215, 0.0
      %v4248 = vmax.f32 %v4216, 0.0
      %v4249 = vmax.f32 %v4217, 0.0
      %v4250 = vmax.f32 %v4218, 0.0
      %v4251 = vmax.f32 %v4219, 0.0
      %v4252 = vmax.f32 %v4220, 0.0
      %v4253 = vmax.f32 %v4221, 0.0
      %v4254 = vmax.f32 %v4222, 0.0
      %v4255 = vmax.f32 %v4223, 0.0
      %v4256 = vmax.f32 %v4224, 0.0
      %v4257 = vmax.f32 %v4225, 0.0
      %v4258 = vmax.f32 %v4226, 0.0
      %v4259 = vmax.f32 %v4227, 0.0
      %v4260 = vmax.f32 %v4228, 0.0
      %v4261 = vmax.f32 %v4229, 0.0
      %v4262 = vmax.f32 %v4230, 0.0
      %v4263 = vmax.f32 %v4231, 0.0
      %v4264 = vmax.f32 %v4232, 0.0
      %v4265 = vmax.f32 %v4233, 0.0
      %v4266 = vmax.f32 %v4234, 0.0
      %v4267 = vmax.f32 %v4235, 0.0
      %v4268 = vmax.f32 %v4236, 0.0
      %v4269 = vmax.f32 %v4237, 0.0
      %v4270 = vmax.f32 %v4238, 0.0
      %v4271 = vmax.f32 %v4239, 0.0
      %v4272 = vmax.f32 %v4240, 0.0
      %vm4273 = vcmask 130048
      %4274 = vst.msk [vmem:[%s440] sm:$0xff] %vm4273, %v4241
      %4275 = vst.msk [vmem:[%s440 + $0x8] sm:$0xff] %vm4273, %v4242
      %4276 = vst.msk [vmem:[%s440 + $0x10] sm:$0xff] %vm4273, %v4243
      %4277 = vst.msk [vmem:[%s440 + $0x18] sm:$0xff] %vm4273, %v4244
      %4278 = vst.msk [vmem:[%s440 + $0x20] sm:$0xff] %vm4273, %v4245
      %4279 = vst.msk [vmem:[%s440 + $0x28] sm:$0xff] %vm4273, %v4246
      %4280 = vst.msk [vmem:[%s440 + $0x30] sm:$0xff] %vm4273, %v4247
      %4281 = vst.msk [vmem:[%s440 + $0x38] sm:$0xff] %vm4273, %v4248
      %4282 = vst.msk [vmem:[%s440 + $0x40] sm:$0xff] %vm4273, %v4249
      %4283 = vst.msk [vmem:[%s440 + $0x48] sm:$0xff] %vm4273, %v4250
      %4284 = vst.msk [vmem:[%s440 + $0x50] sm:$0xff] %vm4273, %v4251
      %4285 = vst.msk [vmem:[%s440 + $0x58] sm:$0xff] %vm4273, %v4252
      %4286 = vst.msk [vmem:[%s440 + $0x60] sm:$0xff] %vm4273, %v4253
      %4287 = vst.msk [vmem:[%s440 + $0x68] sm:$0xff] %vm4273, %v4254
      %4288 = vst.msk [vmem:[%s440 + $0x70] sm:$0xff] %vm4273, %v4255
      %4289 = vst.msk [vmem:[%s440 + $0x78] sm:$0xff] %vm4273, %v4256
      %4290 = vst.msk [vmem:[%s440 + $0x80] sm:$0xff] %vm4273, %v4257
      %4291 = vst.msk [vmem:[%s440 + $0x88] sm:$0xff] %vm4273, %v4258
      %4292 = vst.msk [vmem:[%s440 + $0x90] sm:$0xff] %vm4273, %v4259
      %4293 = vst.msk [vmem:[%s440 + $0x98] sm:$0xff] %vm4273, %v4260
      %4294 = vst.msk [vmem:[%s440 + $0xa0] sm:$0xff] %vm4273, %v4261
      %4295 = vst.msk [vmem:[%s440 + $0xa8] sm:$0xff] %vm4273, %v4262
      %4296 = vst.msk [vmem:[%s440 + $0xb0] sm:$0xff] %vm4273, %v4263
      %4297 = vst.msk [vmem:[%s440 + $0xb8] sm:$0xff] %vm4273, %v4264
      %4298 = vst.msk [vmem:[%s440 + $0xc0] sm:$0xff] %vm4273, %v4265
      %4299 = vst.msk [vmem:[%s440 + $0xc8] sm:$0xff] %vm4273, %v4266
      %4300 = vst.msk [vmem:[%s440 + $0xd0] sm:$0xff] %vm4273, %v4267
      %4301 = vst.msk [vmem:[%s440 + $0xd8] sm:$0xff] %vm4273, %v4268
      %4302 = vst.msk [vmem:[%s440 + $0xe0] sm:$0xff] %vm4273, %v4269
      %4303 = vst.msk [vmem:[%s440 + $0xe8] sm:$0xff] %vm4273, %v4270
      %4304 = vst.msk [vmem:[%s440 + $0xf0] sm:$0xff] %vm4273, %v4271
      %4305 = vst.msk [vmem:[%s440 + $0xf8] sm:$0xff] %vm4273, %v4272
      %p4306 = scmp.lt.s32.totalorder %s24, 1
      %s4307 = scalar_select %p4306, %s24, 1
      %s4308 = smul.addr %s4307, 32
      %s4309 = smul.addr %s4308, 8
      %s4310 = scalar_lea.vmem %s13, %s4309
      // Predicated region
      $region73: #{tpu_custom_call.1} parent=71 // pred_check
        %p4311 = pneg %p320
      $region74: #{tpu_custom_call.1} parent=71 // pred_check_branch
        %4313 = sbr.rel (%p4311) target = $region76
      $region75: #{tpu_custom_call.1} parent=71 // pred_region
        _
      $region76: #{tpu_custom_call.1} parent=71 // pred_fallthru
        _
    $region72: #{tpu_custom_call.1} parent=5 // pred_fallthru
      _
    %p4314 = scmp.le.s32.totalorder 2, %s19
    // Predicated region
    $region77: #{tpu_custom_call.1} parent=5 // pred_check
      %p4315 = pneg %p4314
    $region78: #{tpu_custom_call.1} parent=5 // pred_check_branch
      %4317 = sbr.rel (%p4315) target = $region80
    $region79: #{tpu_custom_call.1} parent=5 // pred_region
      %s4318 = ssub.s32 %s19, 2
      // Predicated region
      $region81: #{tpu_custom_call.1} parent=79 // pred_check
        %p4319 = pneg %p326
      $region82: #{tpu_custom_call.1} parent=79 // pred_check_branch
        %4321 = sbr.rel (%p4319) target = $region84
      $region83: #{tpu_custom_call.1} parent=79 // pred_region
        %p4322 = scmp.lt.s32.totalorder %s25, 1
        %s4323 = scalar_select %p4322, %s25, 1
        %s4324 = smul.addr %s4323, 32
        %s4325 = smul.addr %s4324, 8
        %s4326 = scalar_lea.vmem %s13, %s4325
      $region84: #{tpu_custom_call.1} parent=79 // pred_fallthru
        _
    $region80: #{tpu_custom_call.1} parent=5 // pred_fallthru
      _
  $region6: #{tpu_custom_call.1} parent=0 // loop_footer
    %s23 = sadd.s32 1, %s19
  $region7: #{tpu_custom_call.1} parent=0 // loop_footer_branch
    %18 = sbr.rel target = $region3
  $region8: #{tpu_custom_call.1} parent=0 // loop_exit
    _

</llo_original>
